<compile_context>
chip_gen: v5e
topology: v5e:2x2
jax: 0.10.0
libtpu: 0.0.40
codegen_flags: <defaults>
</compile_context>

<pallas_src>
import jax
import jax.numpy as jnp
from jax import lax
from jax.experimental import pallas as pl
from jax.experimental.pallas import tpu as pltpu

C_IN = 64                  # conv input channels (UNet3Plus output channels)
C_MID = 8                  # conv output channels
KH = KW = 3
STRIDE = 2
POOL_K = 16                # AvgPool kernel
POOL_S = 32                # AvgPool stride
N_POOL = 4                 # pooled spatial extent per side -> 8 * 4 * 4 = 128 fc features
WIN = POOL_K               # conv-output positions per pool-window side
FC_IN = C_MID * N_POOL * N_POOL            # 128
H_IN = W_IN = 224                          # forced by AvgPool2d(16,32) + Linear(128, .)
K_DIM = KH * KW * C_IN                     # 576 im2col depth (multiple of 16 -> no pad)
N_STEPS = 2                                # grid axis 1: 2 pool-rows per step
NW_STEP = (N_POOL // N_STEPS) * N_POOL     # 8 pool windows per step
POS_PER_WIN = WIN * WIN                    # 256 conv positions per pool window
M_STEP = NW_STEP * POS_PER_WIN             # 2048 conv positions per step
M_TOTAL = N_STEPS * M_STEP                 # 4096 conv positions per batch (used ones)
BAND = 2 * WIN + 1                         # 33 padded input rows/cols per band


def _decoder_kernel(slab_ref, wconv_ref, bconv_ref, wfc_ref, bfc_ref, out_ref):
    """One (batch, pool-row-pair) step: conv + SiLU + avgpool + fc for 8 windows."""
    r = pl.program_id(1)

    # Conv2d(64->8, k=3, s=2, p=1) for this step's 2048 positions: one lane-dense
    # bf16 matmul (weights on the LHS keep positions on the 2048-wide lane axis).
    y = jnp.dot(wconv_ref[...], slab_ref[...],
                preferred_element_type=jnp.float32)              # (8, 2048) f32
    y = y + bconv_ref[...]                                       # conv bias, (8,1) bcast

    # SiLU in f32, kept on the EUP (exp + approximate reciprocal).
    y = y * pl.reciprocal(1.0 + jnp.exp(-y), approx=True)

    # AvgPool2d(16, 32) + Linear(128 -> num_out) epilogue.  Window j occupies the
    # contiguous 128-aligned lane group [256*j, 256*(j+1)); the 1/256 pool divisor is
    # folded into wfc (exact: power of two).  Bias only on step r == 0; the wrapper
    # sums the two per-step partials.
    acc = jnp.where(r == 0, bfc_ref[...], 0.0)                   # (num_out, 1)
    for j in range(NW_STEP):
        p_j = jnp.sum(y[:, POS_PER_WIN * j:POS_PER_WIN * (j + 1)],
                      axis=1, keepdims=True)                     # (8, 1) f32, exact sum
        acc = acc + jnp.dot(wfc_ref[j], p_j,
                            preferred_element_type=jnp.float32)  # (num_out, 1)
    out_ref[...] = acc                                           # single write per step


def _window_im2col(x_nchw):
    """(B, 64, 224, 224) f32 -> (B, 576, 4096) bf16 window-contiguous im2col slab.

    slab[b, ci*9 + kh*3 + kw, ((ph*4 + pw)*16 + rr)*16 + cc]
        = xpad[b, ci, 64*ph + 2*rr + kh, 64*pw + 2*cc + kw]
    where xpad is the input zero-padded by 1 on top/left only (bottom/right padding is
    never read by the pool windows that survive AvgPool2d(16, stride=32)).
    """
    B = x_nchw.shape[0]
    xp = jnp.pad(x_nchw.astype(jnp.bfloat16),
                 ((0, 0), (0, 0), (1, 0), (1, 0)))                  # (B, 64, 225, 225)
    # Only 4 bands of 33 rows/cols feed the surviving pool windows.
    xr = jnp.stack([lax.slice_in_dim(xp, 64 * ph, 64 * ph + BAND, axis=2)
                    for ph in range(N_POOL)], axis=2)               # (B, 64, 4, 33, 225)
    xrc = jnp.stack([lax.slice_in_dim(xr, 64 * pw, 64 * pw + BAND, axis=4)
                     for pw in range(N_POOL)], axis=3)              # (B, 64, 4, 4, 33, 33)
    # 9 stride-2 taps; stacking after the channel axis gives k = ci*9 + kh*3 + kw,
    # and the (ph, pw, rr, cc) flatten is window-contiguous by construction.
    taps = [xrc[:, :, :, :, kh:kh + 2 * WIN:2, kw:kw + 2 * WIN:2]   # (B, 64, 4, 4, 16, 16)
            for kh in range(KH) for kw in range(KW)]
    slab = jnp.stack(taps, axis=2)                                  # (B, 64, 9, 4, 4, 16, 16)
    return slab.reshape(B, K_DIM, M_TOTAL)                          # (B, 576, 4096)


@jax.jit
def decoder2vector_forward(x_nchw, conv_w, conv_b, fc_w, fc_b):
    """Decoder2Vector forward (encoder treated as identity). x_nchw: (B, 64, 224, 224)."""
    B, C, H, W = x_nchw.shape
    assert C == C_IN and H == H_IN and W == W_IN
    num_out = fc_w.shape[0]
    assert fc_w.shape[1] == FC_IN

    # --- glue: per-step bf16 im2col slab (window-contiguous, K on sublanes, no pad).
    slab = _window_im2col(x_nchw)

    # --- glue: parameter re-layout.
    # conv weight (Cout, Cin, kh, kw) -> (8, 576) with k = ci*9 + kh*3 + kw (plain reshape).
    w_conv = conv_w.reshape(C_MID, K_DIM).astype(jnp.bfloat16)
    b_conv = conv_b.reshape(C_MID, 1).astype(jnp.float32)
    # fc weight (num_out, 128) with PyTorch flatten order f = c*16 + ph*4 + pw
    #   -> (step r, window j, num_out, c) slices, with the 1/256 pool divisor folded in.
    w_fc = jnp.transpose(
        fc_w.astype(jnp.float32).reshape(num_out, C_MID, N_STEPS, NW_STEP),
        (2, 3, 0, 1)) * (1.0 / float(POOL_K * POOL_K))              # (2, 8, num_out, 8)
    b_fc = fc_b.reshape(num_out, 1).astype(jnp.float32)

    slab_spec = pl.BlockSpec((None, K_DIM, M_STEP), lambda b, r: (b, 0, r))
    wconv_spec = pl.BlockSpec((C_MID, K_DIM), lambda b, r: (0, 0))
    bconv_spec = pl.BlockSpec((C_MID, 1), lambda b, r: (0, 0))
    wfc_spec = pl.BlockSpec((None, NW_STEP, num_out, C_MID), lambda b, r: (r, 0, 0, 0))
    bfc_spec = pl.BlockSpec((num_out, 1), lambda b, r: (0, 0))
    out_spec = pl.BlockSpec((None, None, num_out, 1), lambda b, r: (b, r, 0, 0))

    out = pl.pallas_call(
        _decoder_kernel,
        out_shape=jax.ShapeDtypeStruct((B, N_STEPS, num_out, 1), jnp.float32),
        grid_spec=pltpu.PrefetchScalarGridSpec(
            num_scalar_prefetch=0,
            grid=(B, N_STEPS),
            in_specs=[slab_spec, wconv_spec, bconv_spec, wfc_spec, bfc_spec],
            out_specs=out_spec),
        compiler_params=pltpu.CompilerParams(
            dimension_semantics=("parallel", "parallel"),
            vmem_limit_bytes=32 * 1024 * 1024),    # safe on v7x (64 MiB physical VMEM)
    )(slab, w_conv, b_conv, w_fc, b_fc)

    # Each step wrote its partial fc contribution (bias included only in step 0).
    return out.reshape(B, N_STEPS, num_out).sum(axis=1)


def reference_forward(x_nchw, conv_w, conv_b, fc_w, fc_b):
    """Pure-JAX reference matching the PyTorch Decoder2Vector forward."""
    y = lax.conv_general_dilated(
        x_nchw, conv_w, window_strides=(STRIDE, STRIDE),
        padding=((1, 1), (1, 1)),
        dimension_numbers=("NCHW", "OIHW", "NCHW"),
        precision=lax.Precision.HIGHEST)
    y = y + conv_b[None, :, None, None]
    y = y * (1.0 / (1.0 + jnp.exp(-y)))                       # SiLU
    y = lax.reduce_window(y, 0.0, lax.add,
                          (1, 1, POOL_K, POOL_K), (1, 1, POOL_S, POOL_S),
                          "VALID") / float(POOL_K * POOL_K)   # AvgPool2d(16, 32)
    y = y.reshape(y.shape[0], -1)                             # (B, 128), (C,PH,PW) order
    return jnp.dot(y, fc_w.T, precision=lax.Precision.HIGHEST) + fc_b


if __name__ == "__main__":
    key = jax.random.PRNGKey(0)
    # Shapes are forced by the module: AvgPool2d(16, stride=32) + Linear(128, .)
    # requires a 112x112 conv output, i.e. a 224x224 64-channel feature map.
    B = 2
    num_out = 2
    kx, kw1, kb1, kw2, kb2 = jax.random.split(key, 5)

    x = jax.random.normal(kx, (B, C_IN, H_IN, W_IN), dtype=jnp.float32)

    bound_conv = 1.0 / (C_IN * KH * KW) ** 0.5
    conv_w = jax.random.uniform(kw1, (C_MID, C_IN, KH, KW), jnp.float32,
                                -bound_conv, bound_conv)
    conv_b = jax.random.uniform(kb1, (C_MID,), jnp.float32, -bound_conv, bound_conv)

    bound_fc = 1.0 / FC_IN ** 0.5
    fc_w = jax.random.uniform(kw2, (num_out, FC_IN), jnp.float32, -bound_fc, bound_fc)
    fc_b = jax.random.uniform(kb2, (num_out,), jnp.float32, -bound_fc, bound_fc)

    out = decoder2vector_forward(x, conv_w, conv_b, fc_w, fc_b)
    out = jax.block_until_ready(out)

    ref = reference_forward(x, conv_w, conv_b, fc_w, fc_b)
    assert out.shape == (B, num_out), out.shape
    assert jnp.allclose(out, ref, atol=5e-3, rtol=5e-2), (out, ref)

    print("KERNEL_OK")
</pallas_src>

<mosaic_0001>
module attributes {stable_mosaic.version = 11 : i64} {
  func.func @_decoder_kernel(%arg0: i32, %arg1: i32, %arg2: memref<1x576x2048xbf16, #tpu.memory_space<vmem>>, %arg3: memref<8x576xbf16, #tpu.memory_space<vmem>>, %arg4: memref<8x1xf32, #tpu.memory_space<vmem>>, %arg5: memref<1x8x2x8xf32, #tpu.memory_space<vmem>>, %arg6: memref<2x1xf32, #tpu.memory_space<vmem>>, %arg7: memref<1x1x2x1xf32, #tpu.memory_space<vmem>>) attributes {dimension_semantics = [#tpu.dimension_semantics<parallel>, #tpu.dimension_semantics<parallel>], iteration_bounds = array<i64: 2, 2>, scalar_prefetch = 0 : i64, scratch_operands = 0 : i64, tpu.core_type = #tpu.core_type<tc>, window_params = [{transform_indices = @transform_0, window_bounds = array<i64: 1, 576, 2048>}, {pipeline_mode = #tpu.pipeline_mode<synchronous>, transform_indices = @transform_1, window_bounds = array<i64: 8, 576>}, {pipeline_mode = #tpu.pipeline_mode<synchronous>, transform_indices = @transform_2, window_bounds = array<i64: 8, 1>}, {transform_indices = @transform_3, window_bounds = array<i64: 1, 8, 2, 8>}, {pipeline_mode = #tpu.pipeline_mode<synchronous>, transform_indices = @transform_4, window_bounds = array<i64: 2, 1>}, {transform_indices = @transform_5, window_bounds = array<i64: 1, 1, 2, 1>}]} {
    %c0 = arith.constant 0 : index
    %c0_0 = arith.constant 0 : index
    %0 = vector.load %arg3[%c0, %c0_0] : memref<8x576xbf16, #tpu.memory_space<vmem>>, vector<8x576xbf16>
    %c0_1 = arith.constant 0 : index
    %c0_2 = arith.constant 0 : index
    %c0_3 = arith.constant 0 : index
    %1 = vector.load %arg2[%c0_1, %c0_2, %c0_3] : memref<1x576x2048xbf16, #tpu.memory_space<vmem>>, vector<1x576x2048xbf16>
    %2 = vector.shape_cast %1 : vector<1x576x2048xbf16> to vector<576x2048xbf16>
    %cst = arith.constant dense<0.000000e+00> : vector<8x2048xf32>
    %3 = tpu.matmul %0, %2, %cst {dimension_numbers = #tpu.dot_dimension_numbers<[1], [0], [0], [1], [0, 0, 1, 1], [], []>} : vector<8x576xbf16>, vector<576x2048xbf16>, vector<8x2048xf32> -> vector<8x2048xf32>
    %c0_4 = arith.constant 0 : index
    %c0_5 = arith.constant 0 : index
    %4 = vector.load %arg4[%c0_4, %c0_5] : memref<8x1xf32, #tpu.memory_space<vmem>>, vector<8x1xf32>
    %5 = vector.broadcast %4 : vector<8x1xf32> to vector<8x2048xf32>
    %6 = arith.addf %3, %5 : vector<8x2048xf32>
    %cst_6 = arith.constant 0.000000e+00 : f32
    %7 = vector.broadcast %cst_6 : f32 to vector<8x2048xf32>
    %8 = arith.subf %7, %6 : vector<8x2048xf32>
    %9 = math.exp %8 : vector<8x2048xf32>
    %cst_7 = arith.constant 1.000000e+00 : f32
    %10 = vector.broadcast %cst_7 : f32 to vector<8x2048xf32>
    %11 = arith.addf %10, %9 : vector<8x2048xf32>
    %12 = tpu.reciprocal %11 {approx = true} : vector<8x2048xf32> -> vector<8x2048xf32>
    %13 = arith.mulf %6, %12 : vector<8x2048xf32>
    %c0_i32 = arith.constant 0 : i32
    %14 = arith.cmpi eq, %arg1, %c0_i32 : i32
    %c0_8 = arith.constant 0 : index
    %c0_9 = arith.constant 0 : index
    %15 = vector.load %arg6[%c0_8, %c0_9] : memref<2x1xf32, #tpu.memory_space<vmem>>, vector<2x1xf32>
    %cst_10 = arith.constant 0.000000e+00 : f32
    %16 = vector.broadcast %cst_10 : f32 to vector<2x1xf32>
    %17 = arith.select %14, %15, %16 : vector<2x1xf32>
    %18 = vector.extract_strided_slice %13 {offsets = [0, 0], sizes = [8, 256], strides = [1, 1]} : vector<8x2048xf32> to vector<8x256xf32>
    %cst_11 = arith.constant dense<0.000000e+00> : vector<8xf32>
    %19 = vector.multi_reduction <add>, %18, %cst_11 [1] : vector<8x256xf32> to vector<8xf32>
    %20 = vector.shape_cast %19 : vector<8xf32> to vector<8x1xf32>
    %c0_12 = arith.constant 0 : index
    %c0_13 = arith.constant 0 : index
    %c0_14 = arith.constant 0 : index
    %c0_15 = arith.constant 0 : index
    %21 = vector.load %arg5[%c0_12, %c0_13, %c0_14, %c0_15] : memref<1x8x2x8xf32, #tpu.memory_space<vmem>>, vector<1x1x2x8xf32>
    %22 = vector.shape_cast %21 : vector<1x1x2x8xf32> to vector<2x8xf32>
    %cst_16 = arith.constant dense<0.000000e+00> : vector<2x1xf32>
    %23 = tpu.matmul %22, %20, %cst_16 {dimension_numbers = #tpu.dot_dimension_numbers<[1], [0], [0], [1], [0, 0, 1, 1], [], []>} : vector<2x8xf32>, vector<8x1xf32>, vector<2x1xf32> -> vector<2x1xf32>
    %24 = arith.addf %17, %23 : vector<2x1xf32>
    %25 = vector.extract_strided_slice %13 {offsets = [0, 256], sizes = [8, 256], strides = [1, 1]} : vector<8x2048xf32> to vector<8x256xf32>
    %cst_17 = arith.constant dense<0.000000e+00> : vector<8xf32>
    %26 = vector.multi_reduction <add>, %25, %cst_17 [1] : vector<8x256xf32> to vector<8xf32>
    %27 = vector.shape_cast %26 : vector<8xf32> to vector<8x1xf32>
    %c0_18 = arith.constant 0 : index
    %c1 = arith.constant 1 : index
    %c0_19 = arith.constant 0 : index
    %c0_20 = arith.constant 0 : index
    %28 = vector.load %arg5[%c0_18, %c1, %c0_19, %c0_20] : memref<1x8x2x8xf32, #tpu.memory_space<vmem>>, vector<1x1x2x8xf32>
    %29 = vector.shape_cast %28 : vector<1x1x2x8xf32> to vector<2x8xf32>
    %cst_21 = arith.constant dense<0.000000e+00> : vector<2x1xf32>
    %30 = tpu.matmul %29, %27, %cst_21 {dimension_numbers = #tpu.dot_dimension_numbers<[1], [0], [0], [1], [0, 0, 1, 1], [], []>} : vector<2x8xf32>, vector<8x1xf32>, vector<2x1xf32> -> vector<2x1xf32>
    %31 = arith.addf %24, %30 : vector<2x1xf32>
    %32 = vector.extract_strided_slice %13 {offsets = [0, 512], sizes = [8, 256], strides = [1, 1]} : vector<8x2048xf32> to vector<8x256xf32>
    %cst_22 = arith.constant dense<0.000000e+00> : vector<8xf32>
    %33 = vector.multi_reduction <add>, %32, %cst_22 [1] : vector<8x256xf32> to vector<8xf32>
    %34 = vector.shape_cast %33 : vector<8xf32> to vector<8x1xf32>
    %c0_23 = arith.constant 0 : index
    %c2 = arith.constant 2 : index
    %c0_24 = arith.constant 0 : index
    %c0_25 = arith.constant 0 : index
    %35 = vector.load %arg5[%c0_23, %c2, %c0_24, %c0_25] : memref<1x8x2x8xf32, #tpu.memory_space<vmem>>, vector<1x1x2x8xf32>
    %36 = vector.shape_cast %35 : vector<1x1x2x8xf32> to vector<2x8xf32>
    %cst_26 = arith.constant dense<0.000000e+00> : vector<2x1xf32>
    %37 = tpu.matmul %36, %34, %cst_26 {dimension_numbers = #tpu.dot_dimension_numbers<[1], [0], [0], [1], [0, 0, 1, 1], [], []>} : vector<2x8xf32>, vector<8x1xf32>, vector<2x1xf32> -> vector<2x1xf32>
    %38 = arith.addf %31, %37 : vector<2x1xf32>
    %39 = vector.extract_strided_slice %13 {offsets = [0, 768], sizes = [8, 256], strides = [1, 1]} : vector<8x2048xf32> to vector<8x256xf32>
    %cst_27 = arith.constant dense<0.000000e+00> : vector<8xf32>
    %40 = vector.multi_reduction <add>, %39, %cst_27 [1] : vector<8x256xf32> to vector<8xf32>
    %41 = vector.shape_cast %40 : vector<8xf32> to vector<8x1xf32>
    %c0_28 = arith.constant 0 : index
    %c3 = arith.constant 3 : index
    %c0_29 = arith.constant 0 : index
    %c0_30 = arith.constant 0 : index
    %42 = vector.load %arg5[%c0_28, %c3, %c0_29, %c0_30] : memref<1x8x2x8xf32, #tpu.memory_space<vmem>>, vector<1x1x2x8xf32>
    %43 = vector.shape_cast %42 : vector<1x1x2x8xf32> to vector<2x8xf32>
    %cst_31 = arith.constant dense<0.000000e+00> : vector<2x1xf32>
    %44 = tpu.matmul %43, %41, %cst_31 {dimension_numbers = #tpu.dot_dimension_numbers<[1], [0], [0], [1], [0, 0, 1, 1], [], []>} : vector<2x8xf32>, vector<8x1xf32>, vector<2x1xf32> -> vector<2x1xf32>
    %45 = arith.addf %38, %44 : vector<2x1xf32>
    %46 = vector.extract_strided_slice %13 {offsets = [0, 1024], sizes = [8, 256], strides = [1, 1]} : vector<8x2048xf32> to vector<8x256xf32>
    %cst_32 = arith.constant dense<0.000000e+00> : vector<8xf32>
    %47 = vector.multi_reduction <add>, %46, %cst_32 [1] : vector<8x256xf32> to vector<8xf32>
    %48 = vector.shape_cast %47 : vector<8xf32> to vector<8x1xf32>
    %c0_33 = arith.constant 0 : index
    %c4 = arith.constant 4 : index
    %c0_34 = arith.constant 0 : index
    %c0_35 = arith.constant 0 : index
    %49 = vector.load %arg5[%c0_33, %c4, %c0_34, %c0_35] : memref<1x8x2x8xf32, #tpu.memory_space<vmem>>, vector<1x1x2x8xf32>
    %50 = vector.shape_cast %49 : vector<1x1x2x8xf32> to vector<2x8xf32>
    %cst_36 = arith.constant dense<0.000000e+00> : vector<2x1xf32>
    %51 = tpu.matmul %50, %48, %cst_36 {dimension_numbers = #tpu.dot_dimension_numbers<[1], [0], [0], [1], [0, 0, 1, 1], [], []>} : vector<2x8xf32>, vector<8x1xf32>, vector<2x1xf32> -> vector<2x1xf32>
    %52 = arith.addf %45, %51 : vector<2x1xf32>
    %53 = vector.extract_strided_slice %13 {offsets = [0, 1280], sizes = [8, 256], strides = [1, 1]} : vector<8x2048xf32> to vector<8x256xf32>
    %cst_37 = arith.constant dense<0.000000e+00> : vector<8xf32>
    %54 = vector.multi_reduction <add>, %53, %cst_37 [1] : vector<8x256xf32> to vector<8xf32>
    %55 = vector.shape_cast %54 : vector<8xf32> to vector<8x1xf32>
    %c0_38 = arith.constant 0 : index
    %c5 = arith.constant 5 : index
    %c0_39 = arith.constant 0 : index
    %c0_40 = arith.constant 0 : index
    %56 = vector.load %arg5[%c0_38, %c5, %c0_39, %c0_40] : memref<1x8x2x8xf32, #tpu.memory_space<vmem>>, vector<1x1x2x8xf32>
    %57 = vector.shape_cast %56 : vector<1x1x2x8xf32> to vector<2x8xf32>
    %cst_41 = arith.constant dense<0.000000e+00> : vector<2x1xf32>
    %58 = tpu.matmul %57, %55, %cst_41 {dimension_numbers = #tpu.dot_dimension_numbers<[1], [0], [0], [1], [0, 0, 1, 1], [], []>} : vector<2x8xf32>, vector<8x1xf32>, vector<2x1xf32> -> vector<2x1xf32>
    %59 = arith.addf %52, %58 : vector<2x1xf32>
    %60 = vector.extract_strided_slice %13 {offsets = [0, 1536], sizes = [8, 256], strides = [1, 1]} : vector<8x2048xf32> to vector<8x256xf32>
    %cst_42 = arith.constant dense<0.000000e+00> : vector<8xf32>
    %61 = vector.multi_reduction <add>, %60, %cst_42 [1] : vector<8x256xf32> to vector<8xf32>
    %62 = vector.shape_cast %61 : vector<8xf32> to vector<8x1xf32>
    %c0_43 = arith.constant 0 : index
    %c6 = arith.constant 6 : index
    %c0_44 = arith.constant 0 : index
    %c0_45 = arith.constant 0 : index
    %63 = vector.load %arg5[%c0_43, %c6, %c0_44, %c0_45] : memref<1x8x2x8xf32, #tpu.memory_space<vmem>>, vector<1x1x2x8xf32>
    %64 = vector.shape_cast %63 : vector<1x1x2x8xf32> to vector<2x8xf32>
    %cst_46 = arith.constant dense<0.000000e+00> : vector<2x1xf32>
    %65 = tpu.matmul %64, %62, %cst_46 {dimension_numbers = #tpu.dot_dimension_numbers<[1], [0], [0], [1], [0, 0, 1, 1], [], []>} : vector<2x8xf32>, vector<8x1xf32>, vector<2x1xf32> -> vector<2x1xf32>
    %66 = arith.addf %59, %65 : vector<2x1xf32>
    %67 = vector.extract_strided_slice %13 {offsets = [0, 1792], sizes = [8, 256], strides = [1, 1]} : vector<8x2048xf32> to vector<8x256xf32>
    %cst_47 = arith.constant dense<0.000000e+00> : vector<8xf32>
    %68 = vector.multi_reduction <add>, %67, %cst_47 [1] : vector<8x256xf32> to vector<8xf32>
    %69 = vector.shape_cast %68 : vector<8xf32> to vector<8x1xf32>
    %c0_48 = arith.constant 0 : index
    %c7 = arith.constant 7 : index
    %c0_49 = arith.constant 0 : index
    %c0_50 = arith.constant 0 : index
    %70 = vector.load %arg5[%c0_48, %c7, %c0_49, %c0_50] : memref<1x8x2x8xf32, #tpu.memory_space<vmem>>, vector<1x1x2x8xf32>
    %71 = vector.shape_cast %70 : vector<1x1x2x8xf32> to vector<2x8xf32>
    %cst_51 = arith.constant dense<0.000000e+00> : vector<2x1xf32>
    %72 = tpu.matmul %71, %69, %cst_51 {dimension_numbers = #tpu.dot_dimension_numbers<[1], [0], [0], [1], [0, 0, 1, 1], [], []>} : vector<2x8xf32>, vector<8x1xf32>, vector<2x1xf32> -> vector<2x1xf32>
    %73 = arith.addf %66, %72 : vector<2x1xf32>
    %c0_52 = arith.constant 0 : index
    %c0_53 = arith.constant 0 : index
    %c0_54 = arith.constant 0 : index
    %c0_55 = arith.constant 0 : index
    %74 = vector.load %arg7[%c0_52, %c0_53, %c0_54, %c0_55] : memref<1x1x2x1xf32, #tpu.memory_space<vmem>>, vector<1x1x2x1xf32>
    %75 = vector.shape_cast %74 : vector<1x1x2x1xf32> to vector<2x1xf32>
    %76 = vector.shape_cast %73 : vector<2x1xf32> to vector<1x1x2x1xf32>
    tpu.vector_store %arg7[%c0_52, %c0_53, %c0_54, %c0_55], %76 {strides = array<i32>} : memref<1x1x2x1xf32, #tpu.memory_space<vmem>>, vector<1x1x2x1xf32>,
    return
  }
  func.func @transform_0(%arg0: i32, %arg1: i32) -> (i32, i32, i32) {
    %c0_i32 = arith.constant 0 : i32
    %c0_i32_0 = arith.constant 0 : i32
    return %arg0, %c0_i32, %arg1 : i32, i32, i32
  }
  func.func @transform_1(%arg0: i32, %arg1: i32) -> (i32, i32) {
    %c0_i32 = arith.constant 0 : i32
    %c0_i32_0 = arith.constant 0 : i32
    %c0_i32_1 = arith.constant 0 : i32
    return %c0_i32, %c0_i32_0 : i32, i32
  }
  func.func @transform_2(%arg0: i32, %arg1: i32) -> (i32, i32) {
    %c0_i32 = arith.constant 0 : i32
    %c0_i32_0 = arith.constant 0 : i32
    %c0_i32_1 = arith.constant 0 : i32
    return %c0_i32, %c0_i32_0 : i32, i32
  }
  func.func @transform_3(%arg0: i32, %arg1: i32) -> (i32, i32, i32, i32) {
    %c0_i32 = arith.constant 0 : i32
    %c0_i32_0 = arith.constant 0 : i32
    %c0_i32_1 = arith.constant 0 : i32
    %c0_i32_2 = arith.constant 0 : i32
    return %arg1, %c0_i32, %c0_i32_0, %c0_i32_1 : i32, i32, i32, i32
  }
  func.func @transform_4(%arg0: i32, %arg1: i32) -> (i32, i32) {
    %c0_i32 = arith.constant 0 : i32
    %c0_i32_0 = arith.constant 0 : i32
    %c0_i32_1 = arith.constant 0 : i32
    return %c0_i32, %c0_i32_0 : i32, i32
  }
  func.func @transform_5(%arg0: i32, %arg1: i32) -> (i32, i32, i32, i32) {
    %c0_i32 = arith.constant 0 : i32
    %c0_i32_0 = arith.constant 0 : i32
    %c0_i32_1 = arith.constant 0 : i32
    return %arg0, %arg1, %c0_i32, %c0_i32_0 : i32, i32, i32, i32
  }
}

</mosaic_0001>

<llo_original>
// kernel: decoder2vector_forward.1
$region0: #{decoder2vector_forward.1}
  #allocation0 [shape = 'u32[]', space=smem, size = 0x4, offset = 0x4, fixed_abs, tag = 'smem constant byte address 0x4 - core index']
  #allocation1 [shape = 'u32[72,128]{1,0:T(1,128)}', space=vmem, size = 0x9000, scoped, tag = 'internal scratch']
  %s0 = inlined_call_operand.vmem [shape: bf16[2,576,4096], index: 0, kind: input, shape index: {}]
  %s1 = inlined_call_operand.vmem [shape: bf16[8,576], index: 1, kind: input, shape index: {}]
  %s2 = inlined_call_operand.vmem [shape: f32[8,1], index: 2, kind: input, shape index: {}]
  %s3 = inlined_call_operand.vmem [shape: f32[2,8,2,8], index: 3, kind: input, shape index: {}]
  %s4 = inlined_call_operand.vmem [shape: f32[2,1], index: 4, kind: input, shape index: {}]
  %s5 = inlined_call_operand.vmem [shape: f32[2,2,2,1], index: 5, kind: output, shape index: {}]
  %s6 = sld [smem:[#allocation0]]
  $region76: #{decoder2vector_forward.1} parent=0
    _
  %s8 = ssub.s32 1, %s6
  %s9 = scalar_select 0, %s8, %s6
  $region1: #{decoder2vector_forward.1} parent=0
    #allocation2 [shape = 'u8[4718592]{0}', space=vmem, size = 0x480000, scoped, tag = 'input window, operand 0']
    loop: start=0, step=1, limit=6
    $region2: #{decoder2vector_forward.1} parent=1 // loop_pre_header
      _
    $region3: #{decoder2vector_forward.1} parent=1 // loop_header
      %s11 = sphi 0, %s15
      %p12 = scmp.ge.s32.totalorder %s11, 6
      %s18 = sphi 0, %s30
      %s19 = sphi 0, %s26
      %s20 = sphi 0, %s18
      %s21 = sphi 0, %s19
      %s22 = sphi 0, %s20
      %s23 = sphi 0, %s21
      %s35 = sphi 0, %s37
      %s38 = sphi 0, %s35
      %s39 = sphi 0, %s38
      %s55 = sphi 0, %s39
      %s59 = sphi 0, %s59
      %s61 = sphi 0, %s59
      %s62 = sphi 0, %s61
      %s76 = sphi 0, %s62
      %s80 = sphi 0, %s80
      %s82 = sphi 0, %s80
      %s83 = sphi 0, %s82
      %s97 = sphi 0, %s83
      %s103 = sphi 0, %s105
      %s106 = sphi 0, %s103
      %s107 = sphi 0, %s106
      %s123 = sphi 0, %s107
      %s127 = sphi 0, %s127
      %s129 = sphi 0, %s127
      %s130 = sphi 0, %s129
      %s144 = sphi 0, %s130
      %s152 = sphi 0, %s154
      %s155 = sphi 0, %s152
      %s156 = sphi 0, %s155
      %s172 = sphi 0, %s156
    $region4: #{decoder2vector_forward.1} parent=1 // loop_header_branch
      %14 = sbr.rel (%p12) target = $region8
    $region5: #{decoder2vector_forward.1} parent=1 // loop_body
      %s16 = ssub.s32 %s11, 1
      %s17 = ssub.s32 %s11, 2
      %s24 = sadd.s32 1, %s19
      %p25 = scmp.ge.s32.totalorder %s24, 2
      %s26 = scalar_select %p25, 0, %s24
      %s27 = sadd.s32 1, %s18
      %s28 = scalar_select %p25, %s27, %s18
      %p29 = scmp.ge.s32.totalorder %s28, 2
      %s30 = scalar_select %p29, 0, %s28
      %s31 = ssub.s32 %s18, %s30
      %s32 = ssub.s32 %s19, %s26
      %s33 = sor.u32 %s31, %s32
      %p34 = scmp.eq.s32.totalorder %s33, 0
      %s36 = sadd.s32 %s35, 1
      %s37 = scalar_select %p34, %s35, %s36
      %p40 = pneg %p34
      %p41 = scmp.eq.s32.totalorder %s11, 3
      %p42 = por %p40, %p41
      %p43 = scmp.ne.s32.totalorder %s35, %s38
      %p44 = scmp.eq.s32.totalorder %s11, 0
      %p45 = por %p43, %p44
      %p46 = scmp.ne.s32.totalorder %s35, %s38
      %p47 = scmp.eq.s32.totalorder %s16, 3
      %p48 = por %p46, %p47
      %p49 = scmp.ne.s32.totalorder %s38, %s39
      %p50 = scmp.eq.s32.totalorder %s16, 0
      %p51 = por %p49, %p50
      %p52 = scmp.ne.s32.totalorder %s38, %s39
      %p53 = scmp.eq.s32.totalorder %s17, 3
      %p54 = por %p52, %p53
      %p56 = scmp.ne.s32.totalorder %s39, %s55
      %p57 = scmp.eq.s32.totalorder %s17, 0
      %p58 = por %p56, %p57
      %s60 = sadd.s32 %s59, 1
      %p63 = scmp.eq.s32.totalorder %s11, 3
      %p64 = scmp.ne.s32.totalorder %s59, %s61
      %p65 = scmp.eq.s32.totalorder %s11, 0
      %p66 = por %p64, %p65
      %p67 = scmp.ne.s32.totalorder %s59, %s61
      %p68 = scmp.eq.s32.totalorder %s16, 3
      %p69 = por %p67, %p68
      %p70 = scmp.ne.s32.totalorder %s61, %s62
      %p71 = scmp.eq.s32.totalorder %s16, 0
      %p72 = por %p70, %p71
      %p73 = scmp.ne.s32.totalorder %s61, %s62
      %p74 = scmp.eq.s32.totalorder %s17, 3
      %p75 = por %p73, %p74
      %p77 = scmp.ne.s32.totalorder %s62, %s76
      %p78 = scmp.eq.s32.totalorder %s17, 0
      %p79 = por %p77, %p78
      %s81 = sadd.s32 %s80, 1
      %p84 = scmp.eq.s32.totalorder %s11, 3
      %p85 = scmp.ne.s32.totalorder %s80, %s82
      %p86 = scmp.eq.s32.totalorder %s11, 0
      %p87 = por %p85, %p86
      %p88 = scmp.ne.s32.totalorder %s80, %s82
      %p89 = scmp.eq.s32.totalorder %s16, 3
      %p90 = por %p88, %p89
      %p91 = scmp.ne.s32.totalorder %s82, %s83
      %p92 = scmp.eq.s32.totalorder %s16, 0
      %p93 = por %p91, %p92
      %p94 = scmp.ne.s32.totalorder %s82, %s83
      %p95 = scmp.eq.s32.totalorder %s17, 3
      %p96 = por %p94, %p95
      %p98 = scmp.ne.s32.totalorder %s83, %s97
      %p99 = scmp.eq.s32.totalorder %s17, 0
      %p100 = por %p98, %p99
      %s101 = ssub.s32 %s19, %s26
      %p102 = scmp.eq.s32.totalorder %s101, 0
      %s104 = sadd.s32 %s103, 1
      %s105 = scalar_select %p102, %s103, %s104
      %p108 = pneg %p102
      %p109 = scmp.eq.s32.totalorder %s11, 3
      %p110 = por %p108, %p109
      %p111 = scmp.ne.s32.totalorder %s103, %s106
      %p112 = scmp.eq.s32.totalorder %s11, 0
      %p113 = por %p111, %p112
      %p114 = scmp.ne.s32.totalorder %s103, %s106
      %p115 = scmp.eq.s32.totalorder %s16, 3
      %p116 = por %p114, %p115
      %p117 = scmp.ne.s32.totalorder %s106, %s107
      %p118 = scmp.eq.s32.totalorder %s16, 0
      %p119 = por %p117, %p118
      %p120 = scmp.ne.s32.totalorder %s106, %s107
      %p121 = scmp.eq.s32.totalorder %s17, 3
      %p122 = por %p120, %p121
      %p124 = scmp.ne.s32.totalorder %s107, %s123
      %p125 = scmp.eq.s32.totalorder %s17, 0
      %p126 = por %p124, %p125
      %s128 = sadd.s32 %s127, 1
      %p131 = scmp.eq.s32.totalorder %s11, 3
      %p132 = scmp.ne.s32.totalorder %s127, %s129
      %p133 = scmp.eq.s32.totalorder %s11, 0
      %p134 = por %p132, %p133
      %p135 = scmp.ne.s32.totalorder %s127, %s129
      %p136 = scmp.eq.s32.totalorder %s16, 3
      %p137 = por %p135, %p136
      %p138 = scmp.ne.s32.totalorder %s129, %s130
      %p139 = scmp.eq.s32.totalorder %s16, 0
      %p140 = por %p138, %p139
      %p141 = scmp.ne.s32.totalorder %s129, %s130
      %p142 = scmp.eq.s32.totalorder %s17, 3
      %p143 = por %p141, %p142
      %p145 = scmp.ne.s32.totalorder %s130, %s144
      %p146 = scmp.eq.s32.totalorder %s17, 0
      %p147 = por %p145, %p146
      %s148 = ssub.s32 %s18, %s30
      %s149 = ssub.s32 %s19, %s26
      %s150 = sor.u32 %s148, %s149
      %p151 = scmp.eq.s32.totalorder %s150, 0
      %s153 = sadd.s32 %s152, 1
      %s154 = scalar_select %p151, %s152, %s153
      %p157 = pneg %p151
      %p158 = scmp.eq.s32.totalorder %s11, 3
      %p159 = por %p157, %p158
      %p160 = scmp.ne.s32.totalorder %s152, %s155
      %p161 = scmp.eq.s32.totalorder %s11, 0
      %p162 = por %p160, %p161
      %p163 = scmp.ne.s32.totalorder %s152, %s155
      %p164 = scmp.eq.s32.totalorder %s16, 3
      %p165 = por %p163, %p164
      %p166 = scmp.ne.s32.totalorder %s155, %s156
      %p167 = scmp.eq.s32.totalorder %s16, 0
      %p168 = por %p166, %p167
      %p169 = scmp.ne.s32.totalorder %s155, %s156
      %p170 = scmp.eq.s32.totalorder %s17, 3
      %p171 = por %p169, %p170
      %p173 = scmp.ne.s32.totalorder %s156, %s172
      %p174 = scmp.eq.s32.totalorder %s17, 0
      %p175 = por %p173, %p174
      %p176 = scmp.le.s32.totalorder 1, %s11
      %p177 = scmp.lt.s32.totalorder %s11, 5
      %p178 = pnand %p176, %p177
      %p179 = pneg %p178
      // Predicated region
      $region9: #{decoder2vector_forward.1} parent=5 // pred_check
        _
      $region10: #{decoder2vector_forward.1} parent=5 // pred_check_branch
        %181 = sbr.rel (%p178) target = $region12
      $region11: #{decoder2vector_forward.1} parent=5 // pred_region
        %s182 = ssub.s32 %s11, 1
        // Predicated region
        $region13: #{decoder2vector_forward.1} parent=11 // pred_check
          %p183 = pneg %p72
        $region14: #{decoder2vector_forward.1} parent=11 // pred_check_branch
          %185 = sbr.rel (%p183) target = $region16
        $region15: #{decoder2vector_forward.1} parent=11 // pred_region
          _
        $region16: #{decoder2vector_forward.1} parent=11 // pred_fallthru
          _
        // Predicated region
        $region17: #{decoder2vector_forward.1} parent=11 // pred_check
          %p186 = pneg %p93
        $region18: #{decoder2vector_forward.1} parent=11 // pred_check_branch
          %188 = sbr.rel (%p186) target = $region20
        $region19: #{decoder2vector_forward.1} parent=11 // pred_region
          _
        $region20: #{decoder2vector_forward.1} parent=11 // pred_fallthru
          _
        // Predicated region
        $region21: #{decoder2vector_forward.1} parent=11 // pred_check
          %p189 = pneg %p140
        $region22: #{decoder2vector_forward.1} parent=11 // pred_check_branch
          %191 = sbr.rel (%p189) target = $region24
        $region23: #{decoder2vector_forward.1} parent=11 // pred_region
          _
        $region24: #{decoder2vector_forward.1} parent=11 // pred_fallthru
          _
      $region12: #{decoder2vector_forward.1} parent=5 // pred_fallthru
        _
      %p192 = scmp.lt.s32.totalorder %s11, 4
      // Predicated region
      $region25: #{decoder2vector_forward.1} parent=5 // pred_check
        %p193 = pneg %p192
      $region26: #{decoder2vector_forward.1} parent=5 // pred_check_branch
        %195 = sbr.rel (%p193) target = $region28
      $region27: #{decoder2vector_forward.1} parent=5 // pred_region
        // Predicated region
        $region29: #{decoder2vector_forward.1} parent=27 // pred_check
          %p196 = pneg %p45
        $region30: #{decoder2vector_forward.1} parent=27 // pred_check_branch
          %198 = sbr.rel (%p196) target = $region32
        $region31: #{decoder2vector_forward.1} parent=27 // pred_region
          %s199 = sand.u32 %s35, 1
          %s200 = sand.u32 %s35, 1
          %s201 = smul.addr %s200, 4608
          %s202 = scalar_lea.vmem [#allocation2], %s201
          %s203 = smul.u32 16, %s19
          %s204 = smul.addr %s18, 2304
          %s205 = sadd.s32 %s203, %s204
          %s206 = smul.addr %s205, 4
          %s207 = scalar_lea.vmem %s0, %s206
          // Predicated region
          $region33: #{decoder2vector_forward.1} parent=31 // pred_check
            _
          $region34: #{decoder2vector_forward.1} parent=31 // pred_check_branch
            %209 = sbr.rel (0) target = $region36
          $region35: #{decoder2vector_forward.1} parent=31 // pred_region
            // Predicated region
            $region37: #{decoder2vector_forward.1} parent=35 // pred_check
              _
            $region38: #{decoder2vector_forward.1} parent=35 // pred_check_branch
              %211 = sbr.rel (0) target = $region40
            $region39: #{decoder2vector_forward.1} parent=35 // pred_region
              loop: start=0, step=1, limit=1
              $region41: #{decoder2vector_forward.1} parent=39 // loop_pre_header
                _
              $region42: #{decoder2vector_forward.1} parent=39 // loop_header
                %s213 = sphi 0, %s217
                %p214 = scmp.ge.s32.totalorder %s213, 1
                %s218 = sphi %s207, %s207
                %s219 = sphi %s202, %s202
              $region43: #{decoder2vector_forward.1} parent=39 // loop_header_branch
                %216 = sbr.rel (%p214) target = $region47
              $region44: #{decoder2vector_forward.1} parent=39 // loop_body
                %v220 = vld [vmem:[%s218] sm:$0xff]
                %221 = vst [vmem:[%s219] sm:$0xff] %v220
                %v222 = vld [vmem:[%s218 + $0x8] sm:$0xff]
                %223 = vst [vmem:[%s219 + $0x8] sm:$0xff] %v222
                %v224 = vld [vmem:[%s218 + $0x10] sm:$0xff]
                %225 = vst [vmem:[%s219 + $0x10] sm:$0xff] %v224
                %v226 = vld [vmem:[%s218 + $0x18] sm:$0xff]
                %227 = vst [vmem:[%s219 + $0x18] sm:$0xff] %v226
                %v228 = vld [vmem:[%s218 + $0x20] sm:$0xff]
                %229 = vst [vmem:[%s219 + $0x20] sm:$0xff] %v228
                %v230 = vld [vmem:[%s218 + $0x28] sm:$0xff]
                %231 = vst [vmem:[%s219 + $0x28] sm:$0xff] %v230
                %v232 = vld [vmem:[%s218 + $0x30] sm:$0xff]
                %233 = vst [vmem:[%s219 + $0x30] sm:$0xff] %v232
                %v234 = vld [vmem:[%s218 + $0x38] sm:$0xff]
                %235 = vst [vmem:[%s219 + $0x38] sm:$0xff] %v234
                %v236 = vld [vmem:[%s218 + $0x80] sm:$0xff]
                %237 = vst [vmem:[%s219 + $0x40] sm:$0xff] %v236
                %v238 = vld [vmem:[%s218 + $0x88] sm:$0xff]
                %239 = vst [vmem:[%s219 + $0x48] sm:$0xff] %v238
                %v240 = vld [vmem:[%s218 + $0x90] sm:$0xff]
                %241 = vst [vmem:[%s219 + $0x50] sm:$0xff] %v240
                %v242 = vld [vmem:[%s218 + $0x98] sm:$0xff]
                %243 = vst [vmem:[%s219 + $0x58] sm:$0xff] %v242
                %v244 = vld [vmem:[%s218 + $0xa0] sm:$0xff]
                %245 = vst [vmem:[%s219 + $0x60] sm:$0xff] %v244
                %v246 = vld [vmem:[%s218 + $0xa8] sm:$0xff]
                %247 = vst [vmem:[%s219 + $0x68] sm:$0xff] %v246
                %v248 = vld [vmem:[%s218 + $0xb0] sm:$0xff]
                %249 = vst [vmem:[%s219 + $0x70] sm:$0xff] %v248
                %v250 = vld [vmem:[%s218 + $0xb8] sm:$0xff]
                %251 = vst [vmem:[%s219 + $0x78] sm:$0xff] %v250
                %v252 = vld [vmem:[%s218 + $0x100] sm:$0xff]
                %253 = vst [vmem:[%s219 + $0x80] sm:$0xff] %v252
                %v254 = vld [vmem:[%s218 + $0x108] sm:$0xff]
                %255 = vst [vmem:[%s219 + $0x88] sm:$0xff] %v254
                %v256 = vld [vmem:[%s218 + $0x110] sm:$0xff]
                %257 = vst [vmem:[%s219 + $0x90] sm:$0xff] %v256
                %v258 = vld [vmem:[%s218 + $0x118] sm:$0xff]
                %259 = vst [vmem:[%s219 + $0x98] sm:$0xff] %v258
                %v260 = vld [vmem:[%s218 + $0x120] sm:$0xff]
                %261 = vst [vmem:[%s219 + $0xa0] sm:$0xff] %v260
                %v262 = vld [vmem:[%s218 + $0x128] sm:$0xff]
                %263 = vst [vmem:[%s219 + $0xa8] sm:$0xff] %v262
                %v264 = vld [vmem:[%s218 + $0x130] sm:$0xff]
                %265 = vst [vmem:[%s219 + $0xb0] sm:$0xff] %v264
                %v266 = vld [vmem:[%s218 + $0x138] sm:$0xff]
                %267 = vst [vmem:[%s219 + $0xb8] sm:$0xff] %v266
                %v268 = vld [vmem:[%s218 + $0x180] sm:$0xff]
                %269 = vst [vmem:[%s219 + $0xc0] sm:$0xff] %v268
                %v270 = vld [vmem:[%s218 + $0x188] sm:$0xff]
                %271 = vst [vmem:[%s219 + $0xc8] sm:$0xff] %v270
                %v272 = vld [vmem:[%s218 + $0x190] sm:$0xff]
                %273 = vst [vmem:[%s219 + $0xd0] sm:$0xff] %v272
                %v274 = vld [vmem:[%s218 + $0x198] sm:$0xff]
                %275 = vst [vmem:[%s219 + $0xd8] sm:$0xff] %v274
                %v276 = vld [vmem:[%s218 + $0x1a0] sm:$0xff]
                %277 = vst [vmem:[%s219 + $0xe0] sm:$0xff] %v276
                %v278 = vld [vmem:[%s218 + $0x1a8] sm:$0xff]
                %279 = vst [vmem:[%s219 + $0xe8] sm:$0xff] %v278
                %v280 = vld [vmem:[%s218 + $0x1b0] sm:$0xff]
                %281 = vst [vmem:[%s219 + $0xf0] sm:$0xff] %v280
                %v282 = vld [vmem:[%s218 + $0x1b8] sm:$0xff]
                %283 = vst [vmem:[%s219 + $0xf8] sm:$0xff] %v282
                %v284 = vld [vmem:[%s218 + $0x200] sm:$0xff]
                %285 = vst [vmem:[%s219 + $0x100] sm:$0xff] %v284
                %v286 = vld [vmem:[%s218 + $0x208] sm:$0xff]
                %287 = vst [vmem:[%s219 + $0x108] sm:$0xff] %v286
                %v288 = vld [vmem:[%s218 + $0x210] sm:$0xff]
                %289 = vst [vmem:[%s219 + $0x110] sm:$0xff] %v288
                %v290 = vld [vmem:[%s218 + $0x218] sm:$0xff]
                %291 = vst [vmem:[%s219 + $0x118] sm:$0xff] %v290
                %v292 = vld [vmem:[%s218 + $0x220] sm:$0xff]
                %293 = vst [vmem:[%s219 + $0x120] sm:$0xff] %v292
                %v294 = vld [vmem:[%s218 + $0x228] sm:$0xff]
                %295 = vst [vmem:[%s219 + $0x128] sm:$0xff] %v294
                %v296 = vld [vmem:[%s218 + $0x230] sm:$0xff]
                %297 = vst [vmem:[%s219 + $0x130] sm:$0xff] %v296
                %v298 = vld [vmem:[%s218 + $0x238] sm:$0xff]
                %299 = vst [vmem:[%s219 + $0x138] sm:$0xff] %v298
                %v300 = vld [vmem:[%s218 + $0x280] sm:$0xff]
                %301 = vst [vmem:[%s219 + $0x140] sm:$0xff] %v300
                %v302 = vld [vmem:[%s218 + $0x288] sm:$0xff]
                %303 = vst [vmem:[%s219 + $0x148] sm:$0xff] %v302
                %v304 = vld [vmem:[%s218 + $0x290] sm:$0xff]
                %305 = vst [vmem:[%s219 + $0x150] sm:$0xff] %v304
                %v306 = vld [vmem:[%s218 + $0x298] sm:$0xff]
                %307 = vst [vmem:[%s219 + $0x158] sm:$0xff] %v306
                %v308 = vld [vmem:[%s218 + $0x2a0] sm:$0xff]
                %309 = vst [vmem:[%s219 + $0x160] sm:$0xff] %v308
                %v310 = vld [vmem:[%s218 + $0x2a8] sm:$0xff]
                %311 = vst [vmem:[%s219 + $0x168] sm:$0xff] %v310
                %v312 = vld [vmem:[%s218 + $0x2b0] sm:$0xff]
                %313 = vst [vmem:[%s219 + $0x170] sm:$0xff] %v312
                %v314 = vld [vmem:[%s218 + $0x2b8] sm:$0xff]
                %315 = vst [vmem:[%s219 + $0x178] sm:$0xff] %v314
                %v316 = vld [vmem:[%s218 + $0x300] sm:$0xff]
                %317 = vst [vmem:[%s219 + $0x180] sm:$0xff] %v316
                %v318 = vld [vmem:[%s218 + $0x308] sm:$0xff]
                %319 = vst [vmem:[%s219 + $0x188] sm:$0xff] %v318
                %v320 = vld [vmem:[%s218 + $0x310] sm:$0xff]
                %321 = vst [vmem:[%s219 + $0x190] sm:$0xff] %v320
                %v322 = vld [vmem:[%s218 + $0x318] sm:$0xff]
                %323 = vst [vmem:[%s219 + $0x198] sm:$0xff] %v322
                %v324 = vld [vmem:[%s218 + $0x320] sm:$0xff]
                %325 = vst [vmem:[%s219 + $0x1a0] sm:$0xff] %v324
                %v326 = vld [vmem:[%s218 + $0x328] sm:$0xff]
                %327 = vst [vmem:[%s219 + $0x1a8] sm:$0xff] %v326
                %v328 = vld [vmem:[%s218 + $0x330] sm:$0xff]
                %329 = vst [vmem:[%s219 + $0x1b0] sm:$0xff] %v328
                %v330 = vld [vmem:[%s218 + $0x338] sm:$0xff]
                %331 = vst [vmem:[%s219 + $0x1b8] sm:$0xff] %v330
                %v332 = vld [vmem:[%s218 + $0x380] sm:$0xff]
                %333 = vst [vmem:[%s219 + $0x1c0] sm:$0xff] %v332
                %v334 = vld [vmem:[%s218 + $0x388] sm:$0xff]
                %335 = vst [vmem:[%s219 + $0x1c8] sm:$0xff] %v334
                %v336 = vld [vmem:[%s218 + $0x390] sm:$0xff]
                %337 = vst [vmem:[%s219 + $0x1d0] sm:$0xff] %v336
                %v338 = vld [vmem:[%s218 + $0x398] sm:$0xff]
                %339 = vst [vmem:[%s219 + $0x1d8] sm:$0xff] %v338
                %v340 = vld [vmem:[%s218 + $0x3a0] sm:$0xff]
                %341 = vst [vmem:[%s219 + $0x1e0] sm:$0xff] %v340
                %v342 = vld [vmem:[%s218 + $0x3a8] sm:$0xff]
                %343 = vst [vmem:[%s219 + $0x1e8] sm:$0xff] %v342
                %v344 = vld [vmem:[%s218 + $0x3b0] sm:$0xff]
                %345 = vst [vmem:[%s219 + $0x1f0] sm:$0xff] %v344
                %v346 = vld [vmem:[%s218 + $0x3b8] sm:$0xff]
                %347 = vst [vmem:[%s219 + $0x1f8] sm:$0xff] %v346
                %v348 = vld [vmem:[%s218 + $0x400] sm:$0xff]
                %349 = vst [vmem:[%s219 + $0x200] sm:$0xff] %v348
                %v350 = vld [vmem:[%s218 + $0x408] sm:$0xff]
                %351 = vst [vmem:[%s219 + $0x208] sm:$0xff] %v350
                %v352 = vld [vmem:[%s218 + $0x410] sm:$0xff]
                %353 = vst [vmem:[%s219 + $0x210] sm:$0xff] %v352
                %v354 = vld [vmem:[%s218 + $0x418] sm:$0xff]
                %355 = vst [vmem:[%s219 + $0x218] sm:$0xff] %v354
                %v356 = vld [vmem:[%s218 + $0x420] sm:$0xff]
                %357 = vst [vmem:[%s219 + $0x220] sm:$0xff] %v356
                %v358 = vld [vmem:[%s218 + $0x428] sm:$0xff]
                %359 = vst [vmem:[%s219 + $0x228] sm:$0xff] %v358
                %v360 = vld [vmem:[%s218 + $0x430] sm:$0xff]
                %361 = vst [vmem:[%s219 + $0x230] sm:$0xff] %v360
                %v362 = vld [vmem:[%s218 + $0x438] sm:$0xff]
                %363 = vst [vmem:[%s219 + $0x238] sm:$0xff] %v362
                %v364 = vld [vmem:[%s218 + $0x480] sm:$0xff]
                %365 = vst [vmem:[%s219 + $0x240] sm:$0xff] %v364
                %v366 = vld [vmem:[%s218 + $0x488] sm:$0xff]
                %367 = vst [vmem:[%s219 + $0x248] sm:$0xff] %v366
                %v368 = vld [vmem:[%s218 + $0x490] sm:$0xff]
                %369 = vst [vmem:[%s219 + $0x250] sm:$0xff] %v368
                %v370 = vld [vmem:[%s218 + $0x498] sm:$0xff]
                %371 = vst [vmem:[%s219 + $0x258] sm:$0xff] %v370
                %v372 = vld [vmem:[%s218 + $0x4a0] sm:$0xff]
                %373 = vst [vmem:[%s219 + $0x260] sm:$0xff] %v372
                %v374 = vld [vmem:[%s218 + $0x4a8] sm:$0xff]
                %375 = vst [vmem:[%s219 + $0x268] sm:$0xff] %v374
                %v376 = vld [vmem:[%s218 + $0x4b0] sm:$0xff]
                %377 = vst [vmem:[%s219 + $0x270] sm:$0xff] %v376
                %v378 = vld [vmem:[%s218 + $0x4b8] sm:$0xff]
                %379 = vst [vmem:[%s219 + $0x278] sm:$0xff] %v378
                %v380 = vld [vmem:[%s218 + $0x500] sm:$0xff]
                %381 = vst [vmem:[%s219 + $0x280] sm:$0xff] %v380
                %v382 = vld [vmem:[%s218 + $0x508] sm:$0xff]
                %383 = vst [vmem:[%s219 + $0x288] sm:$0xff] %v382
                %v384 = vld [vmem:[%s218 + $0x510] sm:$0xff]
                %385 = vst [vmem:[%s219 + $0x290] sm:$0xff] %v384
                %v386 = vld [vmem:[%s218 + $0x518] sm:$0xff]
                %387 = vst [vmem:[%s219 + $0x298] sm:$0xff] %v386
                %v388 = vld [vmem:[%s218 + $0x520] sm:$0xff]
                %389 = vst [vmem:[%s219 + $0x2a0] sm:$0xff] %v388
                %v390 = vld [vmem:[%s218 + $0x528] sm:$0xff]
                %391 = vst [vmem:[%s219 + $0x2a8] sm:$0xff] %v390
                %v392 = vld [vmem:[%s218 + $0x530] sm:$0xff]
                %393 = vst [vmem:[%s219 + $0x2b0] sm:$0xff] %v392
                %v394 = vld [vmem:[%s218 + $0x538] sm:$0xff]
                %395 = vst [vmem:[%s219 + $0x2b8] sm:$0xff] %v394
                %v396 = vld [vmem:[%s218 + $0x580] sm:$0xff]
                %397 = vst [vmem:[%s219 + $0x2c0] sm:$0xff] %v396
                %v398 = vld [vmem:[%s218 + $0x588] sm:$0xff]
                %399 = vst [vmem:[%s219 + $0x2c8] sm:$0xff] %v398
                %v400 = vld [vmem:[%s218 + $0x590] sm:$0xff]
                %401 = vst [vmem:[%s219 + $0x2d0] sm:$0xff] %v400
                %v402 = vld [vmem:[%s218 + $0x598] sm:$0xff]
                %403 = vst [vmem:[%s219 + $0x2d8] sm:$0xff] %v402
                %v404 = vld [vmem:[%s218 + $0x5a0] sm:$0xff]
                %405 = vst [vmem:[%s219 + $0x2e0] sm:$0xff] %v404
                %v406 = vld [vmem:[%s218 + $0x5a8] sm:$0xff]
                %407 = vst [vmem:[%s219 + $0x2e8] sm:$0xff] %v406
                %v408 = vld [vmem:[%s218 + $0x5b0] sm:$0xff]
                %409 = vst [vmem:[%s219 + $0x2f0] sm:$0xff] %v408
                %v410 = vld [vmem:[%s218 + $0x5b8] sm:$0xff]
                %411 = vst [vmem:[%s219 + $0x2f8] sm:$0xff] %v410
                %v412 = vld [vmem:[%s218 + $0x600] sm:$0xff]
                %413 = vst [vmem:[%s219 + $0x300] sm:$0xff] %v412
                %v414 = vld [vmem:[%s218 + $0x608] sm:$0xff]
                %415 = vst [vmem:[%s219 + $0x308] sm:$0xff] %v414
                %v416 = vld [vmem:[%s218 + $0x610] sm:$0xff]
                %417 = vst [vmem:[%s219 + $0x310] sm:$0xff] %v416
                %v418 = vld [vmem:[%s218 + $0x618] sm:$0xff]
                %419 = vst [vmem:[%s219 + $0x318] sm:$0xff] %v418
                %v420 = vld [vmem:[%s218 + $0x620] sm:$0xff]
                %421 = vst [vmem:[%s219 + $0x320] sm:$0xff] %v420
                %v422 = vld [vmem:[%s218 + $0x628] sm:$0xff]
                %423 = vst [vmem:[%s219 + $0x328] sm:$0xff] %v422
                %v424 = vld [vmem:[%s218 + $0x630] sm:$0xff]
                %425 = vst [vmem:[%s219 + $0x330] sm:$0xff] %v424
                %v426 = vld [vmem:[%s218 + $0x638] sm:$0xff]
                %427 = vst [vmem:[%s219 + $0x338] sm:$0xff] %v426
                %v428 = vld [vmem:[%s218 + $0x680] sm:$0xff]
                %429 = vst [vmem:[%s219 + $0x340] sm:$0xff] %v428
                %v430 = vld [vmem:[%s218 + $0x688] sm:$0xff]
                %431 = vst [vmem:[%s219 + $0x348] sm:$0xff] %v430
                %v432 = vld [vmem:[%s218 + $0x690] sm:$0xff]
                %433 = vst [vmem:[%s219 + $0x350] sm:$0xff] %v432
                %v434 = vld [vmem:[%s218 + $0x698] sm:$0xff]
                %435 = vst [vmem:[%s219 + $0x358] sm:$0xff] %v434
                %v436 = vld [vmem:[%s218 + $0x6a0] sm:$0xff]
                %437 = vst [vmem:[%s219 + $0x360] sm:$0xff] %v436
                %v438 = vld [vmem:[%s218 + $0x6a8] sm:$0xff]
                %439 = vst [vmem:[%s219 + $0x368] sm:$0xff] %v438
                %v440 = vld [vmem:[%s218 + $0x6b0] sm:$0xff]
                %441 = vst [vmem:[%s219 + $0x370] sm:$0xff] %v440
                %v442 = vld [vmem:[%s218 + $0x6b8] sm:$0xff]
                %443 = vst [vmem:[%s219 + $0x378] sm:$0xff] %v442
                %v444 = vld [vmem:[%s218 + $0x700] sm:$0xff]
                %445 = vst [vmem:[%s219 + $0x380] sm:$0xff] %v444
                %v446 = vld [vmem:[%s218 + $0x708] sm:$0xff]
                %447 = vst [vmem:[%s219 + $0x388] sm:$0xff] %v446
                %v448 = vld [vmem:[%s218 + $0x710] sm:$0xff]
                %449 = vst [vmem:[%s219 + $0x390] sm:$0xff] %v448
                %v450 = vld [vmem:[%s218 + $0x718] sm:$0xff]
                %451 = vst [vmem:[%s219 + $0x398] sm:$0xff] %v450
                %v452 = vld [vmem:[%s218 + $0x720] sm:$0xff]
                %453 = vst [vmem:[%s219 + $0x3a0] sm:$0xff] %v452
                %v454 = vld [vmem:[%s218 + $0x728] sm:$0xff]
                %455 = vst [vmem:[%s219 + $0x3a8] sm:$0xff] %v454
                %v456 = vld [vmem:[%s218 + $0x730] sm:$0xff]
                %457 = vst [vmem:[%s219 + $0x3b0] sm:$0xff] %v456
                %v458 = vld [vmem:[%s218 + $0x738] sm:$0xff]
                %459 = vst [vmem:[%s219 + $0x3b8] sm:$0xff] %v458
                %v460 = vld [vmem:[%s218 + $0x780] sm:$0xff]
                %461 = vst [vmem:[%s219 + $0x3c0] sm:$0xff] %v460
                %v462 = vld [vmem:[%s218 + $0x788] sm:$0xff]
                %463 = vst [vmem:[%s219 + $0x3c8] sm:$0xff] %v462
                %v464 = vld [vmem:[%s218 + $0x790] sm:$0xff]
                %465 = vst [vmem:[%s219 + $0x3d0] sm:$0xff] %v464
                %v466 = vld [vmem:[%s218 + $0x798] sm:$0xff]
                %467 = vst [vmem:[%s219 + $0x3d8] sm:$0xff] %v466
                %v468 = vld [vmem:[%s218 + $0x7a0] sm:$0xff]
                %469 = vst [vmem:[%s219 + $0x3e0] sm:$0xff] %v468
                %v470 = vld [vmem:[%s218 + $0x7a8] sm:$0xff]
                %471 = vst [vmem:[%s219 + $0x3e8] sm:$0xff] %v470
                %v472 = vld [vmem:[%s218 + $0x7b0] sm:$0xff]
                %473 = vst [vmem:[%s219 + $0x3f0] sm:$0xff] %v472
                %v474 = vld [vmem:[%s218 + $0x7b8] sm:$0xff]
                %475 = vst [vmem:[%s219 + $0x3f8] sm:$0xff] %v474
                %v476 = vld [vmem:[%s218 + $0x800] sm:$0xff]
                %477 = vst [vmem:[%s219 + $0x400] sm:$0xff] %v476
                %v478 = vld [vmem:[%s218 + $0x808] sm:$0xff]
                %479 = vst [vmem:[%s219 + $0x408] sm:$0xff] %v478
                %v480 = vld [vmem:[%s218 + $0x810] sm:$0xff]
                %481 = vst [vmem:[%s219 + $0x410] sm:$0xff] %v480
                %v482 = vld [vmem:[%s218 + $0x818] sm:$0xff]
                %483 = vst [vmem:[%s219 + $0x418] sm:$0xff] %v482
                %v484 = vld [vmem:[%s218 + $0x820] sm:$0xff]
                %485 = vst [vmem:[%s219 + $0x420] sm:$0xff] %v484
                %v486 = vld [vmem:[%s218 + $0x828] sm:$0xff]
                %487 = vst [vmem:[%s219 + $0x428] sm:$0xff] %v486
                %v488 = vld [vmem:[%s218 + $0x830] sm:$0xff]
                %489 = vst [vmem:[%s219 + $0x430] sm:$0xff] %v488
                %v490 = vld [vmem:[%s218 + $0x838] sm:$0xff]
                %491 = vst [vmem:[%s219 + $0x438] sm:$0xff] %v490
                %v492 = vld [vmem:[%s218 + $0x880] sm:$0xff]
                %493 = vst [vmem:[%s219 + $0x440] sm:$0xff] %v492
                %v494 = vld [vmem:[%s218 + $0x888] sm:$0xff]
                %495 = vst [vmem:[%s219 + $0x448] sm:$0xff] %v494
                %v496 = vld [vmem:[%s218 + $0x890] sm:$0xff]
                %497 = vst [vmem:[%s219 + $0x450] sm:$0xff] %v496
                %v498 = vld [vmem:[%s218 + $0x898] sm:$0xff]
                %499 = vst [vmem:[%s219 + $0x458] sm:$0xff] %v498
                %v500 = vld [vmem:[%s218 + $0x8a0] sm:$0xff]
                %501 = vst [vmem:[%s219 + $0x460] sm:$0xff] %v500
                %v502 = vld [vmem:[%s218 + $0x8a8] sm:$0xff]
                %503 = vst [vmem:[%s219 + $0x468] sm:$0xff] %v502
                %v504 = vld [vmem:[%s218 + $0x8b0] sm:$0xff]
                %505 = vst [vmem:[%s219 + $0x470] sm:$0xff] %v504
                %v506 = vld [vmem:[%s218 + $0x8b8] sm:$0xff]
                %507 = vst [vmem:[%s219 + $0x478] sm:$0xff] %v506
                %v508 = vld [vmem:[%s218 + $0x900] sm:$0xff]
                %509 = vst [vmem:[%s219 + $0x480] sm:$0xff] %v508
                %v510 = vld [vmem:[%s218 + $0x908] sm:$0xff]
                %511 = vst [vmem:[%s219 + $0x488] sm:$0xff] %v510
                %v512 = vld [vmem:[%s218 + $0x910] sm:$0xff]
                %513 = vst [vmem:[%s219 + $0x490] sm:$0xff] %v512
                %v514 = vld [vmem:[%s218 + $0x918] sm:$0xff]
                %515 = vst [vmem:[%s219 + $0x498] sm:$0xff] %v514
                %v516 = vld [vmem:[%s218 + $0x920] sm:$0xff]
                %517 = vst [vmem:[%s219 + $0x4a0] sm:$0xff] %v516
                %v518 = vld [vmem:[%s218 + $0x928] sm:$0xff]
                %519 = vst [vmem:[%s219 + $0x4a8] sm:$0xff] %v518
                %v520 = vld [vmem:[%s218 + $0x930] sm:$0xff]
                %521 = vst [vmem:[%s219 + $0x4b0] sm:$0xff] %v520
                %v522 = vld [vmem:[%s218 + $0x938] sm:$0xff]
                %523 = vst [vmem:[%s219 + $0x4b8] sm:$0xff] %v522
                %v524 = vld [vmem:[%s218 + $0x980] sm:$0xff]
                %525 = vst [vmem:[%s219 + $0x4c0] sm:$0xff] %v524
                %v526 = vld [vmem:[%s218 + $0x988] sm:$0xff]
                %527 = vst [vmem:[%s219 + $0x4c8] sm:$0xff] %v526
                %v528 = vld [vmem:[%s218 + $0x990] sm:$0xff]
                %529 = vst [vmem:[%s219 + $0x4d0] sm:$0xff] %v528
                %v530 = vld [vmem:[%s218 + $0x998] sm:$0xff]
                %531 = vst [vmem:[%s219 + $0x4d8] sm:$0xff] %v530
                %v532 = vld [vmem:[%s218 + $0x9a0] sm:$0xff]
                %533 = vst [vmem:[%s219 + $0x4e0] sm:$0xff] %v532
                %v534 = vld [vmem:[%s218 + $0x9a8] sm:$0xff]
                %535 = vst [vmem:[%s219 + $0x4e8] sm:$0xff] %v534
                %v536 = vld [vmem:[%s218 + $0x9b0] sm:$0xff]
                %537 = vst [vmem:[%s219 + $0x4f0] sm:$0xff] %v536
                %v538 = vld [vmem:[%s218 + $0x9b8] sm:$0xff]
                %539 = vst [vmem:[%s219 + $0x4f8] sm:$0xff] %v538
                %v540 = vld [vmem:[%s218 + $0xa00] sm:$0xff]
                %541 = vst [vmem:[%s219 + $0x500] sm:$0xff] %v540
                %v542 = vld [vmem:[%s218 + $0xa08] sm:$0xff]
                %543 = vst [vmem:[%s219 + $0x508] sm:$0xff] %v542
                %v544 = vld [vmem:[%s218 + $0xa10] sm:$0xff]
                %545 = vst [vmem:[%s219 + $0x510] sm:$0xff] %v544
                %v546 = vld [vmem:[%s218 + $0xa18] sm:$0xff]
                %547 = vst [vmem:[%s219 + $0x518] sm:$0xff] %v546
                %v548 = vld [vmem:[%s218 + $0xa20] sm:$0xff]
                %549 = vst [vmem:[%s219 + $0x520] sm:$0xff] %v548
                %v550 = vld [vmem:[%s218 + $0xa28] sm:$0xff]
                %551 = vst [vmem:[%s219 + $0x528] sm:$0xff] %v550
                %v552 = vld [vmem:[%s218 + $0xa30] sm:$0xff]
                %553 = vst [vmem:[%s219 + $0x530] sm:$0xff] %v552
                %v554 = vld [vmem:[%s218 + $0xa38] sm:$0xff]
                %555 = vst [vmem:[%s219 + $0x538] sm:$0xff] %v554
                %v556 = vld [vmem:[%s218 + $0xa80] sm:$0xff]
                %557 = vst [vmem:[%s219 + $0x540] sm:$0xff] %v556
                %v558 = vld [vmem:[%s218 + $0xa88] sm:$0xff]
                %559 = vst [vmem:[%s219 + $0x548] sm:$0xff] %v558
                %v560 = vld [vmem:[%s218 + $0xa90] sm:$0xff]
                %561 = vst [vmem:[%s219 + $0x550] sm:$0xff] %v560
                %v562 = vld [vmem:[%s218 + $0xa98] sm:$0xff]
                %563 = vst [vmem:[%s219 + $0x558] sm:$0xff] %v562
                %v564 = vld [vmem:[%s218 + $0xaa0] sm:$0xff]
                %565 = vst [vmem:[%s219 + $0x560] sm:$0xff] %v564
                %v566 = vld [vmem:[%s218 + $0xaa8] sm:$0xff]
                %567 = vst [vmem:[%s219 + $0x568] sm:$0xff] %v566
                %v568 = vld [vmem:[%s218 + $0xab0] sm:$0xff]
                %569 = vst [vmem:[%s219 + $0x570] sm:$0xff] %v568
                %v570 = vld [vmem:[%s218 + $0xab8] sm:$0xff]
                %571 = vst [vmem:[%s219 + $0x578] sm:$0xff] %v570
                %v572 = vld [vmem:[%s218 + $0xb00] sm:$0xff]
                %573 = vst [vmem:[%s219 + $0x580] sm:$0xff] %v572
                %v574 = vld [vmem:[%s218 + $0xb08] sm:$0xff]
                %575 = vst [vmem:[%s219 + $0x588] sm:$0xff] %v574
                %v576 = vld [vmem:[%s218 + $0xb10] sm:$0xff]
                %577 = vst [vmem:[%s219 + $0x590] sm:$0xff] %v576
                %v578 = vld [vmem:[%s218 + $0xb18] sm:$0xff]
                %579 = vst [vmem:[%s219 + $0x598] sm:$0xff] %v578
                %v580 = vld [vmem:[%s218 + $0xb20] sm:$0xff]
                %581 = vst [vmem:[%s219 + $0x5a0] sm:$0xff] %v580
                %v582 = vld [vmem:[%s218 + $0xb28] sm:$0xff]
                %583 = vst [vmem:[%s219 + $0x5a8] sm:$0xff] %v582
                %v584 = vld [vmem:[%s218 + $0xb30] sm:$0xff]
                %585 = vst [vmem:[%s219 + $0x5b0] sm:$0xff] %v584
                %v586 = vld [vmem:[%s218 + $0xb38] sm:$0xff]
                %587 = vst [vmem:[%s219 + $0x5b8] sm:$0xff] %v586
                %v588 = vld [vmem:[%s218 + $0xb80] sm:$0xff]
                %589 = vst [vmem:[%s219 + $0x5c0] sm:$0xff] %v588
                %v590 = vld [vmem:[%s218 + $0xb88] sm:$0xff]
                %591 = vst [vmem:[%s219 + $0x5c8] sm:$0xff] %v590
                %v592 = vld [vmem:[%s218 + $0xb90] sm:$0xff]
                %593 = vst [vmem:[%s219 + $0x5d0] sm:$0xff] %v592
                %v594 = vld [vmem:[%s218 + $0xb98] sm:$0xff]
                %595 = vst [vmem:[%s219 + $0x5d8] sm:$0xff] %v594
                %v596 = vld [vmem:[%s218 + $0xba0] sm:$0xff]
                %597 = vst [vmem:[%s219 + $0x5e0] sm:$0xff] %v596
                %v598 = vld [vmem:[%s218 + $0xba8] sm:$0xff]
                %599 = vst [vmem:[%s219 + $0x5e8] sm:$0xff] %v598
                %v600 = vld [vmem:[%s218 + $0xbb0] sm:$0xff]
                %601 = vst [vmem:[%s219 + $0x5f0] sm:$0xff] %v600
                %v602 = vld [vmem:[%s218 + $0xbb8] sm:$0xff]
                %603 = vst [vmem:[%s219 + $0x5f8] sm:$0xff] %v602
                %v604 = vld [vmem:[%s218 + $0xc00] sm:$0xff]
                %605 = vst [vmem:[%s219 + $0x600] sm:$0xff] %v604
                %v606 = vld [vmem:[%s218 + $0xc08] sm:$0xff]
                %607 = vst [vmem:[%s219 + $0x608] sm:$0xff] %v606
                %v608 = vld [vmem:[%s218 + $0xc10] sm:$0xff]
                %609 = vst [vmem:[%s219 + $0x610] sm:$0xff] %v608
                %v610 = vld [vmem:[%s218 + $0xc18] sm:$0xff]
                %611 = vst [vmem:[%s219 + $0x618] sm:$0xff] %v610
                %v612 = vld [vmem:[%s218 + $0xc20] sm:$0xff]
                %613 = vst [vmem:[%s219 + $0x620] sm:$0xff] %v612
                %v614 = vld [vmem:[%s218 + $0xc28] sm:$0xff]
                %615 = vst [vmem:[%s219 + $0x628] sm:$0xff] %v614
                %v616 = vld [vmem:[%s218 + $0xc30] sm:$0xff]
                %617 = vst [vmem:[%s219 + $0x630] sm:$0xff] %v616
                %v618 = vld [vmem:[%s218 + $0xc38] sm:$0xff]
                %619 = vst [vmem:[%s219 + $0x638] sm:$0xff] %v618
                %v620 = vld [vmem:[%s218 + $0xc80] sm:$0xff]
                %621 = vst [vmem:[%s219 + $0x640] sm:$0xff] %v620
                %v622 = vld [vmem:[%s218 + $0xc88] sm:$0xff]
                %623 = vst [vmem:[%s219 + $0x648] sm:$0xff] %v622
                %v624 = vld [vmem:[%s218 + $0xc90] sm:$0xff]
                %625 = vst [vmem:[%s219 + $0x650] sm:$0xff] %v624
                %v626 = vld [vmem:[%s218 + $0xc98] sm:$0xff]
                %627 = vst [vmem:[%s219 + $0x658] sm:$0xff] %v626
                %v628 = vld [vmem:[%s218 + $0xca0] sm:$0xff]
                %629 = vst [vmem:[%s219 + $0x660] sm:$0xff] %v628
                %v630 = vld [vmem:[%s218 + $0xca8] sm:$0xff]
                %631 = vst [vmem:[%s219 + $0x668] sm:$0xff] %v630
                %v632 = vld [vmem:[%s218 + $0xcb0] sm:$0xff]
                %633 = vst [vmem:[%s219 + $0x670] sm:$0xff] %v632
                %v634 = vld [vmem:[%s218 + $0xcb8] sm:$0xff]
                %635 = vst [vmem:[%s219 + $0x678] sm:$0xff] %v634
                %v636 = vld [vmem:[%s218 + $0xd00] sm:$0xff]
                %637 = vst [vmem:[%s219 + $0x680] sm:$0xff] %v636
                %v638 = vld [vmem:[%s218 + $0xd08] sm:$0xff]
                %639 = vst [vmem:[%s219 + $0x688] sm:$0xff] %v638
                %v640 = vld [vmem:[%s218 + $0xd10] sm:$0xff]
                %641 = vst [vmem:[%s219 + $0x690] sm:$0xff] %v640
                %v642 = vld [vmem:[%s218 + $0xd18] sm:$0xff]
                %643 = vst [vmem:[%s219 + $0x698] sm:$0xff] %v642
                %v644 = vld [vmem:[%s218 + $0xd20] sm:$0xff]
                %645 = vst [vmem:[%s219 + $0x6a0] sm:$0xff] %v644
                %v646 = vld [vmem:[%s218 + $0xd28] sm:$0xff]
                %647 = vst [vmem:[%s219 + $0x6a8] sm:$0xff] %v646
                %v648 = vld [vmem:[%s218 + $0xd30] sm:$0xff]
                %649 = vst [vmem:[%s219 + $0x6b0] sm:$0xff] %v648
                %v650 = vld [vmem:[%s218 + $0xd38] sm:$0xff]
                %651 = vst [vmem:[%s219 + $0x6b8] sm:$0xff] %v650
                %v652 = vld [vmem:[%s218 + $0xd80] sm:$0xff]
                %653 = vst [vmem:[%s219 + $0x6c0] sm:$0xff] %v652
                %v654 = vld [vmem:[%s218 + $0xd88] sm:$0xff]
                %655 = vst [vmem:[%s219 + $0x6c8] sm:$0xff] %v654
                %v656 = vld [vmem:[%s218 + $0xd90] sm:$0xff]
                %657 = vst [vmem:[%s219 + $0x6d0] sm:$0xff] %v656
                %v658 = vld [vmem:[%s218 + $0xd98] sm:$0xff]
                %659 = vst [vmem:[%s219 + $0x6d8] sm:$0xff] %v658
                %v660 = vld [vmem:[%s218 + $0xda0] sm:$0xff]
                %661 = vst [vmem:[%s219 + $0x6e0] sm:$0xff] %v660
                %v662 = vld [vmem:[%s218 + $0xda8] sm:$0xff]
                %663 = vst [vmem:[%s219 + $0x6e8] sm:$0xff] %v662
                %v664 = vld [vmem:[%s218 + $0xdb0] sm:$0xff]
                %665 = vst [vmem:[%s219 + $0x6f0] sm:$0xff] %v664
                %v666 = vld [vmem:[%s218 + $0xdb8] sm:$0xff]
                %667 = vst [vmem:[%s219 + $0x6f8] sm:$0xff] %v666
                %v668 = vld [vmem:[%s218 + $0xe00] sm:$0xff]
                %669 = vst [vmem:[%s219 + $0x700] sm:$0xff] %v668
                %v670 = vld [vmem:[%s218 + $0xe08] sm:$0xff]
                %671 = vst [vmem:[%s219 + $0x708] sm:$0xff] %v670
                %v672 = vld [vmem:[%s218 + $0xe10] sm:$0xff]
                %673 = vst [vmem:[%s219 + $0x710] sm:$0xff] %v672
                %v674 = vld [vmem:[%s218 + $0xe18] sm:$0xff]
                %675 = vst [vmem:[%s219 + $0x718] sm:$0xff] %v674
                %v676 = vld [vmem:[%s218 + $0xe20] sm:$0xff]
                %677 = vst [vmem:[%s219 + $0x720] sm:$0xff] %v676
                %v678 = vld [vmem:[%s218 + $0xe28] sm:$0xff]
                %679 = vst [vmem:[%s219 + $0x728] sm:$0xff] %v678
                %v680 = vld [vmem:[%s218 + $0xe30] sm:$0xff]
                %681 = vst [vmem:[%s219 + $0x730] sm:$0xff] %v680
                %v682 = vld [vmem:[%s218 + $0xe38] sm:$0xff]
                %683 = vst [vmem:[%s219 + $0x738] sm:$0xff] %v682
                %v684 = vld [vmem:[%s218 + $0xe80] sm:$0xff]
                %685 = vst [vmem:[%s219 + $0x740] sm:$0xff] %v684
                %v686 = vld [vmem:[%s218 + $0xe88] sm:$0xff]
                %687 = vst [vmem:[%s219 + $0x748] sm:$0xff] %v686
                %v688 = vld [vmem:[%s218 + $0xe90] sm:$0xff]
                %689 = vst [vmem:[%s219 + $0x750] sm:$0xff] %v688
                %v690 = vld [vmem:[%s218 + $0xe98] sm:$0xff]
                %691 = vst [vmem:[%s219 + $0x758] sm:$0xff] %v690
                %v692 = vld [vmem:[%s218 + $0xea0] sm:$0xff]
                %693 = vst [vmem:[%s219 + $0x760] sm:$0xff] %v692
                %v694 = vld [vmem:[%s218 + $0xea8] sm:$0xff]
                %695 = vst [vmem:[%s219 + $0x768] sm:$0xff] %v694
                %v696 = vld [vmem:[%s218 + $0xeb0] sm:$0xff]
                %697 = vst [vmem:[%s219 + $0x770] sm:$0xff] %v696
                %v698 = vld [vmem:[%s218 + $0xeb8] sm:$0xff]
                %699 = vst [vmem:[%s219 + $0x778] sm:$0xff] %v698
                %v700 = vld [vmem:[%s218 + $0xf00] sm:$0xff]
                %701 = vst [vmem:[%s219 + $0x780] sm:$0xff] %v700
                %v702 = vld [vmem:[%s218 + $0xf08] sm:$0xff]
                %703 = vst [vmem:[%s219 + $0x788] sm:$0xff] %v702
                %v704 = vld [vmem:[%s218 + $0xf10] sm:$0xff]
                %705 = vst [vmem:[%s219 + $0x790] sm:$0xff] %v704
                %v706 = vld [vmem:[%s218 + $0xf18] sm:$0xff]
                %707 = vst [vmem:[%s219 + $0x798] sm:$0xff] %v706
                %v708 = vld [vmem:[%s218 + $0xf20] sm:$0xff]
                %709 = vst [vmem:[%s219 + $0x7a0] sm:$0xff] %v708
                %v710 = vld [vmem:[%s218 + $0xf28] sm:$0xff]
                %711 = vst [vmem:[%s219 + $0x7a8] sm:$0xff] %v710
                %v712 = vld [vmem:[%s218 + $0xf30] sm:$0xff]
                %713 = vst [vmem:[%s219 + $0x7b0] sm:$0xff] %v712
                %v714 = vld [vmem:[%s218 + $0xf38] sm:$0xff]
                %715 = vst [vmem:[%s219 + $0x7b8] sm:$0xff] %v714
                %v716 = vld [vmem:[%s218 + $0xf80] sm:$0xff]
                %717 = vst [vmem:[%s219 + $0x7c0] sm:$0xff] %v716
                %v718 = vld [vmem:[%s218 + $0xf88] sm:$0xff]
                %719 = vst [vmem:[%s219 + $0x7c8] sm:$0xff] %v718
                %v720 = vld [vmem:[%s218 + $0xf90] sm:$0xff]
                %721 = vst [vmem:[%s219 + $0x7d0] sm:$0xff] %v720
                %v722 = vld [vmem:[%s218 + $0xf98] sm:$0xff]
                %723 = vst [vmem:[%s219 + $0x7d8] sm:$0xff] %v722
                %v724 = vld [vmem:[%s218 + $0xfa0] sm:$0xff]
                %725 = vst [vmem:[%s219 + $0x7e0] sm:$0xff] %v724
                %v726 = vld [vmem:[%s218 + $0xfa8] sm:$0xff]
                %727 = vst [vmem:[%s219 + $0x7e8] sm:$0xff] %v726
                %v728 = vld [vmem:[%s218 + $0xfb0] sm:$0xff]
                %729 = vst [vmem:[%s219 + $0x7f0] sm:$0xff] %v728
                %v730 = vld [vmem:[%s218 + $0xfb8] sm:$0xff]
                %731 = vst [vmem:[%s219 + $0x7f8] sm:$0xff] %v730
                %v732 = vld [vmem:[%s218 + $0x1000] sm:$0xff]
                %733 = vst [vmem:[%s219 + $0x800] sm:$0xff] %v732
                %v734 = vld [vmem:[%s218 + $0x1008] sm:$0xff]
                %735 = vst [vmem:[%s219 + $0x808] sm:$0xff] %v734
                %v736 = vld [vmem:[%s218 + $0x1010] sm:$0xff]
                %737 = vst [vmem:[%s219 + $0x810] sm:$0xff] %v736
                %v738 = vld [vmem:[%s218 + $0x1018] sm:$0xff]
                %739 = vst [vmem:[%s219 + $0x818] sm:$0xff] %v738
                %v740 = vld [vmem:[%s218 + $0x1020] sm:$0xff]
                %741 = vst [vmem:[%s219 + $0x820] sm:$0xff] %v740
                %v742 = vld [vmem:[%s218 + $0x1028] sm:$0xff]
                %743 = vst [vmem:[%s219 + $0x828] sm:$0xff] %v742
                %v744 = vld [vmem:[%s218 + $0x1030] sm:$0xff]
                %745 = vst [vmem:[%s219 + $0x830] sm:$0xff] %v744
                %v746 = vld [vmem:[%s218 + $0x1038] sm:$0xff]
                %747 = vst [vmem:[%s219 + $0x838] sm:$0xff] %v746
                %v748 = vld [vmem:[%s218 + $0x1080] sm:$0xff]
                %749 = vst [vmem:[%s219 + $0x840] sm:$0xff] %v748
                %v750 = vld [vmem:[%s218 + $0x1088] sm:$0xff]
                %751 = vst [vmem:[%s219 + $0x848] sm:$0xff] %v750
                %v752 = vld [vmem:[%s218 + $0x1090] sm:$0xff]
                %753 = vst [vmem:[%s219 + $0x850] sm:$0xff] %v752
                %v754 = vld [vmem:[%s218 + $0x1098] sm:$0xff]
                %755 = vst [vmem:[%s219 + $0x858] sm:$0xff] %v754
                %v756 = vld [vmem:[%s218 + $0x10a0] sm:$0xff]
                %757 = vst [vmem:[%s219 + $0x860] sm:$0xff] %v756
                %v758 = vld [vmem:[%s218 + $0x10a8] sm:$0xff]
                %759 = vst [vmem:[%s219 + $0x868] sm:$0xff] %v758
                %v760 = vld [vmem:[%s218 + $0x10b0] sm:$0xff]
                %761 = vst [vmem:[%s219 + $0x870] sm:$0xff] %v760
                %v762 = vld [vmem:[%s218 + $0x10b8] sm:$0xff]
                %763 = vst [vmem:[%s219 + $0x878] sm:$0xff] %v762
                %v764 = vld [vmem:[%s218 + $0x1100] sm:$0xff]
                %765 = vst [vmem:[%s219 + $0x880] sm:$0xff] %v764
                %v766 = vld [vmem:[%s218 + $0x1108] sm:$0xff]
                %767 = vst [vmem:[%s219 + $0x888] sm:$0xff] %v766
                %v768 = vld [vmem:[%s218 + $0x1110] sm:$0xff]
                %769 = vst [vmem:[%s219 + $0x890] sm:$0xff] %v768
                %v770 = vld [vmem:[%s218 + $0x1118] sm:$0xff]
                %771 = vst [vmem:[%s219 + $0x898] sm:$0xff] %v770
                %v772 = vld [vmem:[%s218 + $0x1120] sm:$0xff]
                %773 = vst [vmem:[%s219 + $0x8a0] sm:$0xff] %v772
                %v774 = vld [vmem:[%s218 + $0x1128] sm:$0xff]
                %775 = vst [vmem:[%s219 + $0x8a8] sm:$0xff] %v774
                %v776 = vld [vmem:[%s218 + $0x1130] sm:$0xff]
                %777 = vst [vmem:[%s219 + $0x8b0] sm:$0xff] %v776
                %v778 = vld [vmem:[%s218 + $0x1138] sm:$0xff]
                %779 = vst [vmem:[%s219 + $0x8b8] sm:$0xff] %v778
                %v780 = vld [vmem:[%s218 + $0x1180] sm:$0xff]
                %781 = vst [vmem:[%s219 + $0x8c0] sm:$0xff] %v780
                %v782 = vld [vmem:[%s218 + $0x1188] sm:$0xff]
                %783 = vst [vmem:[%s219 + $0x8c8] sm:$0xff] %v782
                %v784 = vld [vmem:[%s218 + $0x1190] sm:$0xff]
                %785 = vst [vmem:[%s219 + $0x8d0] sm:$0xff] %v784
                %v786 = vld [vmem:[%s218 + $0x1198] sm:$0xff]
                %787 = vst [vmem:[%s219 + $0x8d8] sm:$0xff] %v786
                %v788 = vld [vmem:[%s218 + $0x11a0] sm:$0xff]
                %789 = vst [vmem:[%s219 + $0x8e0] sm:$0xff] %v788
                %v790 = vld [vmem:[%s218 + $0x11a8] sm:$0xff]
                %791 = vst [vmem:[%s219 + $0x8e8] sm:$0xff] %v790
                %v792 = vld [vmem:[%s218 + $0x11b0] sm:$0xff]
                %793 = vst [vmem:[%s219 + $0x8f0] sm:$0xff] %v792
                %v794 = vld [vmem:[%s218 + $0x11b8] sm:$0xff]
                %795 = vst [vmem:[%s219 + $0x8f8] sm:$0xff] %v794
                %v796 = vld [vmem:[%s218 + $0x1200] sm:$0xff]
                %797 = vst [vmem:[%s219 + $0x900] sm:$0xff] %v796
                %v798 = vld [vmem:[%s218 + $0x1208] sm:$0xff]
                %799 = vst [vmem:[%s219 + $0x908] sm:$0xff] %v798
                %v800 = vld [vmem:[%s218 + $0x1210] sm:$0xff]
                %801 = vst [vmem:[%s219 + $0x910] sm:$0xff] %v800
                %v802 = vld [vmem:[%s218 + $0x1218] sm:$0xff]
                %803 = vst [vmem:[%s219 + $0x918] sm:$0xff] %v802
                %v804 = vld [vmem:[%s218 + $0x1220] sm:$0xff]
                %805 = vst [vmem:[%s219 + $0x920] sm:$0xff] %v804
                %v806 = vld [vmem:[%s218 + $0x1228] sm:$0xff]
                %807 = vst [vmem:[%s219 + $0x928] sm:$0xff] %v806
                %v808 = vld [vmem:[%s218 + $0x1230] sm:$0xff]
                %809 = vst [vmem:[%s219 + $0x930] sm:$0xff] %v808
                %v810 = vld [vmem:[%s218 + $0x1238] sm:$0xff]
                %811 = vst [vmem:[%s219 + $0x938] sm:$0xff] %v810
                %v812 = vld [vmem:[%s218 + $0x1280] sm:$0xff]
                %813 = vst [vmem:[%s219 + $0x940] sm:$0xff] %v812
                %v814 = vld [vmem:[%s218 + $0x1288] sm:$0xff]
                %815 = vst [vmem:[%s219 + $0x948] sm:$0xff] %v814
                %v816 = vld [vmem:[%s218 + $0x1290] sm:$0xff]
                %817 = vst [vmem:[%s219 + $0x950] sm:$0xff] %v816
                %v818 = vld [vmem:[%s218 + $0x1298] sm:$0xff]
                %819 = vst [vmem:[%s219 + $0x958] sm:$0xff] %v818
                %v820 = vld [vmem:[%s218 + $0x12a0] sm:$0xff]
                %821 = vst [vmem:[%s219 + $0x960] sm:$0xff] %v820
                %v822 = vld [vmem:[%s218 + $0x12a8] sm:$0xff]
                %823 = vst [vmem:[%s219 + $0x968] sm:$0xff] %v822
                %v824 = vld [vmem:[%s218 + $0x12b0] sm:$0xff]
                %825 = vst [vmem:[%s219 + $0x970] sm:$0xff] %v824
                %v826 = vld [vmem:[%s218 + $0x12b8] sm:$0xff]
                %827 = vst [vmem:[%s219 + $0x978] sm:$0xff] %v826
                %v828 = vld [vmem:[%s218 + $0x1300] sm:$0xff]
                %829 = vst [vmem:[%s219 + $0x980] sm:$0xff] %v828
                %v830 = vld [vmem:[%s218 + $0x1308] sm:$0xff]
                %831 = vst [vmem:[%s219 + $0x988] sm:$0xff] %v830
                %v832 = vld [vmem:[%s218 + $0x1310] sm:$0xff]
                %833 = vst [vmem:[%s219 + $0x990] sm:$0xff] %v832
                %v834 = vld [vmem:[%s218 + $0x1318] sm:$0xff]
                %835 = vst [vmem:[%s219 + $0x998] sm:$0xff] %v834
                %v836 = vld [vmem:[%s218 + $0x1320] sm:$0xff]
                %837 = vst [vmem:[%s219 + $0x9a0] sm:$0xff] %v836
                %v838 = vld [vmem:[%s218 + $0x1328] sm:$0xff]
                %839 = vst [vmem:[%s219 + $0x9a8] sm:$0xff] %v838
                %v840 = vld [vmem:[%s218 + $0x1330] sm:$0xff]
                %841 = vst [vmem:[%s219 + $0x9b0] sm:$0xff] %v840
                %v842 = vld [vmem:[%s218 + $0x1338] sm:$0xff]
                %843 = vst [vmem:[%s219 + $0x9b8] sm:$0xff] %v842
                %v844 = vld [vmem:[%s218 + $0x1380] sm:$0xff]
                %845 = vst [vmem:[%s219 + $0x9c0] sm:$0xff] %v844
                %v846 = vld [vmem:[%s218 + $0x1388] sm:$0xff]
                %847 = vst [vmem:[%s219 + $0x9c8] sm:$0xff] %v846
                %v848 = vld [vmem:[%s218 + $0x1390] sm:$0xff]
                %849 = vst [vmem:[%s219 + $0x9d0] sm:$0xff] %v848
                %v850 = vld [vmem:[%s218 + $0x1398] sm:$0xff]
                %851 = vst [vmem:[%s219 + $0x9d8] sm:$0xff] %v850
                %v852 = vld [vmem:[%s218 + $0x13a0] sm:$0xff]
                %853 = vst [vmem:[%s219 + $0x9e0] sm:$0xff] %v852
                %v854 = vld [vmem:[%s218 + $0x13a8] sm:$0xff]
                %855 = vst [vmem:[%s219 + $0x9e8] sm:$0xff] %v854
                %v856 = vld [vmem:[%s218 + $0x13b0] sm:$0xff]
                %857 = vst [vmem:[%s219 + $0x9f0] sm:$0xff] %v856
                %v858 = vld [vmem:[%s218 + $0x13b8] sm:$0xff]
                %859 = vst [vmem:[%s219 + $0x9f8] sm:$0xff] %v858
                %v860 = vld [vmem:[%s218 + $0x1400] sm:$0xff]
                %861 = vst [vmem:[%s219 + $0xa00] sm:$0xff] %v860
                %v862 = vld [vmem:[%s218 + $0x1408] sm:$0xff]
                %863 = vst [vmem:[%s219 + $0xa08] sm:$0xff] %v862
                %v864 = vld [vmem:[%s218 + $0x1410] sm:$0xff]
                %865 = vst [vmem:[%s219 + $0xa10] sm:$0xff] %v864
                %v866 = vld [vmem:[%s218 + $0x1418] sm:$0xff]
                %867 = vst [vmem:[%s219 + $0xa18] sm:$0xff] %v866
                %v868 = vld [vmem:[%s218 + $0x1420] sm:$0xff]
                %869 = vst [vmem:[%s219 + $0xa20] sm:$0xff] %v868
                %v870 = vld [vmem:[%s218 + $0x1428] sm:$0xff]
                %871 = vst [vmem:[%s219 + $0xa28] sm:$0xff] %v870
                %v872 = vld [vmem:[%s218 + $0x1430] sm:$0xff]
                %873 = vst [vmem:[%s219 + $0xa30] sm:$0xff] %v872
                %v874 = vld [vmem:[%s218 + $0x1438] sm:$0xff]
                %875 = vst [vmem:[%s219 + $0xa38] sm:$0xff] %v874
                %v876 = vld [vmem:[%s218 + $0x1480] sm:$0xff]
                %877 = vst [vmem:[%s219 + $0xa40] sm:$0xff] %v876
                %v878 = vld [vmem:[%s218 + $0x1488] sm:$0xff]
                %879 = vst [vmem:[%s219 + $0xa48] sm:$0xff] %v878
                %v880 = vld [vmem:[%s218 + $0x1490] sm:$0xff]
                %881 = vst [vmem:[%s219 + $0xa50] sm:$0xff] %v880
                %v882 = vld [vmem:[%s218 + $0x1498] sm:$0xff]
                %883 = vst [vmem:[%s219 + $0xa58] sm:$0xff] %v882
                %v884 = vld [vmem:[%s218 + $0x14a0] sm:$0xff]
                %885 = vst [vmem:[%s219 + $0xa60] sm:$0xff] %v884
                %v886 = vld [vmem:[%s218 + $0x14a8] sm:$0xff]
                %887 = vst [vmem:[%s219 + $0xa68] sm:$0xff] %v886
                %v888 = vld [vmem:[%s218 + $0x14b0] sm:$0xff]
                %889 = vst [vmem:[%s219 + $0xa70] sm:$0xff] %v888
                %v890 = vld [vmem:[%s218 + $0x14b8] sm:$0xff]
                %891 = vst [vmem:[%s219 + $0xa78] sm:$0xff] %v890
                %v892 = vld [vmem:[%s218 + $0x1500] sm:$0xff]
                %893 = vst [vmem:[%s219 + $0xa80] sm:$0xff] %v892
                %v894 = vld [vmem:[%s218 + $0x1508] sm:$0xff]
                %895 = vst [vmem:[%s219 + $0xa88] sm:$0xff] %v894
                %v896 = vld [vmem:[%s218 + $0x1510] sm:$0xff]
                %897 = vst [vmem:[%s219 + $0xa90] sm:$0xff] %v896
                %v898 = vld [vmem:[%s218 + $0x1518] sm:$0xff]
                %899 = vst [vmem:[%s219 + $0xa98] sm:$0xff] %v898
                %v900 = vld [vmem:[%s218 + $0x1520] sm:$0xff]
                %901 = vst [vmem:[%s219 + $0xaa0] sm:$0xff] %v900
                %v902 = vld [vmem:[%s218 + $0x1528] sm:$0xff]
                %903 = vst [vmem:[%s219 + $0xaa8] sm:$0xff] %v902
                %v904 = vld [vmem:[%s218 + $0x1530] sm:$0xff]
                %905 = vst [vmem:[%s219 + $0xab0] sm:$0xff] %v904
                %v906 = vld [vmem:[%s218 + $0x1538] sm:$0xff]
                %907 = vst [vmem:[%s219 + $0xab8] sm:$0xff] %v906
                %v908 = vld [vmem:[%s218 + $0x1580] sm:$0xff]
                %909 = vst [vmem:[%s219 + $0xac0] sm:$0xff] %v908
                %v910 = vld [vmem:[%s218 + $0x1588] sm:$0xff]
                %911 = vst [vmem:[%s219 + $0xac8] sm:$0xff] %v910
                %v912 = vld [vmem:[%s218 + $0x1590] sm:$0xff]
                %913 = vst [vmem:[%s219 + $0xad0] sm:$0xff] %v912
                %v914 = vld [vmem:[%s218 + $0x1598] sm:$0xff]
                %915 = vst [vmem:[%s219 + $0xad8] sm:$0xff] %v914
                %v916 = vld [vmem:[%s218 + $0x15a0] sm:$0xff]
                %917 = vst [vmem:[%s219 + $0xae0] sm:$0xff] %v916
                %v918 = vld [vmem:[%s218 + $0x15a8] sm:$0xff]
                %919 = vst [vmem:[%s219 + $0xae8] sm:$0xff] %v918
                %v920 = vld [vmem:[%s218 + $0x15b0] sm:$0xff]
                %921 = vst [vmem:[%s219 + $0xaf0] sm:$0xff] %v920
                %v922 = vld [vmem:[%s218 + $0x15b8] sm:$0xff]
                %923 = vst [vmem:[%s219 + $0xaf8] sm:$0xff] %v922
                %v924 = vld [vmem:[%s218 + $0x1600] sm:$0xff]
                %925 = vst [vmem:[%s219 + $0xb00] sm:$0xff] %v924
                %v926 = vld [vmem:[%s218 + $0x1608] sm:$0xff]
                %927 = vst [vmem:[%s219 + $0xb08] sm:$0xff] %v926
                %v928 = vld [vmem:[%s218 + $0x1610] sm:$0xff]
                %929 = vst [vmem:[%s219 + $0xb10] sm:$0xff] %v928
                %v930 = vld [vmem:[%s218 + $0x1618] sm:$0xff]
                %931 = vst [vmem:[%s219 + $0xb18] sm:$0xff] %v930
                %v932 = vld [vmem:[%s218 + $0x1620] sm:$0xff]
                %933 = vst [vmem:[%s219 + $0xb20] sm:$0xff] %v932
                %v934 = vld [vmem:[%s218 + $0x1628] sm:$0xff]
                %935 = vst [vmem:[%s219 + $0xb28] sm:$0xff] %v934
                %v936 = vld [vmem:[%s218 + $0x1630] sm:$0xff]
                %937 = vst [vmem:[%s219 + $0xb30] sm:$0xff] %v936
                %v938 = vld [vmem:[%s218 + $0x1638] sm:$0xff]
                %939 = vst [vmem:[%s219 + $0xb38] sm:$0xff] %v938
                %v940 = vld [vmem:[%s218 + $0x1680] sm:$0xff]
                %941 = vst [vmem:[%s219 + $0xb40] sm:$0xff] %v940
                %v942 = vld [vmem:[%s218 + $0x1688] sm:$0xff]
                %943 = vst [vmem:[%s219 + $0xb48] sm:$0xff] %v942
                %v944 = vld [vmem:[%s218 + $0x1690] sm:$0xff]
                %945 = vst [vmem:[%s219 + $0xb50] sm:$0xff] %v944
                %v946 = vld [vmem:[%s218 + $0x1698] sm:$0xff]
                %947 = vst [vmem:[%s219 + $0xb58] sm:$0xff] %v946
                %v948 = vld [vmem:[%s218 + $0x16a0] sm:$0xff]
                %949 = vst [vmem:[%s219 + $0xb60] sm:$0xff] %v948
                %v950 = vld [vmem:[%s218 + $0x16a8] sm:$0xff]
                %951 = vst [vmem:[%s219 + $0xb68] sm:$0xff] %v950
                %v952 = vld [vmem:[%s218 + $0x16b0] sm:$0xff]
                %953 = vst [vmem:[%s219 + $0xb70] sm:$0xff] %v952
                %v954 = vld [vmem:[%s218 + $0x16b8] sm:$0xff]
                %955 = vst [vmem:[%s219 + $0xb78] sm:$0xff] %v954
                %v956 = vld [vmem:[%s218 + $0x1700] sm:$0xff]
                %957 = vst [vmem:[%s219 + $0xb80] sm:$0xff] %v956
                %v958 = vld [vmem:[%s218 + $0x1708] sm:$0xff]
                %959 = vst [vmem:[%s219 + $0xb88] sm:$0xff] %v958
                %v960 = vld [vmem:[%s218 + $0x1710] sm:$0xff]
                %961 = vst [vmem:[%s219 + $0xb90] sm:$0xff] %v960
                %v962 = vld [vmem:[%s218 + $0x1718] sm:$0xff]
                %963 = vst [vmem:[%s219 + $0xb98] sm:$0xff] %v962
                %v964 = vld [vmem:[%s218 + $0x1720] sm:$0xff]
                %965 = vst [vmem:[%s219 + $0xba0] sm:$0xff] %v964
                %v966 = vld [vmem:[%s218 + $0x1728] sm:$0xff]
                %967 = vst [vmem:[%s219 + $0xba8] sm:$0xff] %v966
                %v968 = vld [vmem:[%s218 + $0x1730] sm:$0xff]
                %969 = vst [vmem:[%s219 + $0xbb0] sm:$0xff] %v968
                %v970 = vld [vmem:[%s218 + $0x1738] sm:$0xff]
                %971 = vst [vmem:[%s219 + $0xbb8] sm:$0xff] %v970
                %v972 = vld [vmem:[%s218 + $0x1780] sm:$0xff]
                %973 = vst [vmem:[%s219 + $0xbc0] sm:$0xff] %v972
                %v974 = vld [vmem:[%s218 + $0x1788] sm:$0xff]
                %975 = vst [vmem:[%s219 + $0xbc8] sm:$0xff] %v974
                %v976 = vld [vmem:[%s218 + $0x1790] sm:$0xff]
                %977 = vst [vmem:[%s219 + $0xbd0] sm:$0xff] %v976
                %v978 = vld [vmem:[%s218 + $0x1798] sm:$0xff]
                %979 = vst [vmem:[%s219 + $0xbd8] sm:$0xff] %v978
                %v980 = vld [vmem:[%s218 + $0x17a0] sm:$0xff]
                %981 = vst [vmem:[%s219 + $0xbe0] sm:$0xff] %v980
                %v982 = vld [vmem:[%s218 + $0x17a8] sm:$0xff]
                %983 = vst [vmem:[%s219 + $0xbe8] sm:$0xff] %v982
                %v984 = vld [vmem:[%s218 + $0x17b0] sm:$0xff]
                %985 = vst [vmem:[%s219 + $0xbf0] sm:$0xff] %v984
                %v986 = vld [vmem:[%s218 + $0x17b8] sm:$0xff]
                %987 = vst [vmem:[%s219 + $0xbf8] sm:$0xff] %v986
                %v988 = vld [vmem:[%s218 + $0x1800] sm:$0xff]
                %989 = vst [vmem:[%s219 + $0xc00] sm:$0xff] %v988
                %v990 = vld [vmem:[%s218 + $0x1808] sm:$0xff]
                %991 = vst [vmem:[%s219 + $0xc08] sm:$0xff] %v990
                %v992 = vld [vmem:[%s218 + $0x1810] sm:$0xff]
                %993 = vst [vmem:[%s219 + $0xc10] sm:$0xff] %v992
                %v994 = vld [vmem:[%s218 + $0x1818] sm:$0xff]
                %995 = vst [vmem:[%s219 + $0xc18] sm:$0xff] %v994
                %v996 = vld [vmem:[%s218 + $0x1820] sm:$0xff]
                %997 = vst [vmem:[%s219 + $0xc20] sm:$0xff] %v996
                %v998 = vld [vmem:[%s218 + $0x1828] sm:$0xff]
                %999 = vst [vmem:[%s219 + $0xc28] sm:$0xff] %v998
                %v1000 = vld [vmem:[%s218 + $0x1830] sm:$0xff]
                %1001 = vst [vmem:[%s219 + $0xc30] sm:$0xff] %v1000
                %v1002 = vld [vmem:[%s218 + $0x1838] sm:$0xff]
                %1003 = vst [vmem:[%s219 + $0xc38] sm:$0xff] %v1002
                %v1004 = vld [vmem:[%s218 + $0x1880] sm:$0xff]
                %1005 = vst [vmem:[%s219 + $0xc40] sm:$0xff] %v1004
                %v1006 = vld [vmem:[%s218 + $0x1888] sm:$0xff]
                %1007 = vst [vmem:[%s219 + $0xc48] sm:$0xff] %v1006
                %v1008 = vld [vmem:[%s218 + $0x1890] sm:$0xff]
                %1009 = vst [vmem:[%s219 + $0xc50] sm:$0xff] %v1008
                %v1010 = vld [vmem:[%s218 + $0x1898] sm:$0xff]
                %1011 = vst [vmem:[%s219 + $0xc58] sm:$0xff] %v1010
                %v1012 = vld [vmem:[%s218 + $0x18a0] sm:$0xff]
                %1013 = vst [vmem:[%s219 + $0xc60] sm:$0xff] %v1012
                %v1014 = vld [vmem:[%s218 + $0x18a8] sm:$0xff]
                %1015 = vst [vmem:[%s219 + $0xc68] sm:$0xff] %v1014
                %v1016 = vld [vmem:[%s218 + $0x18b0] sm:$0xff]
                %1017 = vst [vmem:[%s219 + $0xc70] sm:$0xff] %v1016
                %v1018 = vld [vmem:[%s218 + $0x18b8] sm:$0xff]
                %1019 = vst [vmem:[%s219 + $0xc78] sm:$0xff] %v1018
                %v1020 = vld [vmem:[%s218 + $0x1900] sm:$0xff]
                %1021 = vst [vmem:[%s219 + $0xc80] sm:$0xff] %v1020
                %v1022 = vld [vmem:[%s218 + $0x1908] sm:$0xff]
                %1023 = vst [vmem:[%s219 + $0xc88] sm:$0xff] %v1022
                %v1024 = vld [vmem:[%s218 + $0x1910] sm:$0xff]
                %1025 = vst [vmem:[%s219 + $0xc90] sm:$0xff] %v1024
                %v1026 = vld [vmem:[%s218 + $0x1918] sm:$0xff]
                %1027 = vst [vmem:[%s219 + $0xc98] sm:$0xff] %v1026
                %v1028 = vld [vmem:[%s218 + $0x1920] sm:$0xff]
                %1029 = vst [vmem:[%s219 + $0xca0] sm:$0xff] %v1028
                %v1030 = vld [vmem:[%s218 + $0x1928] sm:$0xff]
                %1031 = vst [vmem:[%s219 + $0xca8] sm:$0xff] %v1030
                %v1032 = vld [vmem:[%s218 + $0x1930] sm:$0xff]
                %1033 = vst [vmem:[%s219 + $0xcb0] sm:$0xff] %v1032
                %v1034 = vld [vmem:[%s218 + $0x1938] sm:$0xff]
                %1035 = vst [vmem:[%s219 + $0xcb8] sm:$0xff] %v1034
                %v1036 = vld [vmem:[%s218 + $0x1980] sm:$0xff]
                %1037 = vst [vmem:[%s219 + $0xcc0] sm:$0xff] %v1036
                %v1038 = vld [vmem:[%s218 + $0x1988] sm:$0xff]
                %1039 = vst [vmem:[%s219 + $0xcc8] sm:$0xff] %v1038
                %v1040 = vld [vmem:[%s218 + $0x1990] sm:$0xff]
                %1041 = vst [vmem:[%s219 + $0xcd0] sm:$0xff] %v1040
                %v1042 = vld [vmem:[%s218 + $0x1998] sm:$0xff]
                %1043 = vst [vmem:[%s219 + $0xcd8] sm:$0xff] %v1042
                %v1044 = vld [vmem:[%s218 + $0x19a0] sm:$0xff]
                %1045 = vst [vmem:[%s219 + $0xce0] sm:$0xff] %v1044
                %v1046 = vld [vmem:[%s218 + $0x19a8] sm:$0xff]
                %1047 = vst [vmem:[%s219 + $0xce8] sm:$0xff] %v1046
                %v1048 = vld [vmem:[%s218 + $0x19b0] sm:$0xff]
                %1049 = vst [vmem:[%s219 + $0xcf0] sm:$0xff] %v1048
                %v1050 = vld [vmem:[%s218 + $0x19b8] sm:$0xff]
                %1051 = vst [vmem:[%s219 + $0xcf8] sm:$0xff] %v1050
                %v1052 = vld [vmem:[%s218 + $0x1a00] sm:$0xff]
                %1053 = vst [vmem:[%s219 + $0xd00] sm:$0xff] %v1052
                %v1054 = vld [vmem:[%s218 + $0x1a08] sm:$0xff]
                %1055 = vst [vmem:[%s219 + $0xd08] sm:$0xff] %v1054
                %v1056 = vld [vmem:[%s218 + $0x1a10] sm:$0xff]
                %1057 = vst [vmem:[%s219 + $0xd10] sm:$0xff] %v1056
                %v1058 = vld [vmem:[%s218 + $0x1a18] sm:$0xff]
                %1059 = vst [vmem:[%s219 + $0xd18] sm:$0xff] %v1058
                %v1060 = vld [vmem:[%s218 + $0x1a20] sm:$0xff]
                %1061 = vst [vmem:[%s219 + $0xd20] sm:$0xff] %v1060
                %v1062 = vld [vmem:[%s218 + $0x1a28] sm:$0xff]
                %1063 = vst [vmem:[%s219 + $0xd28] sm:$0xff] %v1062
                %v1064 = vld [vmem:[%s218 + $0x1a30] sm:$0xff]
                %1065 = vst [vmem:[%s219 + $0xd30] sm:$0xff] %v1064
                %v1066 = vld [vmem:[%s218 + $0x1a38] sm:$0xff]
                %1067 = vst [vmem:[%s219 + $0xd38] sm:$0xff] %v1066
                %v1068 = vld [vmem:[%s218 + $0x1a80] sm:$0xff]
                %1069 = vst [vmem:[%s219 + $0xd40] sm:$0xff] %v1068
                %v1070 = vld [vmem:[%s218 + $0x1a88] sm:$0xff]
                %1071 = vst [vmem:[%s219 + $0xd48] sm:$0xff] %v1070
                %v1072 = vld [vmem:[%s218 + $0x1a90] sm:$0xff]
                %1073 = vst [vmem:[%s219 + $0xd50] sm:$0xff] %v1072
                %v1074 = vld [vmem:[%s218 + $0x1a98] sm:$0xff]
                %1075 = vst [vmem:[%s219 + $0xd58] sm:$0xff] %v1074
                %v1076 = vld [vmem:[%s218 + $0x1aa0] sm:$0xff]
                %1077 = vst [vmem:[%s219 + $0xd60] sm:$0xff] %v1076
                %v1078 = vld [vmem:[%s218 + $0x1aa8] sm:$0xff]
                %1079 = vst [vmem:[%s219 + $0xd68] sm:$0xff] %v1078
                %v1080 = vld [vmem:[%s218 + $0x1ab0] sm:$0xff]
                %1081 = vst [vmem:[%s219 + $0xd70] sm:$0xff] %v1080
                %v1082 = vld [vmem:[%s218 + $0x1ab8] sm:$0xff]
                %1083 = vst [vmem:[%s219 + $0xd78] sm:$0xff] %v1082
                %v1084 = vld [vmem:[%s218 + $0x1b00] sm:$0xff]
                %1085 = vst [vmem:[%s219 + $0xd80] sm:$0xff] %v1084
                %v1086 = vld [vmem:[%s218 + $0x1b08] sm:$0xff]
                %1087 = vst [vmem:[%s219 + $0xd88] sm:$0xff] %v1086
                %v1088 = vld [vmem:[%s218 + $0x1b10] sm:$0xff]
                %1089 = vst [vmem:[%s219 + $0xd90] sm:$0xff] %v1088
                %v1090 = vld [vmem:[%s218 + $0x1b18] sm:$0xff]
                %1091 = vst [vmem:[%s219 + $0xd98] sm:$0xff] %v1090
                %v1092 = vld [vmem:[%s218 + $0x1b20] sm:$0xff]
                %1093 = vst [vmem:[%s219 + $0xda0] sm:$0xff] %v1092
                %v1094 = vld [vmem:[%s218 + $0x1b28] sm:$0xff]
                %1095 = vst [vmem:[%s219 + $0xda8] sm:$0xff] %v1094
                %v1096 = vld [vmem:[%s218 + $0x1b30] sm:$0xff]
                %1097 = vst [vmem:[%s219 + $0xdb0] sm:$0xff] %v1096
                %v1098 = vld [vmem:[%s218 + $0x1b38] sm:$0xff]
                %1099 = vst [vmem:[%s219 + $0xdb8] sm:$0xff] %v1098
                %v1100 = vld [vmem:[%s218 + $0x1b80] sm:$0xff]
                %1101 = vst [vmem:[%s219 + $0xdc0] sm:$0xff] %v1100
                %v1102 = vld [vmem:[%s218 + $0x1b88] sm:$0xff]
                %1103 = vst [vmem:[%s219 + $0xdc8] sm:$0xff] %v1102
                %v1104 = vld [vmem:[%s218 + $0x1b90] sm:$0xff]
                %1105 = vst [vmem:[%s219 + $0xdd0] sm:$0xff] %v1104
                %v1106 = vld [vmem:[%s218 + $0x1b98] sm:$0xff]
                %1107 = vst [vmem:[%s219 + $0xdd8] sm:$0xff] %v1106
                %v1108 = vld [vmem:[%s218 + $0x1ba0] sm:$0xff]
                %1109 = vst [vmem:[%s219 + $0xde0] sm:$0xff] %v1108
                %v1110 = vld [vmem:[%s218 + $0x1ba8] sm:$0xff]
                %1111 = vst [vmem:[%s219 + $0xde8] sm:$0xff] %v1110
                %v1112 = vld [vmem:[%s218 + $0x1bb0] sm:$0xff]
                %1113 = vst [vmem:[%s219 + $0xdf0] sm:$0xff] %v1112
                %v1114 = vld [vmem:[%s218 + $0x1bb8] sm:$0xff]
                %1115 = vst [vmem:[%s219 + $0xdf8] sm:$0xff] %v1114
                %v1116 = vld [vmem:[%s218 + $0x1c00] sm:$0xff]
                %1117 = vst [vmem:[%s219 + $0xe00] sm:$0xff] %v1116
                %v1118 = vld [vmem:[%s218 + $0x1c08] sm:$0xff]
                %1119 = vst [vmem:[%s219 + $0xe08] sm:$0xff] %v1118
                %v1120 = vld [vmem:[%s218 + $0x1c10] sm:$0xff]
                %1121 = vst [vmem:[%s219 + $0xe10] sm:$0xff] %v1120
                %v1122 = vld [vmem:[%s218 + $0x1c18] sm:$0xff]
                %1123 = vst [vmem:[%s219 + $0xe18] sm:$0xff] %v1122
                %v1124 = vld [vmem:[%s218 + $0x1c20] sm:$0xff]
                %1125 = vst [vmem:[%s219 + $0xe20] sm:$0xff] %v1124
                %v1126 = vld [vmem:[%s218 + $0x1c28] sm:$0xff]
                %1127 = vst [vmem:[%s219 + $0xe28] sm:$0xff] %v1126
                %v1128 = vld [vmem:[%s218 + $0x1c30] sm:$0xff]
                %1129 = vst [vmem:[%s219 + $0xe30] sm:$0xff] %v1128
                %v1130 = vld [vmem:[%s218 + $0x1c38] sm:$0xff]
                %1131 = vst [vmem:[%s219 + $0xe38] sm:$0xff] %v1130
                %v1132 = vld [vmem:[%s218 + $0x1c80] sm:$0xff]
                %1133 = vst [vmem:[%s219 + $0xe40] sm:$0xff] %v1132
                %v1134 = vld [vmem:[%s218 + $0x1c88] sm:$0xff]
                %1135 = vst [vmem:[%s219 + $0xe48] sm:$0xff] %v1134
                %v1136 = vld [vmem:[%s218 + $0x1c90] sm:$0xff]
                %1137 = vst [vmem:[%s219 + $0xe50] sm:$0xff] %v1136
                %v1138 = vld [vmem:[%s218 + $0x1c98] sm:$0xff]
                %1139 = vst [vmem:[%s219 + $0xe58] sm:$0xff] %v1138
                %v1140 = vld [vmem:[%s218 + $0x1ca0] sm:$0xff]
                %1141 = vst [vmem:[%s219 + $0xe60] sm:$0xff] %v1140
                %v1142 = vld [vmem:[%s218 + $0x1ca8] sm:$0xff]
                %1143 = vst [vmem:[%s219 + $0xe68] sm:$0xff] %v1142
                %v1144 = vld [vmem:[%s218 + $0x1cb0] sm:$0xff]
                %1145 = vst [vmem:[%s219 + $0xe70] sm:$0xff] %v1144
                %v1146 = vld [vmem:[%s218 + $0x1cb8] sm:$0xff]
                %1147 = vst [vmem:[%s219 + $0xe78] sm:$0xff] %v1146
                %v1148 = vld [vmem:[%s218 + $0x1d00] sm:$0xff]
                %1149 = vst [vmem:[%s219 + $0xe80] sm:$0xff] %v1148
                %v1150 = vld [vmem:[%s218 + $0x1d08] sm:$0xff]
                %1151 = vst [vmem:[%s219 + $0xe88] sm:$0xff] %v1150
                %v1152 = vld [vmem:[%s218 + $0x1d10] sm:$0xff]
                %1153 = vst [vmem:[%s219 + $0xe90] sm:$0xff] %v1152
                %v1154 = vld [vmem:[%s218 + $0x1d18] sm:$0xff]
                %1155 = vst [vmem:[%s219 + $0xe98] sm:$0xff] %v1154
                %v1156 = vld [vmem:[%s218 + $0x1d20] sm:$0xff]
                %1157 = vst [vmem:[%s219 + $0xea0] sm:$0xff] %v1156
                %v1158 = vld [vmem:[%s218 + $0x1d28] sm:$0xff]
                %1159 = vst [vmem:[%s219 + $0xea8] sm:$0xff] %v1158
                %v1160 = vld [vmem:[%s218 + $0x1d30] sm:$0xff]
                %1161 = vst [vmem:[%s219 + $0xeb0] sm:$0xff] %v1160
                %v1162 = vld [vmem:[%s218 + $0x1d38] sm:$0xff]
                %1163 = vst [vmem:[%s219 + $0xeb8] sm:$0xff] %v1162
                %v1164 = vld [vmem:[%s218 + $0x1d80] sm:$0xff]
                %1165 = vst [vmem:[%s219 + $0xec0] sm:$0xff] %v1164
                %v1166 = vld [vmem:[%s218 + $0x1d88] sm:$0xff]
                %1167 = vst [vmem:[%s219 + $0xec8] sm:$0xff] %v1166
                %v1168 = vld [vmem:[%s218 + $0x1d90] sm:$0xff]
                %1169 = vst [vmem:[%s219 + $0xed0] sm:$0xff] %v1168
                %v1170 = vld [vmem:[%s218 + $0x1d98] sm:$0xff]
                %1171 = vst [vmem:[%s219 + $0xed8] sm:$0xff] %v1170
                %v1172 = vld [vmem:[%s218 + $0x1da0] sm:$0xff]
                %1173 = vst [vmem:[%s219 + $0xee0] sm:$0xff] %v1172
                %v1174 = vld [vmem:[%s218 + $0x1da8] sm:$0xff]
                %1175 = vst [vmem:[%s219 + $0xee8] sm:$0xff] %v1174
                %v1176 = vld [vmem:[%s218 + $0x1db0] sm:$0xff]
                %1177 = vst [vmem:[%s219 + $0xef0] sm:$0xff] %v1176
                %v1178 = vld [vmem:[%s218 + $0x1db8] sm:$0xff]
                %1179 = vst [vmem:[%s219 + $0xef8] sm:$0xff] %v1178
                %v1180 = vld [vmem:[%s218 + $0x1e00] sm:$0xff]
                %1181 = vst [vmem:[%s219 + $0xf00] sm:$0xff] %v1180
                %v1182 = vld [vmem:[%s218 + $0x1e08] sm:$0xff]
                %1183 = vst [vmem:[%s219 + $0xf08] sm:$0xff] %v1182
                %v1184 = vld [vmem:[%s218 + $0x1e10] sm:$0xff]
                %1185 = vst [vmem:[%s219 + $0xf10] sm:$0xff] %v1184
                %v1186 = vld [vmem:[%s218 + $0x1e18] sm:$0xff]
                %1187 = vst [vmem:[%s219 + $0xf18] sm:$0xff] %v1186
                %v1188 = vld [vmem:[%s218 + $0x1e20] sm:$0xff]
                %1189 = vst [vmem:[%s219 + $0xf20] sm:$0xff] %v1188
                %v1190 = vld [vmem:[%s218 + $0x1e28] sm:$0xff]
                %1191 = vst [vmem:[%s219 + $0xf28] sm:$0xff] %v1190
                %v1192 = vld [vmem:[%s218 + $0x1e30] sm:$0xff]
                %1193 = vst [vmem:[%s219 + $0xf30] sm:$0xff] %v1192
                %v1194 = vld [vmem:[%s218 + $0x1e38] sm:$0xff]
                %1195 = vst [vmem:[%s219 + $0xf38] sm:$0xff] %v1194
                %v1196 = vld [vmem:[%s218 + $0x1e80] sm:$0xff]
                %1197 = vst [vmem:[%s219 + $0xf40] sm:$0xff] %v1196
                %v1198 = vld [vmem:[%s218 + $0x1e88] sm:$0xff]
                %1199 = vst [vmem:[%s219 + $0xf48] sm:$0xff] %v1198
                %v1200 = vld [vmem:[%s218 + $0x1e90] sm:$0xff]
                %1201 = vst [vmem:[%s219 + $0xf50] sm:$0xff] %v1200
                %v1202 = vld [vmem:[%s218 + $0x1e98] sm:$0xff]
                %1203 = vst [vmem:[%s219 + $0xf58] sm:$0xff] %v1202
                %v1204 = vld [vmem:[%s218 + $0x1ea0] sm:$0xff]
                %1205 = vst [vmem:[%s219 + $0xf60] sm:$0xff] %v1204
                %v1206 = vld [vmem:[%s218 + $0x1ea8] sm:$0xff]
                %1207 = vst [vmem:[%s219 + $0xf68] sm:$0xff] %v1206
                %v1208 = vld [vmem:[%s218 + $0x1eb0] sm:$0xff]
                %1209 = vst [vmem:[%s219 + $0xf70] sm:$0xff] %v1208
                %v1210 = vld [vmem:[%s218 + $0x1eb8] sm:$0xff]
                %1211 = vst [vmem:[%s219 + $0xf78] sm:$0xff] %v1210
                %v1212 = vld [vmem:[%s218 + $0x1f00] sm:$0xff]
                %1213 = vst [vmem:[%s219 + $0xf80] sm:$0xff] %v1212
                %v1214 = vld [vmem:[%s218 + $0x1f08] sm:$0xff]
                %1215 = vst [vmem:[%s219 + $0xf88] sm:$0xff] %v1214
                %v1216 = vld [vmem:[%s218 + $0x1f10] sm:$0xff]
                %1217 = vst [vmem:[%s219 + $0xf90] sm:$0xff] %v1216
                %v1218 = vld [vmem:[%s218 + $0x1f18] sm:$0xff]
                %1219 = vst [vmem:[%s219 + $0xf98] sm:$0xff] %v1218
                %v1220 = vld [vmem:[%s218 + $0x1f20] sm:$0xff]
                %1221 = vst [vmem:[%s219 + $0xfa0] sm:$0xff] %v1220
                %v1222 = vld [vmem:[%s218 + $0x1f28] sm:$0xff]
                %1223 = vst [vmem:[%s219 + $0xfa8] sm:$0xff] %v1222
                %v1224 = vld [vmem:[%s218 + $0x1f30] sm:$0xff]
                %1225 = vst [vmem:[%s219 + $0xfb0] sm:$0xff] %v1224
                %v1226 = vld [vmem:[%s218 + $0x1f38] sm:$0xff]
                %1227 = vst [vmem:[%s219 + $0xfb8] sm:$0xff] %v1226
                %v1228 = vld [vmem:[%s218 + $0x1f80] sm:$0xff]
                %1229 = vst [vmem:[%s219 + $0xfc0] sm:$0xff] %v1228
                %v1230 = vld [vmem:[%s218 + $0x1f88] sm:$0xff]
                %1231 = vst [vmem:[%s219 + $0xfc8] sm:$0xff] %v1230
                %v1232 = vld [vmem:[%s218 + $0x1f90] sm:$0xff]
                %1233 = vst [vmem:[%s219 + $0xfd0] sm:$0xff] %v1232
                %v1234 = vld [vmem:[%s218 + $0x1f98] sm:$0xff]
                %1235 = vst [vmem:[%s219 + $0xfd8] sm:$0xff] %v1234
                %v1236 = vld [vmem:[%s218 + $0x1fa0] sm:$0xff]
                %1237 = vst [vmem:[%s219 + $0xfe0] sm:$0xff] %v1236
                %v1238 = vld [vmem:[%s218 + $0x1fa8] sm:$0xff]
                %1239 = vst [vmem:[%s219 + $0xfe8] sm:$0xff] %v1238
                %v1240 = vld [vmem:[%s218 + $0x1fb0] sm:$0xff]
                %1241 = vst [vmem:[%s219 + $0xff0] sm:$0xff] %v1240
                %v1242 = vld [vmem:[%s218 + $0x1fb8] sm:$0xff]
                %1243 = vst [vmem:[%s219 + $0xff8] sm:$0xff] %v1242
                %v1244 = vld [vmem:[%s218 + $0x2000] sm:$0xff]
                %1245 = vst [vmem:[%s219 + $0x1000] sm:$0xff] %v1244
                %v1246 = vld [vmem:[%s218 + $0x2008] sm:$0xff]
                %1247 = vst [vmem:[%s219 + $0x1008] sm:$0xff] %v1246
                %v1248 = vld [vmem:[%s218 + $0x2010] sm:$0xff]
                %1249 = vst [vmem:[%s219 + $0x1010] sm:$0xff] %v1248
                %v1250 = vld [vmem:[%s218 + $0x2018] sm:$0xff]
                %1251 = vst [vmem:[%s219 + $0x1018] sm:$0xff] %v1250
                %v1252 = vld [vmem:[%s218 + $0x2020] sm:$0xff]
                %1253 = vst [vmem:[%s219 + $0x1020] sm:$0xff] %v1252
                %v1254 = vld [vmem:[%s218 + $0x2028] sm:$0xff]
                %1255 = vst [vmem:[%s219 + $0x1028] sm:$0xff] %v1254
                %v1256 = vld [vmem:[%s218 + $0x2030] sm:$0xff]
                %1257 = vst [vmem:[%s219 + $0x1030] sm:$0xff] %v1256
                %v1258 = vld [vmem:[%s218 + $0x2038] sm:$0xff]
                %1259 = vst [vmem:[%s219 + $0x1038] sm:$0xff] %v1258
                %v1260 = vld [vmem:[%s218 + $0x2080] sm:$0xff]
                %1261 = vst [vmem:[%s219 + $0x1040] sm:$0xff] %v1260
                %v1262 = vld [vmem:[%s218 + $0x2088] sm:$0xff]
                %1263 = vst [vmem:[%s219 + $0x1048] sm:$0xff] %v1262
                %v1264 = vld [vmem:[%s218 + $0x2090] sm:$0xff]
                %1265 = vst [vmem:[%s219 + $0x1050] sm:$0xff] %v1264
                %v1266 = vld [vmem:[%s218 + $0x2098] sm:$0xff]
                %1267 = vst [vmem:[%s219 + $0x1058] sm:$0xff] %v1266
                %v1268 = vld [vmem:[%s218 + $0x20a0] sm:$0xff]
                %1269 = vst [vmem:[%s219 + $0x1060] sm:$0xff] %v1268
                %v1270 = vld [vmem:[%s218 + $0x20a8] sm:$0xff]
                %1271 = vst [vmem:[%s219 + $0x1068] sm:$0xff] %v1270
                %v1272 = vld [vmem:[%s218 + $0x20b0] sm:$0xff]
                %1273 = vst [vmem:[%s219 + $0x1070] sm:$0xff] %v1272
                %v1274 = vld [vmem:[%s218 + $0x20b8] sm:$0xff]
                %1275 = vst [vmem:[%s219 + $0x1078] sm:$0xff] %v1274
                %v1276 = vld [vmem:[%s218 + $0x2100] sm:$0xff]
                %1277 = vst [vmem:[%s219 + $0x1080] sm:$0xff] %v1276
                %v1278 = vld [vmem:[%s218 + $0x2108] sm:$0xff]
                %1279 = vst [vmem:[%s219 + $0x1088] sm:$0xff] %v1278
                %v1280 = vld [vmem:[%s218 + $0x2110] sm:$0xff]
                %1281 = vst [vmem:[%s219 + $0x1090] sm:$0xff] %v1280
                %v1282 = vld [vmem:[%s218 + $0x2118] sm:$0xff]
                %1283 = vst [vmem:[%s219 + $0x1098] sm:$0xff] %v1282
                %v1284 = vld [vmem:[%s218 + $0x2120] sm:$0xff]
                %1285 = vst [vmem:[%s219 + $0x10a0] sm:$0xff] %v1284
                %v1286 = vld [vmem:[%s218 + $0x2128] sm:$0xff]
                %1287 = vst [vmem:[%s219 + $0x10a8] sm:$0xff] %v1286
                %v1288 = vld [vmem:[%s218 + $0x2130] sm:$0xff]
                %1289 = vst [vmem:[%s219 + $0x10b0] sm:$0xff] %v1288
                %v1290 = vld [vmem:[%s218 + $0x2138] sm:$0xff]
                %1291 = vst [vmem:[%s219 + $0x10b8] sm:$0xff] %v1290
                %v1292 = vld [vmem:[%s218 + $0x2180] sm:$0xff]
                %1293 = vst [vmem:[%s219 + $0x10c0] sm:$0xff] %v1292
                %v1294 = vld [vmem:[%s218 + $0x2188] sm:$0xff]
                %1295 = vst [vmem:[%s219 + $0x10c8] sm:$0xff] %v1294
                %v1296 = vld [vmem:[%s218 + $0x2190] sm:$0xff]
                %1297 = vst [vmem:[%s219 + $0x10d0] sm:$0xff] %v1296
                %v1298 = vld [vmem:[%s218 + $0x2198] sm:$0xff]
                %1299 = vst [vmem:[%s219 + $0x10d8] sm:$0xff] %v1298
                %v1300 = vld [vmem:[%s218 + $0x21a0] sm:$0xff]
                %1301 = vst [vmem:[%s219 + $0x10e0] sm:$0xff] %v1300
                %v1302 = vld [vmem:[%s218 + $0x21a8] sm:$0xff]
                %1303 = vst [vmem:[%s219 + $0x10e8] sm:$0xff] %v1302
                %v1304 = vld [vmem:[%s218 + $0x21b0] sm:$0xff]
                %1305 = vst [vmem:[%s219 + $0x10f0] sm:$0xff] %v1304
                %v1306 = vld [vmem:[%s218 + $0x21b8] sm:$0xff]
                %1307 = vst [vmem:[%s219 + $0x10f8] sm:$0xff] %v1306
                %v1308 = vld [vmem:[%s218 + $0x2200] sm:$0xff]
                %1309 = vst [vmem:[%s219 + $0x1100] sm:$0xff] %v1308
                %v1310 = vld [vmem:[%s218 + $0x2208] sm:$0xff]
                %1311 = vst [vmem:[%s219 + $0x1108] sm:$0xff] %v1310
                %v1312 = vld [vmem:[%s218 + $0x2210] sm:$0xff]
                %1313 = vst [vmem:[%s219 + $0x1110] sm:$0xff] %v1312
                %v1314 = vld [vmem:[%s218 + $0x2218] sm:$0xff]
                %1315 = vst [vmem:[%s219 + $0x1118] sm:$0xff] %v1314
                %v1316 = vld [vmem:[%s218 + $0x2220] sm:$0xff]
                %1317 = vst [vmem:[%s219 + $0x1120] sm:$0xff] %v1316
                %v1318 = vld [vmem:[%s218 + $0x2228] sm:$0xff]
                %1319 = vst [vmem:[%s219 + $0x1128] sm:$0xff] %v1318
                %v1320 = vld [vmem:[%s218 + $0x2230] sm:$0xff]
                %1321 = vst [vmem:[%s219 + $0x1130] sm:$0xff] %v1320
                %v1322 = vld [vmem:[%s218 + $0x2238] sm:$0xff]
                %1323 = vst [vmem:[%s219 + $0x1138] sm:$0xff] %v1322
                %v1324 = vld [vmem:[%s218 + $0x2280] sm:$0xff]
                %1325 = vst [vmem:[%s219 + $0x1140] sm:$0xff] %v1324
                %v1326 = vld [vmem:[%s218 + $0x2288] sm:$0xff]
                %1327 = vst [vmem:[%s219 + $0x1148] sm:$0xff] %v1326
                %v1328 = vld [vmem:[%s218 + $0x2290] sm:$0xff]
                %1329 = vst [vmem:[%s219 + $0x1150] sm:$0xff] %v1328
                %v1330 = vld [vmem:[%s218 + $0x2298] sm:$0xff]
                %1331 = vst [vmem:[%s219 + $0x1158] sm:$0xff] %v1330
                %v1332 = vld [vmem:[%s218 + $0x22a0] sm:$0xff]
                %1333 = vst [vmem:[%s219 + $0x1160] sm:$0xff] %v1332
                %v1334 = vld [vmem:[%s218 + $0x22a8] sm:$0xff]
                %1335 = vst [vmem:[%s219 + $0x1168] sm:$0xff] %v1334
                %v1336 = vld [vmem:[%s218 + $0x22b0] sm:$0xff]
                %1337 = vst [vmem:[%s219 + $0x1170] sm:$0xff] %v1336
                %v1338 = vld [vmem:[%s218 + $0x22b8] sm:$0xff]
                %1339 = vst [vmem:[%s219 + $0x1178] sm:$0xff] %v1338
                %v1340 = vld [vmem:[%s218 + $0x2300] sm:$0xff]
                %1341 = vst [vmem:[%s219 + $0x1180] sm:$0xff] %v1340
                %v1342 = vld [vmem:[%s218 + $0x2308] sm:$0xff]
                %1343 = vst [vmem:[%s219 + $0x1188] sm:$0xff] %v1342
                %v1344 = vld [vmem:[%s218 + $0x2310] sm:$0xff]
                %1345 = vst [vmem:[%s219 + $0x1190] sm:$0xff] %v1344
                %v1346 = vld [vmem:[%s218 + $0x2318] sm:$0xff]
                %1347 = vst [vmem:[%s219 + $0x1198] sm:$0xff] %v1346
                %v1348 = vld [vmem:[%s218 + $0x2320] sm:$0xff]
                %1349 = vst [vmem:[%s219 + $0x11a0] sm:$0xff] %v1348
                %v1350 = vld [vmem:[%s218 + $0x2328] sm:$0xff]
                %1351 = vst [vmem:[%s219 + $0x11a8] sm:$0xff] %v1350
                %v1352 = vld [vmem:[%s218 + $0x2330] sm:$0xff]
                %1353 = vst [vmem:[%s219 + $0x11b0] sm:$0xff] %v1352
                %v1354 = vld [vmem:[%s218 + $0x2338] sm:$0xff]
                %1355 = vst [vmem:[%s219 + $0x11b8] sm:$0xff] %v1354
                %v1356 = vld [vmem:[%s218 + $0x2380] sm:$0xff]
                %1357 = vst [vmem:[%s219 + $0x11c0] sm:$0xff] %v1356
                %v1358 = vld [vmem:[%s218 + $0x2388] sm:$0xff]
                %1359 = vst [vmem:[%s219 + $0x11c8] sm:$0xff] %v1358
                %v1360 = vld [vmem:[%s218 + $0x2390] sm:$0xff]
                %1361 = vst [vmem:[%s219 + $0x11d0] sm:$0xff] %v1360
                %v1362 = vld [vmem:[%s218 + $0x2398] sm:$0xff]
                %1363 = vst [vmem:[%s219 + $0x11d8] sm:$0xff] %v1362
                %v1364 = vld [vmem:[%s218 + $0x23a0] sm:$0xff]
                %1365 = vst [vmem:[%s219 + $0x11e0] sm:$0xff] %v1364
                %v1366 = vld [vmem:[%s218 + $0x23a8] sm:$0xff]
                %1367 = vst [vmem:[%s219 + $0x11e8] sm:$0xff] %v1366
                %v1368 = vld [vmem:[%s218 + $0x23b0] sm:$0xff]
                %1369 = vst [vmem:[%s219 + $0x11f0] sm:$0xff] %v1368
                %v1370 = vld [vmem:[%s218 + $0x23b8] sm:$0xff]
                %1371 = vst [vmem:[%s219 + $0x11f8] sm:$0xff] %v1370
              $region45: #{decoder2vector_forward.1} parent=39 // loop_footer
                %s217 = sadd.s32 1, %s213
              $region46: #{decoder2vector_forward.1} parent=39 // loop_footer_branch
                %212 = sbr.rel target = $region42
              $region47: #{decoder2vector_forward.1} parent=39 // loop_exit
                _
            $region40: #{decoder2vector_forward.1} parent=35 // pred_fallthru
              _
            // Predicated region
            $region48: #{decoder2vector_forward.1} parent=35 // pred_check
              _
            $region49: #{decoder2vector_forward.1} parent=35 // pred_check_branch
              %1373 = sbr.rel target = $region51
            $region50: #{decoder2vector_forward.1} parent=35 // pred_region
              _
            $region51: #{decoder2vector_forward.1} parent=35 // pred_fallthru
              _
          $region36: #{decoder2vector_forward.1} parent=31 // pred_fallthru
            _
          %1374 = vnop
        $region32: #{decoder2vector_forward.1} parent=27 // pred_fallthru
          _
        // Predicated region
        $region52: #{decoder2vector_forward.1} parent=27 // pred_check
          %p1375 = pneg %p113
        $region53: #{decoder2vector_forward.1} parent=27 // pred_check_branch
          %1377 = sbr.rel (%p1375) target = $region55
        $region54: #{decoder2vector_forward.1} parent=27 // pred_region
          %p1378 = scmp.lt.s32.totalorder %s19, 1
          %s1379 = scalar_select %p1378, %s19, 1
          %s1380 = smul.addr %s1379, 8
          %s1381 = smul.addr %s1380, 2
          %s1382 = scalar_lea.vmem %s3, %s1381
        $region55: #{decoder2vector_forward.1} parent=27 // pred_fallthru
          _
      $region28: #{decoder2vector_forward.1} parent=5 // pred_fallthru
        _
      %p1383 = scmp.le.s32.totalorder 1, %s11
      %p1384 = scmp.lt.s32.totalorder %s11, 5
      %p1385 = pnand %p1383, %p1384
      %p1386 = pneg %p1385
      // Predicated region
      $region56: #{decoder2vector_forward.1} parent=5 // pred_check
        _
      $region57: #{decoder2vector_forward.1} parent=5 // pred_check_branch
        %1388 = sbr.rel (%p1385) target = $region59
      $region58: #{decoder2vector_forward.1} parent=5 // pred_region
        %s1389 = ssub.s32 %s11, 1
        %s1390 = sand.u32 %s38, 1
        %s1391 = sand.u32 %s38, 1
        %s1392 = smul.addr %s1391, 4608
        %s1393 = scalar_lea.vmem [#allocation2], %s1392
        // Predicated region
        $region60: #{decoder2vector_forward.1} parent=58 // pred_check
          %p1394 = pneg %p51
        $region61: #{decoder2vector_forward.1} parent=58 // pred_check_branch
          %1396 = sbr.rel (%p1394) target = $region63
        $region62: #{decoder2vector_forward.1} parent=58 // pred_region
          _
        $region63: #{decoder2vector_forward.1} parent=58 // pred_fallthru
          _
        %s1397 = sand.u32 %s38, 1
        %s1398 = sand.u32 %s38, 1
        %s1399 = smul.addr %s1398, 4608
        %s1400 = scalar_lea.vmem [#allocation2], %s1399
        %p1401 = pneg %p51
        %p1402 = pneg %p48
        %p1403 = pneg %p72
        %p1404 = pneg %p69
        %p1405 = pneg %p93
        %p1406 = pneg %p90
        %p1407 = scmp.lt.s32.totalorder %s21, 1
        %s1408 = scalar_select %p1407, %s21, 1
        %s1409 = smul.addr %s1408, 8
        %s1410 = smul.addr %s1409, 2
        %s1411 = scalar_lea.vmem %s3, %s1410
        %p1412 = pneg %p119
        %p1413 = pneg %p116
        %p1414 = pneg %p140
        %p1415 = pneg %p137
        %p1416 = pneg %p168
        %p1417 = pneg %p165
        %p1418 = scmp.lt.s32.totalorder %s20, 1
        %s1419 = scalar_select %p1418, %s20, 1
        %p1420 = scmp.lt.s32.totalorder %s21, 1
        %s1421 = scalar_select %p1420, %s21, 1
        %s1422 = smul.addr %s1419, 2
        %s1423 = sadd.s32 %s1421, %s1422
        %s1424 = smul.addr %s1423, 2
        %s1425 = scalar_lea.vmem %s5, %s1424
        %s1426 = smul.u32 16, %s21
        %p1427 = scmp.lt.s32.totalorder %s21, 1
        %s1428 = scalar_select %p1427, %s21, 1
        %s1429 = smul.addr %s1428, 8
        %s1430 = smul.addr %s1429, 2
        %s1431 = scalar_lea.vmem %s3, %s1430
        %p1432 = scmp.lt.s32.totalorder %s20, 1
        %s1433 = scalar_select %p1432, %s20, 1
        %p1434 = scmp.lt.s32.totalorder %s21, 1
        %s1435 = scalar_select %p1434, %s21, 1
        %s1436 = smul.addr %s1433, 2
        %s1437 = sadd.s32 %s1435, %s1436
        %s1438 = smul.addr %s1437, 2
        %s1439 = scalar_lea.vmem %s5, %s1438
        %v1441 = vld [vmem:[%s1] sm:$0xff]
        %v1442 = vld [vmem:[%s1 + $0x8] sm:$0xff]
        %v1443 = vld [vmem:[%s1 + $0x10] sm:$0xf]
        %v1444 = vld [vmem:[%s1393] sm:$0xff]
        %v1445 = vld [vmem:[%s1393 + $0x8] sm:$0xff]
        %v1446 = vld [vmem:[%s1393 + $0x10] sm:$0xff]
        %v1447 = vld [vmem:[%s1393 + $0x18] sm:$0xff]
        %v1448 = vld [vmem:[%s1393 + $0x20] sm:$0xff]
        %v1449 = vld [vmem:[%s1393 + $0x28] sm:$0xff]
        %v1450 = vld [vmem:[%s1393 + $0x30] sm:$0xff]
        %v1451 = vld [vmem:[%s1393 + $0x38] sm:$0xff]
        %v1452 = vld [vmem:[%s1393 + $0x40] sm:$0xff]
        %v1453 = vld [vmem:[%s1393 + $0x48] sm:$0xff]
        %v1454 = vld [vmem:[%s1393 + $0x50] sm:$0xff]
        %v1455 = vld [vmem:[%s1393 + $0x58] sm:$0xff]
        %v1456 = vld [vmem:[%s1393 + $0x60] sm:$0xff]
        %v1457 = vld [vmem:[%s1393 + $0x68] sm:$0xff]
        %v1458 = vld [vmem:[%s1393 + $0x70] sm:$0xff]
        %v1459 = vld [vmem:[%s1393 + $0x78] sm:$0xff]
        %v1460 = vld [vmem:[%s1393 + $0x80] sm:$0xff]
        %v1461 = vld [vmem:[%s1393 + $0x88] sm:$0xff]
        %v1462 = vld [vmem:[%s1393 + $0x90] sm:$0xff]
        %v1463 = vld [vmem:[%s1393 + $0x98] sm:$0xff]
        %v1464 = vld [vmem:[%s1393 + $0xa0] sm:$0xff]
        %v1465 = vld [vmem:[%s1393 + $0xa8] sm:$0xff]
        %v1466 = vld [vmem:[%s1393 + $0xb0] sm:$0xff]
        %v1467 = vld [vmem:[%s1393 + $0xb8] sm:$0xff]
        %v1468 = vld [vmem:[%s1393 + $0xc0] sm:$0xff]
        %v1469 = vld [vmem:[%s1393 + $0xc8] sm:$0xff]
        %v1470 = vld [vmem:[%s1393 + $0xd0] sm:$0xff]
        %v1471 = vld [vmem:[%s1393 + $0xd8] sm:$0xff]
        %v1472 = vld [vmem:[%s1393 + $0xe0] sm:$0xff]
        %v1473 = vld [vmem:[%s1393 + $0xe8] sm:$0xff]
        %v1474 = vld [vmem:[%s1393 + $0xf0] sm:$0xff]
        %v1475 = vld [vmem:[%s1393 + $0xf8] sm:$0xff]
        %v1476 = vld [vmem:[%s1393 + $0x100] sm:$0xff]
        %v1477 = vld [vmem:[%s1393 + $0x108] sm:$0xff]
        %v1478 = vld [vmem:[%s1393 + $0x110] sm:$0xff]
        %v1479 = vld [vmem:[%s1393 + $0x118] sm:$0xff]
        %v1480 = vld [vmem:[%s1393 + $0x120] sm:$0xff]
        %v1481 = vld [vmem:[%s1393 + $0x128] sm:$0xff]
        %v1482 = vld [vmem:[%s1393 + $0x130] sm:$0xff]
        %v1483 = vld [vmem:[%s1393 + $0x138] sm:$0xff]
        %v1484 = vld [vmem:[%s1393 + $0x140] sm:$0xff]
        %v1485 = vld [vmem:[%s1393 + $0x148] sm:$0xff]
        %v1486 = vld [vmem:[%s1393 + $0x150] sm:$0xff]
        %v1487 = vld [vmem:[%s1393 + $0x158] sm:$0xff]
        %v1488 = vld [vmem:[%s1393 + $0x160] sm:$0xff]
        %v1489 = vld [vmem:[%s1393 + $0x168] sm:$0xff]
        %v1490 = vld [vmem:[%s1393 + $0x170] sm:$0xff]
        %v1491 = vld [vmem:[%s1393 + $0x178] sm:$0xff]
        %v1492 = vld [vmem:[%s1393 + $0x180] sm:$0xff]
        %v1493 = vld [vmem:[%s1393 + $0x188] sm:$0xff]
        %v1494 = vld [vmem:[%s1393 + $0x190] sm:$0xff]
        %v1495 = vld [vmem:[%s1393 + $0x198] sm:$0xff]
        %v1496 = vld [vmem:[%s1393 + $0x1a0] sm:$0xff]
        %v1497 = vld [vmem:[%s1393 + $0x1a8] sm:$0xff]
        %v1498 = vld [vmem:[%s1393 + $0x1b0] sm:$0xff]
        %v1499 = vld [vmem:[%s1393 + $0x1b8] sm:$0xff]
        %v1500 = vld [vmem:[%s1393 + $0x1c0] sm:$0xff]
        %v1501 = vld [vmem:[%s1393 + $0x1c8] sm:$0xff]
        %v1502 = vld [vmem:[%s1393 + $0x1d0] sm:$0xff]
        %v1503 = vld [vmem:[%s1393 + $0x1d8] sm:$0xff]
        %v1504 = vld [vmem:[%s1393 + $0x1e0] sm:$0xff]
        %v1505 = vld [vmem:[%s1393 + $0x1e8] sm:$0xff]
        %v1506 = vld [vmem:[%s1393 + $0x1f0] sm:$0xff]
        %v1507 = vld [vmem:[%s1393 + $0x1f8] sm:$0xff]
        %v1508 = vld [vmem:[%s1393 + $0x200] sm:$0xff]
        %v1509 = vld [vmem:[%s1393 + $0x208] sm:$0xff]
        %v1510 = vld [vmem:[%s1393 + $0x210] sm:$0xff]
        %v1511 = vld [vmem:[%s1393 + $0x218] sm:$0xff]
        %v1512 = vld [vmem:[%s1393 + $0x220] sm:$0xff]
        %v1513 = vld [vmem:[%s1393 + $0x228] sm:$0xff]
        %v1514 = vld [vmem:[%s1393 + $0x230] sm:$0xff]
        %v1515 = vld [vmem:[%s1393 + $0x238] sm:$0xff]
        %v1516 = vld [vmem:[%s1393 + $0x240] sm:$0xff]
        %v1517 = vld [vmem:[%s1393 + $0x248] sm:$0xff]
        %v1518 = vld [vmem:[%s1393 + $0x250] sm:$0xff]
        %v1519 = vld [vmem:[%s1393 + $0x258] sm:$0xff]
        %v1520 = vld [vmem:[%s1393 + $0x260] sm:$0xff]
        %v1521 = vld [vmem:[%s1393 + $0x268] sm:$0xff]
        %v1522 = vld [vmem:[%s1393 + $0x270] sm:$0xff]
        %v1523 = vld [vmem:[%s1393 + $0x278] sm:$0xff]
        %v1524 = vld [vmem:[%s1393 + $0x280] sm:$0xff]
        %v1525 = vld [vmem:[%s1393 + $0x288] sm:$0xff]
        %v1526 = vld [vmem:[%s1393 + $0x290] sm:$0xff]
        %v1527 = vld [vmem:[%s1393 + $0x298] sm:$0xff]
        %v1528 = vld [vmem:[%s1393 + $0x2a0] sm:$0xff]
        %v1529 = vld [vmem:[%s1393 + $0x2a8] sm:$0xff]
        %v1530 = vld [vmem:[%s1393 + $0x2b0] sm:$0xff]
        %v1531 = vld [vmem:[%s1393 + $0x2b8] sm:$0xff]
        %v1532 = vld [vmem:[%s1393 + $0x2c0] sm:$0xff]
        %v1533 = vld [vmem:[%s1393 + $0x2c8] sm:$0xff]
        %v1534 = vld [vmem:[%s1393 + $0x2d0] sm:$0xff]
        %v1535 = vld [vmem:[%s1393 + $0x2d8] sm:$0xff]
        %v1536 = vld [vmem:[%s1393 + $0x2e0] sm:$0xff]
        %v1537 = vld [vmem:[%s1393 + $0x2e8] sm:$0xff]
        %v1538 = vld [vmem:[%s1393 + $0x2f0] sm:$0xff]
        %v1539 = vld [vmem:[%s1393 + $0x2f8] sm:$0xff]
        %v1540 = vld [vmem:[%s1393 + $0x300] sm:$0xff]
        %v1541 = vld [vmem:[%s1393 + $0x308] sm:$0xff]
        %v1542 = vld [vmem:[%s1393 + $0x310] sm:$0xff]
        %v1543 = vld [vmem:[%s1393 + $0x318] sm:$0xff]
        %v1544 = vld [vmem:[%s1393 + $0x320] sm:$0xff]
        %v1545 = vld [vmem:[%s1393 + $0x328] sm:$0xff]
        %v1546 = vld [vmem:[%s1393 + $0x330] sm:$0xff]
        %v1547 = vld [vmem:[%s1393 + $0x338] sm:$0xff]
        %v1548 = vld [vmem:[%s1393 + $0x340] sm:$0xff]
        %v1549 = vld [vmem:[%s1393 + $0x348] sm:$0xff]
        %v1550 = vld [vmem:[%s1393 + $0x350] sm:$0xff]
        %v1551 = vld [vmem:[%s1393 + $0x358] sm:$0xff]
        %v1552 = vld [vmem:[%s1393 + $0x360] sm:$0xff]
        %v1553 = vld [vmem:[%s1393 + $0x368] sm:$0xff]
        %v1554 = vld [vmem:[%s1393 + $0x370] sm:$0xff]
        %v1555 = vld [vmem:[%s1393 + $0x378] sm:$0xff]
        %v1556 = vld [vmem:[%s1393 + $0x380] sm:$0xff]
        %v1557 = vld [vmem:[%s1393 + $0x388] sm:$0xff]
        %v1558 = vld [vmem:[%s1393 + $0x390] sm:$0xff]
        %v1559 = vld [vmem:[%s1393 + $0x398] sm:$0xff]
        %v1560 = vld [vmem:[%s1393 + $0x3a0] sm:$0xff]
        %v1561 = vld [vmem:[%s1393 + $0x3a8] sm:$0xff]
        %v1562 = vld [vmem:[%s1393 + $0x3b0] sm:$0xff]
        %v1563 = vld [vmem:[%s1393 + $0x3b8] sm:$0xff]
        %v1564 = vld [vmem:[%s1393 + $0x3c0] sm:$0xff]
        %v1565 = vld [vmem:[%s1393 + $0x3c8] sm:$0xff]
        %v1566 = vld [vmem:[%s1393 + $0x3d0] sm:$0xff]
        %v1567 = vld [vmem:[%s1393 + $0x3d8] sm:$0xff]
        %v1568 = vld [vmem:[%s1393 + $0x3e0] sm:$0xff]
        %v1569 = vld [vmem:[%s1393 + $0x3e8] sm:$0xff]
        %v1570 = vld [vmem:[%s1393 + $0x3f0] sm:$0xff]
        %v1571 = vld [vmem:[%s1393 + $0x3f8] sm:$0xff]
        %v1572 = vld [vmem:[%s1393 + $0x400] sm:$0xff]
        %v1573 = vld [vmem:[%s1393 + $0x408] sm:$0xff]
        %v1574 = vld [vmem:[%s1393 + $0x410] sm:$0xff]
        %v1575 = vld [vmem:[%s1393 + $0x418] sm:$0xff]
        %v1576 = vld [vmem:[%s1393 + $0x420] sm:$0xff]
        %v1577 = vld [vmem:[%s1393 + $0x428] sm:$0xff]
        %v1578 = vld [vmem:[%s1393 + $0x430] sm:$0xff]
        %v1579 = vld [vmem:[%s1393 + $0x438] sm:$0xff]
        %v1580 = vld [vmem:[%s1393 + $0x440] sm:$0xff]
        %v1581 = vld [vmem:[%s1393 + $0x448] sm:$0xff]
        %v1582 = vld [vmem:[%s1393 + $0x450] sm:$0xff]
        %v1583 = vld [vmem:[%s1393 + $0x458] sm:$0xff]
        %v1584 = vld [vmem:[%s1393 + $0x460] sm:$0xff]
        %v1585 = vld [vmem:[%s1393 + $0x468] sm:$0xff]
        %v1586 = vld [vmem:[%s1393 + $0x470] sm:$0xff]
        %v1587 = vld [vmem:[%s1393 + $0x478] sm:$0xff]
        %v1588 = vld [vmem:[%s1393 + $0x480] sm:$0xff]
        %v1589 = vld [vmem:[%s1393 + $0x488] sm:$0xff]
        %v1590 = vld [vmem:[%s1393 + $0x490] sm:$0xff]
        %v1591 = vld [vmem:[%s1393 + $0x498] sm:$0xff]
        %v1592 = vld [vmem:[%s1393 + $0x4a0] sm:$0xff]
        %v1593 = vld [vmem:[%s1393 + $0x4a8] sm:$0xff]
        %v1594 = vld [vmem:[%s1393 + $0x4b0] sm:$0xff]
        %v1595 = vld [vmem:[%s1393 + $0x4b8] sm:$0xff]
        %v1596 = vld [vmem:[%s1393 + $0x4c0] sm:$0xff]
        %v1597 = vld [vmem:[%s1393 + $0x4c8] sm:$0xff]
        %v1598 = vld [vmem:[%s1393 + $0x4d0] sm:$0xff]
        %v1599 = vld [vmem:[%s1393 + $0x4d8] sm:$0xff]
        %v1600 = vld [vmem:[%s1393 + $0x4e0] sm:$0xff]
        %v1601 = vld [vmem:[%s1393 + $0x4e8] sm:$0xff]
        %v1602 = vld [vmem:[%s1393 + $0x4f0] sm:$0xff]
        %v1603 = vld [vmem:[%s1393 + $0x4f8] sm:$0xff]
        %v1604 = vld [vmem:[%s1393 + $0x500] sm:$0xff]
        %v1605 = vld [vmem:[%s1393 + $0x508] sm:$0xff]
        %v1606 = vld [vmem:[%s1393 + $0x510] sm:$0xff]
        %v1607 = vld [vmem:[%s1393 + $0x518] sm:$0xff]
        %v1608 = vld [vmem:[%s1393 + $0x520] sm:$0xff]
        %v1609 = vld [vmem:[%s1393 + $0x528] sm:$0xff]
        %v1610 = vld [vmem:[%s1393 + $0x530] sm:$0xff]
        %v1611 = vld [vmem:[%s1393 + $0x538] sm:$0xff]
        %v1612 = vld [vmem:[%s1393 + $0x540] sm:$0xff]
        %v1613 = vld [vmem:[%s1393 + $0x548] sm:$0xff]
        %v1614 = vld [vmem:[%s1393 + $0x550] sm:$0xff]
        %v1615 = vld [vmem:[%s1393 + $0x558] sm:$0xff]
        %v1616 = vld [vmem:[%s1393 + $0x560] sm:$0xff]
        %v1617 = vld [vmem:[%s1393 + $0x568] sm:$0xff]
        %v1618 = vld [vmem:[%s1393 + $0x570] sm:$0xff]
        %v1619 = vld [vmem:[%s1393 + $0x578] sm:$0xff]
        %v1620 = vld [vmem:[%s1393 + $0x580] sm:$0xff]
        %v1621 = vld [vmem:[%s1393 + $0x588] sm:$0xff]
        %v1622 = vld [vmem:[%s1393 + $0x590] sm:$0xff]
        %v1623 = vld [vmem:[%s1393 + $0x598] sm:$0xff]
        %v1624 = vld [vmem:[%s1393 + $0x5a0] sm:$0xff]
        %v1625 = vld [vmem:[%s1393 + $0x5a8] sm:$0xff]
        %v1626 = vld [vmem:[%s1393 + $0x5b0] sm:$0xff]
        %v1627 = vld [vmem:[%s1393 + $0x5b8] sm:$0xff]
        %v1628 = vld [vmem:[%s1393 + $0x5c0] sm:$0xff]
        %v1629 = vld [vmem:[%s1393 + $0x5c8] sm:$0xff]
        %v1630 = vld [vmem:[%s1393 + $0x5d0] sm:$0xff]
        %v1631 = vld [vmem:[%s1393 + $0x5d8] sm:$0xff]
        %v1632 = vld [vmem:[%s1393 + $0x5e0] sm:$0xff]
        %v1633 = vld [vmem:[%s1393 + $0x5e8] sm:$0xff]
        %v1634 = vld [vmem:[%s1393 + $0x5f0] sm:$0xff]
        %v1635 = vld [vmem:[%s1393 + $0x5f8] sm:$0xff]
        %v1636 = vld [vmem:[%s1393 + $0x600] sm:$0xff]
        %v1637 = vld [vmem:[%s1393 + $0x608] sm:$0xff]
        %v1638 = vld [vmem:[%s1393 + $0x610] sm:$0xff]
        %v1639 = vld [vmem:[%s1393 + $0x618] sm:$0xff]
        %v1640 = vld [vmem:[%s1393 + $0x620] sm:$0xff]
        %v1641 = vld [vmem:[%s1393 + $0x628] sm:$0xff]
        %v1642 = vld [vmem:[%s1393 + $0x630] sm:$0xff]
        %v1643 = vld [vmem:[%s1393 + $0x638] sm:$0xff]
        %v1644 = vld [vmem:[%s1393 + $0x640] sm:$0xff]
        %v1645 = vld [vmem:[%s1393 + $0x648] sm:$0xff]
        %v1646 = vld [vmem:[%s1393 + $0x650] sm:$0xff]
        %v1647 = vld [vmem:[%s1393 + $0x658] sm:$0xff]
        %v1648 = vld [vmem:[%s1393 + $0x660] sm:$0xff]
        %v1649 = vld [vmem:[%s1393 + $0x668] sm:$0xff]
        %v1650 = vld [vmem:[%s1393 + $0x670] sm:$0xff]
        %v1651 = vld [vmem:[%s1393 + $0x678] sm:$0xff]
        %v1652 = vld [vmem:[%s1393 + $0x680] sm:$0xff]
        %v1653 = vld [vmem:[%s1393 + $0x688] sm:$0xff]
        %v1654 = vld [vmem:[%s1393 + $0x690] sm:$0xff]
        %v1655 = vld [vmem:[%s1393 + $0x698] sm:$0xff]
        %v1656 = vld [vmem:[%s1393 + $0x6a0] sm:$0xff]
        %v1657 = vld [vmem:[%s1393 + $0x6a8] sm:$0xff]
        %v1658 = vld [vmem:[%s1393 + $0x6b0] sm:$0xff]
        %v1659 = vld [vmem:[%s1393 + $0x6b8] sm:$0xff]
        %v1660 = vld [vmem:[%s1393 + $0x6c0] sm:$0xff]
        %v1661 = vld [vmem:[%s1393 + $0x6c8] sm:$0xff]
        %v1662 = vld [vmem:[%s1393 + $0x6d0] sm:$0xff]
        %v1663 = vld [vmem:[%s1393 + $0x6d8] sm:$0xff]
        %v1664 = vld [vmem:[%s1393 + $0x6e0] sm:$0xff]
        %v1665 = vld [vmem:[%s1393 + $0x6e8] sm:$0xff]
        %v1666 = vld [vmem:[%s1393 + $0x6f0] sm:$0xff]
        %v1667 = vld [vmem:[%s1393 + $0x6f8] sm:$0xff]
        %v1668 = vld [vmem:[%s1393 + $0x700] sm:$0xff]
        %v1669 = vld [vmem:[%s1393 + $0x708] sm:$0xff]
        %v1670 = vld [vmem:[%s1393 + $0x710] sm:$0xff]
        %v1671 = vld [vmem:[%s1393 + $0x718] sm:$0xff]
        %v1672 = vld [vmem:[%s1393 + $0x720] sm:$0xff]
        %v1673 = vld [vmem:[%s1393 + $0x728] sm:$0xff]
        %v1674 = vld [vmem:[%s1393 + $0x730] sm:$0xff]
        %v1675 = vld [vmem:[%s1393 + $0x738] sm:$0xff]
        %v1676 = vld [vmem:[%s1393 + $0x740] sm:$0xff]
        %v1677 = vld [vmem:[%s1393 + $0x748] sm:$0xff]
        %v1678 = vld [vmem:[%s1393 + $0x750] sm:$0xff]
        %v1679 = vld [vmem:[%s1393 + $0x758] sm:$0xff]
        %v1680 = vld [vmem:[%s1393 + $0x760] sm:$0xff]
        %v1681 = vld [vmem:[%s1393 + $0x768] sm:$0xff]
        %v1682 = vld [vmem:[%s1393 + $0x770] sm:$0xff]
        %v1683 = vld [vmem:[%s1393 + $0x778] sm:$0xff]
        %v1684 = vld [vmem:[%s1393 + $0x780] sm:$0xff]
        %v1685 = vld [vmem:[%s1393 + $0x788] sm:$0xff]
        %v1686 = vld [vmem:[%s1393 + $0x790] sm:$0xff]
        %v1687 = vld [vmem:[%s1393 + $0x798] sm:$0xff]
        %v1688 = vld [vmem:[%s1393 + $0x7a0] sm:$0xff]
        %v1689 = vld [vmem:[%s1393 + $0x7a8] sm:$0xff]
        %v1690 = vld [vmem:[%s1393 + $0x7b0] sm:$0xff]
        %v1691 = vld [vmem:[%s1393 + $0x7b8] sm:$0xff]
        %v1692 = vld [vmem:[%s1393 + $0x7c0] sm:$0xff]
        %v1693 = vld [vmem:[%s1393 + $0x7c8] sm:$0xff]
        %v1694 = vld [vmem:[%s1393 + $0x7d0] sm:$0xff]
        %v1695 = vld [vmem:[%s1393 + $0x7d8] sm:$0xff]
        %v1696 = vld [vmem:[%s1393 + $0x7e0] sm:$0xff]
        %v1697 = vld [vmem:[%s1393 + $0x7e8] sm:$0xff]
        %v1698 = vld [vmem:[%s1393 + $0x7f0] sm:$0xff]
        %v1699 = vld [vmem:[%s1393 + $0x7f8] sm:$0xff]
        %v1700 = vld [vmem:[%s1393 + $0x800] sm:$0xff]
        %v1701 = vld [vmem:[%s1393 + $0x808] sm:$0xff]
        %v1702 = vld [vmem:[%s1393 + $0x810] sm:$0xff]
        %v1703 = vld [vmem:[%s1393 + $0x818] sm:$0xff]
        %v1704 = vld [vmem:[%s1393 + $0x820] sm:$0xff]
        %v1705 = vld [vmem:[%s1393 + $0x828] sm:$0xff]
        %v1706 = vld [vmem:[%s1393 + $0x830] sm:$0xff]
        %v1707 = vld [vmem:[%s1393 + $0x838] sm:$0xff]
        %v1708 = vld [vmem:[%s1393 + $0x840] sm:$0xff]
        %v1709 = vld [vmem:[%s1393 + $0x848] sm:$0xff]
        %v1710 = vld [vmem:[%s1393 + $0x850] sm:$0xff]
        %v1711 = vld [vmem:[%s1393 + $0x858] sm:$0xff]
        %v1712 = vld [vmem:[%s1393 + $0x860] sm:$0xff]
        %v1713 = vld [vmem:[%s1393 + $0x868] sm:$0xff]
        %v1714 = vld [vmem:[%s1393 + $0x870] sm:$0xff]
        %v1715 = vld [vmem:[%s1393 + $0x878] sm:$0xff]
        %v1716 = vld [vmem:[%s1393 + $0x880] sm:$0xff]
        %v1717 = vld [vmem:[%s1393 + $0x888] sm:$0xff]
        %v1718 = vld [vmem:[%s1393 + $0x890] sm:$0xff]
        %v1719 = vld [vmem:[%s1393 + $0x898] sm:$0xff]
        %v1720 = vld [vmem:[%s1393 + $0x8a0] sm:$0xff]
        %v1721 = vld [vmem:[%s1393 + $0x8a8] sm:$0xff]
        %v1722 = vld [vmem:[%s1393 + $0x8b0] sm:$0xff]
        %v1723 = vld [vmem:[%s1393 + $0x8b8] sm:$0xff]
        %v1724 = vld [vmem:[%s1393 + $0x8c0] sm:$0xff]
        %v1725 = vld [vmem:[%s1393 + $0x8c8] sm:$0xff]
        %v1726 = vld [vmem:[%s1393 + $0x8d0] sm:$0xff]
        %v1727 = vld [vmem:[%s1393 + $0x8d8] sm:$0xff]
        %v1728 = vld [vmem:[%s1393 + $0x8e0] sm:$0xff]
        %v1729 = vld [vmem:[%s1393 + $0x8e8] sm:$0xff]
        %v1730 = vld [vmem:[%s1393 + $0x8f0] sm:$0xff]
        %v1731 = vld [vmem:[%s1393 + $0x8f8] sm:$0xff]
        %v1732 = vld [vmem:[%s1393 + $0x900] sm:$0xff]
        %v1733 = vld [vmem:[%s1393 + $0x908] sm:$0xff]
        %v1734 = vld [vmem:[%s1393 + $0x910] sm:$0xff]
        %v1735 = vld [vmem:[%s1393 + $0x918] sm:$0xff]
        %v1736 = vld [vmem:[%s1393 + $0x920] sm:$0xff]
        %v1737 = vld [vmem:[%s1393 + $0x928] sm:$0xff]
        %v1738 = vld [vmem:[%s1393 + $0x930] sm:$0xff]
        %v1739 = vld [vmem:[%s1393 + $0x938] sm:$0xff]
        %v1740 = vld [vmem:[%s1393 + $0x940] sm:$0xff]
        %v1741 = vld [vmem:[%s1393 + $0x948] sm:$0xff]
        %v1742 = vld [vmem:[%s1393 + $0x950] sm:$0xff]
        %v1743 = vld [vmem:[%s1393 + $0x958] sm:$0xff]
        %v1744 = vld [vmem:[%s1393 + $0x960] sm:$0xff]
        %v1745 = vld [vmem:[%s1393 + $0x968] sm:$0xff]
        %v1746 = vld [vmem:[%s1393 + $0x970] sm:$0xff]
        %v1747 = vld [vmem:[%s1393 + $0x978] sm:$0xff]
        %v1748 = vld [vmem:[%s1393 + $0x980] sm:$0xff]
        %v1749 = vld [vmem:[%s1393 + $0x988] sm:$0xff]
        %v1750 = vld [vmem:[%s1393 + $0x990] sm:$0xff]
        %v1751 = vld [vmem:[%s1393 + $0x998] sm:$0xff]
        %v1752 = vld [vmem:[%s1393 + $0x9a0] sm:$0xff]
        %v1753 = vld [vmem:[%s1393 + $0x9a8] sm:$0xff]
        %v1754 = vld [vmem:[%s1393 + $0x9b0] sm:$0xff]
        %v1755 = vld [vmem:[%s1393 + $0x9b8] sm:$0xff]
        %v1756 = vld [vmem:[%s1393 + $0x9c0] sm:$0xff]
        %v1757 = vld [vmem:[%s1393 + $0x9c8] sm:$0xff]
        %v1758 = vld [vmem:[%s1393 + $0x9d0] sm:$0xff]
        %v1759 = vld [vmem:[%s1393 + $0x9d8] sm:$0xff]
        %v1760 = vld [vmem:[%s1393 + $0x9e0] sm:$0xff]
        %v1761 = vld [vmem:[%s1393 + $0x9e8] sm:$0xff]
        %v1762 = vld [vmem:[%s1393 + $0x9f0] sm:$0xff]
        %v1763 = vld [vmem:[%s1393 + $0x9f8] sm:$0xff]
        %v1764 = vld [vmem:[%s1393 + $0xa00] sm:$0xff]
        %v1765 = vld [vmem:[%s1393 + $0xa08] sm:$0xff]
        %v1766 = vld [vmem:[%s1393 + $0xa10] sm:$0xff]
        %v1767 = vld [vmem:[%s1393 + $0xa18] sm:$0xff]
        %v1768 = vld [vmem:[%s1393 + $0xa20] sm:$0xff]
        %v1769 = vld [vmem:[%s1393 + $0xa28] sm:$0xff]
        %v1770 = vld [vmem:[%s1393 + $0xa30] sm:$0xff]
        %v1771 = vld [vmem:[%s1393 + $0xa38] sm:$0xff]
        %v1772 = vld [vmem:[%s1393 + $0xa40] sm:$0xff]
        %v1773 = vld [vmem:[%s1393 + $0xa48] sm:$0xff]
        %v1774 = vld [vmem:[%s1393 + $0xa50] sm:$0xff]
        %v1775 = vld [vmem:[%s1393 + $0xa58] sm:$0xff]
        %v1776 = vld [vmem:[%s1393 + $0xa60] sm:$0xff]
        %v1777 = vld [vmem:[%s1393 + $0xa68] sm:$0xff]
        %v1778 = vld [vmem:[%s1393 + $0xa70] sm:$0xff]
        %v1779 = vld [vmem:[%s1393 + $0xa78] sm:$0xff]
        %v1780 = vld [vmem:[%s1393 + $0xa80] sm:$0xff]
        %v1781 = vld [vmem:[%s1393 + $0xa88] sm:$0xff]
        %v1782 = vld [vmem:[%s1393 + $0xa90] sm:$0xff]
        %v1783 = vld [vmem:[%s1393 + $0xa98] sm:$0xff]
        %v1784 = vld [vmem:[%s1393 + $0xaa0] sm:$0xff]
        %v1785 = vld [vmem:[%s1393 + $0xaa8] sm:$0xff]
        %v1786 = vld [vmem:[%s1393 + $0xab0] sm:$0xff]
        %v1787 = vld [vmem:[%s1393 + $0xab8] sm:$0xff]
        %v1788 = vld [vmem:[%s1393 + $0xac0] sm:$0xff]
        %v1789 = vld [vmem:[%s1393 + $0xac8] sm:$0xff]
        %v1790 = vld [vmem:[%s1393 + $0xad0] sm:$0xff]
        %v1791 = vld [vmem:[%s1393 + $0xad8] sm:$0xff]
        %v1792 = vld [vmem:[%s1393 + $0xae0] sm:$0xff]
        %v1793 = vld [vmem:[%s1393 + $0xae8] sm:$0xff]
        %v1794 = vld [vmem:[%s1393 + $0xaf0] sm:$0xff]
        %v1795 = vld [vmem:[%s1393 + $0xaf8] sm:$0xff]
        %v1796 = vld [vmem:[%s1393 + $0xb00] sm:$0xff]
        %v1797 = vld [vmem:[%s1393 + $0xb08] sm:$0xff]
        %v1798 = vld [vmem:[%s1393 + $0xb10] sm:$0xff]
        %v1799 = vld [vmem:[%s1393 + $0xb18] sm:$0xff]
        %v1800 = vld [vmem:[%s1393 + $0xb20] sm:$0xff]
        %v1801 = vld [vmem:[%s1393 + $0xb28] sm:$0xff]
        %v1802 = vld [vmem:[%s1393 + $0xb30] sm:$0xff]
        %v1803 = vld [vmem:[%s1393 + $0xb38] sm:$0xff]
        %v1804 = vld [vmem:[%s1393 + $0xb40] sm:$0xff]
        %v1805 = vld [vmem:[%s1393 + $0xb48] sm:$0xff]
        %v1806 = vld [vmem:[%s1393 + $0xb50] sm:$0xff]
        %v1807 = vld [vmem:[%s1393 + $0xb58] sm:$0xff]
        %v1808 = vld [vmem:[%s1393 + $0xb60] sm:$0xff]
        %v1809 = vld [vmem:[%s1393 + $0xb68] sm:$0xff]
        %v1810 = vld [vmem:[%s1393 + $0xb70] sm:$0xff]
        %v1811 = vld [vmem:[%s1393 + $0xb78] sm:$0xff]
        %v1812 = vld [vmem:[%s1393 + $0xb80] sm:$0xff]
        %v1813 = vld [vmem:[%s1393 + $0xb88] sm:$0xff]
        %v1814 = vld [vmem:[%s1393 + $0xb90] sm:$0xff]
        %v1815 = vld [vmem:[%s1393 + $0xb98] sm:$0xff]
        %v1816 = vld [vmem:[%s1393 + $0xba0] sm:$0xff]
        %v1817 = vld [vmem:[%s1393 + $0xba8] sm:$0xff]
        %v1818 = vld [vmem:[%s1393 + $0xbb0] sm:$0xff]
        %v1819 = vld [vmem:[%s1393 + $0xbb8] sm:$0xff]
        %v1820 = vld [vmem:[%s1393 + $0xbc0] sm:$0xff]
        %v1821 = vld [vmem:[%s1393 + $0xbc8] sm:$0xff]
        %v1822 = vld [vmem:[%s1393 + $0xbd0] sm:$0xff]
        %v1823 = vld [vmem:[%s1393 + $0xbd8] sm:$0xff]
        %v1824 = vld [vmem:[%s1393 + $0xbe0] sm:$0xff]
        %v1825 = vld [vmem:[%s1393 + $0xbe8] sm:$0xff]
        %v1826 = vld [vmem:[%s1393 + $0xbf0] sm:$0xff]
        %v1827 = vld [vmem:[%s1393 + $0xbf8] sm:$0xff]
        %v1828 = vld [vmem:[%s1393 + $0xc00] sm:$0xff]
        %v1829 = vld [vmem:[%s1393 + $0xc08] sm:$0xff]
        %v1830 = vld [vmem:[%s1393 + $0xc10] sm:$0xff]
        %v1831 = vld [vmem:[%s1393 + $0xc18] sm:$0xff]
        %v1832 = vld [vmem:[%s1393 + $0xc20] sm:$0xff]
        %v1833 = vld [vmem:[%s1393 + $0xc28] sm:$0xff]
        %v1834 = vld [vmem:[%s1393 + $0xc30] sm:$0xff]
        %v1835 = vld [vmem:[%s1393 + $0xc38] sm:$0xff]
        %v1836 = vld [vmem:[%s1393 + $0xc40] sm:$0xff]
        %v1837 = vld [vmem:[%s1393 + $0xc48] sm:$0xff]
        %v1838 = vld [vmem:[%s1393 + $0xc50] sm:$0xff]
        %v1839 = vld [vmem:[%s1393 + $0xc58] sm:$0xff]
        %v1840 = vld [vmem:[%s1393 + $0xc60] sm:$0xff]
        %v1841 = vld [vmem:[%s1393 + $0xc68] sm:$0xff]
        %v1842 = vld [vmem:[%s1393 + $0xc70] sm:$0xff]
        %v1843 = vld [vmem:[%s1393 + $0xc78] sm:$0xff]
        %v1844 = vld [vmem:[%s1393 + $0xc80] sm:$0xff]
        %v1845 = vld [vmem:[%s1393 + $0xc88] sm:$0xff]
        %v1846 = vld [vmem:[%s1393 + $0xc90] sm:$0xff]
        %v1847 = vld [vmem:[%s1393 + $0xc98] sm:$0xff]
        %v1848 = vld [vmem:[%s1393 + $0xca0] sm:$0xff]
        %v1849 = vld [vmem:[%s1393 + $0xca8] sm:$0xff]
        %v1850 = vld [vmem:[%s1393 + $0xcb0] sm:$0xff]
        %v1851 = vld [vmem:[%s1393 + $0xcb8] sm:$0xff]
        %v1852 = vld [vmem:[%s1393 + $0xcc0] sm:$0xff]
        %v1853 = vld [vmem:[%s1393 + $0xcc8] sm:$0xff]
        %v1854 = vld [vmem:[%s1393 + $0xcd0] sm:$0xff]
        %v1855 = vld [vmem:[%s1393 + $0xcd8] sm:$0xff]
        %v1856 = vld [vmem:[%s1393 + $0xce0] sm:$0xff]
        %v1857 = vld [vmem:[%s1393 + $0xce8] sm:$0xff]
        %v1858 = vld [vmem:[%s1393 + $0xcf0] sm:$0xff]
        %v1859 = vld [vmem:[%s1393 + $0xcf8] sm:$0xff]
        %v1860 = vld [vmem:[%s1393 + $0xd00] sm:$0xff]
        %v1861 = vld [vmem:[%s1393 + $0xd08] sm:$0xff]
        %v1862 = vld [vmem:[%s1393 + $0xd10] sm:$0xff]
        %v1863 = vld [vmem:[%s1393 + $0xd18] sm:$0xff]
        %v1864 = vld [vmem:[%s1393 + $0xd20] sm:$0xff]
        %v1865 = vld [vmem:[%s1393 + $0xd28] sm:$0xff]
        %v1866 = vld [vmem:[%s1393 + $0xd30] sm:$0xff]
        %v1867 = vld [vmem:[%s1393 + $0xd38] sm:$0xff]
        %v1868 = vld [vmem:[%s1393 + $0xd40] sm:$0xff]
        %v1869 = vld [vmem:[%s1393 + $0xd48] sm:$0xff]
        %v1870 = vld [vmem:[%s1393 + $0xd50] sm:$0xff]
        %v1871 = vld [vmem:[%s1393 + $0xd58] sm:$0xff]
        %v1872 = vld [vmem:[%s1393 + $0xd60] sm:$0xff]
        %v1873 = vld [vmem:[%s1393 + $0xd68] sm:$0xff]
        %v1874 = vld [vmem:[%s1393 + $0xd70] sm:$0xff]
        %v1875 = vld [vmem:[%s1393 + $0xd78] sm:$0xff]
        %v1876 = vld [vmem:[%s1393 + $0xd80] sm:$0xff]
        %v1877 = vld [vmem:[%s1393 + $0xd88] sm:$0xff]
        %v1878 = vld [vmem:[%s1393 + $0xd90] sm:$0xff]
        %v1879 = vld [vmem:[%s1393 + $0xd98] sm:$0xff]
        %v1880 = vld [vmem:[%s1393 + $0xda0] sm:$0xff]
        %v1881 = vld [vmem:[%s1393 + $0xda8] sm:$0xff]
        %v1882 = vld [vmem:[%s1393 + $0xdb0] sm:$0xff]
        %v1883 = vld [vmem:[%s1393 + $0xdb8] sm:$0xff]
        %v1884 = vld [vmem:[%s1393 + $0xdc0] sm:$0xff]
        %v1885 = vld [vmem:[%s1393 + $0xdc8] sm:$0xff]
        %v1886 = vld [vmem:[%s1393 + $0xdd0] sm:$0xff]
        %v1887 = vld [vmem:[%s1393 + $0xdd8] sm:$0xff]
        %v1888 = vld [vmem:[%s1393 + $0xde0] sm:$0xff]
        %v1889 = vld [vmem:[%s1393 + $0xde8] sm:$0xff]
        %v1890 = vld [vmem:[%s1393 + $0xdf0] sm:$0xff]
        %v1891 = vld [vmem:[%s1393 + $0xdf8] sm:$0xff]
        %v1892 = vld [vmem:[%s1393 + $0xe00] sm:$0xff]
        %v1893 = vld [vmem:[%s1393 + $0xe08] sm:$0xff]
        %v1894 = vld [vmem:[%s1393 + $0xe10] sm:$0xff]
        %v1895 = vld [vmem:[%s1393 + $0xe18] sm:$0xff]
        %v1896 = vld [vmem:[%s1393 + $0xe20] sm:$0xff]
        %v1897 = vld [vmem:[%s1393 + $0xe28] sm:$0xff]
        %v1898 = vld [vmem:[%s1393 + $0xe30] sm:$0xff]
        %v1899 = vld [vmem:[%s1393 + $0xe38] sm:$0xff]
        %v1900 = vld [vmem:[%s1393 + $0xe40] sm:$0xff]
        %v1901 = vld [vmem:[%s1393 + $0xe48] sm:$0xff]
        %v1902 = vld [vmem:[%s1393 + $0xe50] sm:$0xff]
        %v1903 = vld [vmem:[%s1393 + $0xe58] sm:$0xff]
        %v1904 = vld [vmem:[%s1393 + $0xe60] sm:$0xff]
        %v1905 = vld [vmem:[%s1393 + $0xe68] sm:$0xff]
        %v1906 = vld [vmem:[%s1393 + $0xe70] sm:$0xff]
        %v1907 = vld [vmem:[%s1393 + $0xe78] sm:$0xff]
        %v1908 = vld [vmem:[%s1393 + $0xe80] sm:$0xff]
        %v1909 = vld [vmem:[%s1393 + $0xe88] sm:$0xff]
        %v1910 = vld [vmem:[%s1393 + $0xe90] sm:$0xff]
        %v1911 = vld [vmem:[%s1393 + $0xe98] sm:$0xff]
        %v1912 = vld [vmem:[%s1393 + $0xea0] sm:$0xff]
        %v1913 = vld [vmem:[%s1393 + $0xea8] sm:$0xff]
        %v1914 = vld [vmem:[%s1393 + $0xeb0] sm:$0xff]
        %v1915 = vld [vmem:[%s1393 + $0xeb8] sm:$0xff]
        %v1916 = vld [vmem:[%s1393 + $0xec0] sm:$0xff]
        %v1917 = vld [vmem:[%s1393 + $0xec8] sm:$0xff]
        %v1918 = vld [vmem:[%s1393 + $0xed0] sm:$0xff]
        %v1919 = vld [vmem:[%s1393 + $0xed8] sm:$0xff]
        %v1920 = vld [vmem:[%s1393 + $0xee0] sm:$0xff]
        %v1921 = vld [vmem:[%s1393 + $0xee8] sm:$0xff]
        %v1922 = vld [vmem:[%s1393 + $0xef0] sm:$0xff]
        %v1923 = vld [vmem:[%s1393 + $0xef8] sm:$0xff]
        %v1924 = vld [vmem:[%s1393 + $0xf00] sm:$0xff]
        %v1925 = vld [vmem:[%s1393 + $0xf08] sm:$0xff]
        %v1926 = vld [vmem:[%s1393 + $0xf10] sm:$0xff]
        %v1927 = vld [vmem:[%s1393 + $0xf18] sm:$0xff]
        %v1928 = vld [vmem:[%s1393 + $0xf20] sm:$0xff]
        %v1929 = vld [vmem:[%s1393 + $0xf28] sm:$0xff]
        %v1930 = vld [vmem:[%s1393 + $0xf30] sm:$0xff]
        %v1931 = vld [vmem:[%s1393 + $0xf38] sm:$0xff]
        %v1932 = vld [vmem:[%s1393 + $0xf40] sm:$0xff]
        %v1933 = vld [vmem:[%s1393 + $0xf48] sm:$0xff]
        %v1934 = vld [vmem:[%s1393 + $0xf50] sm:$0xff]
        %v1935 = vld [vmem:[%s1393 + $0xf58] sm:$0xff]
        %v1936 = vld [vmem:[%s1393 + $0xf60] sm:$0xff]
        %v1937 = vld [vmem:[%s1393 + $0xf68] sm:$0xff]
        %v1938 = vld [vmem:[%s1393 + $0xf70] sm:$0xff]
        %v1939 = vld [vmem:[%s1393 + $0xf78] sm:$0xff]
        %v1940 = vld [vmem:[%s1393 + $0xf80] sm:$0xff]
        %v1941 = vld [vmem:[%s1393 + $0xf88] sm:$0xff]
        %v1942 = vld [vmem:[%s1393 + $0xf90] sm:$0xff]
        %v1943 = vld [vmem:[%s1393 + $0xf98] sm:$0xff]
        %v1944 = vld [vmem:[%s1393 + $0xfa0] sm:$0xff]
        %v1945 = vld [vmem:[%s1393 + $0xfa8] sm:$0xff]
        %v1946 = vld [vmem:[%s1393 + $0xfb0] sm:$0xff]
        %v1947 = vld [vmem:[%s1393 + $0xfb8] sm:$0xff]
        %v1948 = vld [vmem:[%s1393 + $0xfc0] sm:$0xff]
        %v1949 = vld [vmem:[%s1393 + $0xfc8] sm:$0xff]
        %v1950 = vld [vmem:[%s1393 + $0xfd0] sm:$0xff]
        %v1951 = vld [vmem:[%s1393 + $0xfd8] sm:$0xff]
        %v1952 = vld [vmem:[%s1393 + $0xfe0] sm:$0xff]
        %v1953 = vld [vmem:[%s1393 + $0xfe8] sm:$0xff]
        %v1954 = vld [vmem:[%s1393 + $0xff0] sm:$0xff]
        %v1955 = vld [vmem:[%s1393 + $0xff8] sm:$0xff]
        %v1956 = vld [vmem:[%s1393 + $0x1000] sm:$0xff]
        %v1957 = vld [vmem:[%s1393 + $0x1008] sm:$0xff]
        %v1958 = vld [vmem:[%s1393 + $0x1010] sm:$0xff]
        %v1959 = vld [vmem:[%s1393 + $0x1018] sm:$0xff]
        %v1960 = vld [vmem:[%s1393 + $0x1020] sm:$0xff]
        %v1961 = vld [vmem:[%s1393 + $0x1028] sm:$0xff]
        %v1962 = vld [vmem:[%s1393 + $0x1030] sm:$0xff]
        %v1963 = vld [vmem:[%s1393 + $0x1038] sm:$0xff]
        %v1964 = vld [vmem:[%s1393 + $0x1040] sm:$0xff]
        %v1965 = vld [vmem:[%s1393 + $0x1048] sm:$0xff]
        %v1966 = vld [vmem:[%s1393 + $0x1050] sm:$0xff]
        %v1967 = vld [vmem:[%s1393 + $0x1058] sm:$0xff]
        %v1968 = vld [vmem:[%s1393 + $0x1060] sm:$0xff]
        %v1969 = vld [vmem:[%s1393 + $0x1068] sm:$0xff]
        %v1970 = vld [vmem:[%s1393 + $0x1070] sm:$0xff]
        %v1971 = vld [vmem:[%s1393 + $0x1078] sm:$0xff]
        %v1972 = vld [vmem:[%s1393 + $0x1080] sm:$0xff]
        %v1973 = vld [vmem:[%s1393 + $0x1088] sm:$0xff]
        %v1974 = vld [vmem:[%s1393 + $0x1090] sm:$0xff]
        %v1975 = vld [vmem:[%s1393 + $0x1098] sm:$0xff]
        %v1976 = vld [vmem:[%s1393 + $0x10a0] sm:$0xff]
        %v1977 = vld [vmem:[%s1393 + $0x10a8] sm:$0xff]
        %v1978 = vld [vmem:[%s1393 + $0x10b0] sm:$0xff]
        %v1979 = vld [vmem:[%s1393 + $0x10b8] sm:$0xff]
        %v1980 = vld [vmem:[%s1393 + $0x10c0] sm:$0xff]
        %v1981 = vld [vmem:[%s1393 + $0x10c8] sm:$0xff]
        %v1982 = vld [vmem:[%s1393 + $0x10d0] sm:$0xff]
        %v1983 = vld [vmem:[%s1393 + $0x10d8] sm:$0xff]
        %v1984 = vld [vmem:[%s1393 + $0x10e0] sm:$0xff]
        %v1985 = vld [vmem:[%s1393 + $0x10e8] sm:$0xff]
        %v1986 = vld [vmem:[%s1393 + $0x10f0] sm:$0xff]
        %v1987 = vld [vmem:[%s1393 + $0x10f8] sm:$0xff]
        %v1988 = vld [vmem:[%s1393 + $0x1100] sm:$0xff]
        %v1989 = vld [vmem:[%s1393 + $0x1108] sm:$0xff]
        %v1990 = vld [vmem:[%s1393 + $0x1110] sm:$0xff]
        %v1991 = vld [vmem:[%s1393 + $0x1118] sm:$0xff]
        %v1992 = vld [vmem:[%s1393 + $0x1120] sm:$0xff]
        %v1993 = vld [vmem:[%s1393 + $0x1128] sm:$0xff]
        %v1994 = vld [vmem:[%s1393 + $0x1130] sm:$0xff]
        %v1995 = vld [vmem:[%s1393 + $0x1138] sm:$0xff]
        %v1996 = vld [vmem:[%s1393 + $0x1140] sm:$0xff]
        %v1997 = vld [vmem:[%s1393 + $0x1148] sm:$0xff]
        %v1998 = vld [vmem:[%s1393 + $0x1150] sm:$0xff]
        %v1999 = vld [vmem:[%s1393 + $0x1158] sm:$0xff]
        %v2000 = vld [vmem:[%s1393 + $0x1160] sm:$0xff]
        %v2001 = vld [vmem:[%s1393 + $0x1168] sm:$0xff]
        %v2002 = vld [vmem:[%s1393 + $0x1170] sm:$0xff]
        %v2003 = vld [vmem:[%s1393 + $0x1178] sm:$0xff]
        %v2004 = vld [vmem:[%s1393 + $0x1180] sm:$0xff]
        %v2005 = vld [vmem:[%s1393 + $0x1188] sm:$0xff]
        %v2006 = vld [vmem:[%s1393 + $0x1190] sm:$0xff]
        %v2007 = vld [vmem:[%s1393 + $0x1198] sm:$0xff]
        %v2008 = vld [vmem:[%s1393 + $0x11a0] sm:$0xff]
        %v2009 = vld [vmem:[%s1393 + $0x11a8] sm:$0xff]
        %v2010 = vld [vmem:[%s1393 + $0x11b0] sm:$0xff]
        %v2011 = vld [vmem:[%s1393 + $0x11b8] sm:$0xff]
        %v2012 = vld [vmem:[%s1393 + $0x11c0] sm:$0xff]
        %v2013 = vld [vmem:[%s1393 + $0x11c8] sm:$0xff]
        %v2014 = vld [vmem:[%s1393 + $0x11d0] sm:$0xff]
        %v2015 = vld [vmem:[%s1393 + $0x11d8] sm:$0xff]
        %v2016 = vld [vmem:[%s1393 + $0x11e0] sm:$0xff]
        %v2017 = vld [vmem:[%s1393 + $0x11e8] sm:$0xff]
        %v2018 = vld [vmem:[%s1393 + $0x11f0] sm:$0xff]
        %v2019 = vld [vmem:[%s1393 + $0x11f8] sm:$0xff]
        %v2020 = vld [vmem:[%s2] sm:$0xff]
        %2022 = vset.pattern.permute.xlu0 0
        %2023 = vperm.xlu0 %2022, %v2020
        %v2024 = vpop.permute.xlu0 %2023
        %v2029 = vunpack.c.l.b16 %v1441
        %v2030 = vunpack.c.h.b16 %v1441
        %v2031 = vunpack.c.l.b16 %v1442
        %v2032 = vunpack.c.h.b16 %v1442
        %v2033 = vunpack.c.l.b16 %v1443
        %v2034 = vpack.c.b16 %v2029, %v2029
        %v2035 = vpack.c.b16 %v2030, %v2030
        %v2036 = vpack.c.b16 %v2031, %v2031
        %v2037 = vpack.c.b16 %v2032, %v2032
        %v2038 = vpack.c.b16 %v2033, %v2033
        %v2619 = vunpack.c.l.b16 %v1444
        %v2620 = vunpack.c.h.b16 %v1444
        %v2621 = vunpack.c.l.b16 %v1445
        %v2622 = vunpack.c.h.b16 %v1445
        %v2623 = vunpack.c.l.b16 %v1446
        %v2624 = vunpack.c.h.b16 %v1446
        %v2625 = vunpack.c.l.b16 %v1447
        %v2626 = vunpack.c.h.b16 %v1447
        %v2627 = vunpack.c.l.b16 %v1448
        %v2628 = vunpack.c.h.b16 %v1448
        %v2629 = vunpack.c.l.b16 %v1449
        %v2630 = vunpack.c.h.b16 %v1449
        %v2631 = vunpack.c.l.b16 %v1450
        %v2632 = vunpack.c.h.b16 %v1450
        %v2633 = vunpack.c.l.b16 %v1451
        %v2634 = vunpack.c.h.b16 %v1451
        %v2635 = vunpack.c.l.b16 %v1452
        %v2636 = vunpack.c.h.b16 %v1452
        %v2637 = vunpack.c.l.b16 %v1453
        %v2638 = vunpack.c.h.b16 %v1453
        %v2639 = vunpack.c.l.b16 %v1454
        %v2640 = vunpack.c.h.b16 %v1454
        %v2641 = vunpack.c.l.b16 %v1455
        %v2642 = vunpack.c.h.b16 %v1455
        %v2643 = vunpack.c.l.b16 %v1456
        %v2644 = vunpack.c.h.b16 %v1456
        %v2645 = vunpack.c.l.b16 %v1457
        %v2646 = vunpack.c.h.b16 %v1457
        %v2647 = vunpack.c.l.b16 %v1458
        %v2648 = vunpack.c.h.b16 %v1458
        %v2649 = vunpack.c.l.b16 %v1459
        %v2650 = vunpack.c.h.b16 %v1459
        %v2651 = vunpack.c.l.b16 %v1460
        %v2652 = vunpack.c.h.b16 %v1460
        %v2653 = vunpack.c.l.b16 %v1461
        %v2654 = vunpack.c.h.b16 %v1461
        %v2655 = vunpack.c.l.b16 %v1462
        %v2656 = vunpack.c.h.b16 %v1462
        %v2657 = vunpack.c.l.b16 %v1463
        %v2658 = vunpack.c.h.b16 %v1463
        %v2659 = vunpack.c.l.b16 %v1464
        %v2660 = vunpack.c.h.b16 %v1464
        %v2661 = vunpack.c.l.b16 %v1465
        %v2662 = vunpack.c.h.b16 %v1465
        %v2663 = vunpack.c.l.b16 %v1466
        %v2664 = vunpack.c.h.b16 %v1466
        %v2665 = vunpack.c.l.b16 %v1467
        %v2666 = vunpack.c.h.b16 %v1467
        %v2667 = vunpack.c.l.b16 %v1468
        %v2668 = vunpack.c.h.b16 %v1468
        %v2669 = vunpack.c.l.b16 %v1469
        %v2670 = vunpack.c.h.b16 %v1469
        %v2671 = vunpack.c.l.b16 %v1470
        %v2672 = vunpack.c.h.b16 %v1470
        %v2673 = vunpack.c.l.b16 %v1471
        %v2674 = vunpack.c.h.b16 %v1471
        %v2675 = vunpack.c.l.b16 %v1472
        %v2676 = vunpack.c.h.b16 %v1472
        %v2677 = vunpack.c.l.b16 %v1473
        %v2678 = vunpack.c.h.b16 %v1473
        %v2679 = vunpack.c.l.b16 %v1474
        %v2680 = vunpack.c.h.b16 %v1474
        %v2681 = vunpack.c.l.b16 %v1475
        %v2682 = vunpack.c.h.b16 %v1475
        %v2683 = vunpack.c.l.b16 %v1476
        %v2684 = vunpack.c.h.b16 %v1476
        %v2685 = vunpack.c.l.b16 %v1477
        %v2686 = vunpack.c.h.b16 %v1477
        %v2687 = vunpack.c.l.b16 %v1478
        %v2688 = vunpack.c.h.b16 %v1478
        %v2689 = vunpack.c.l.b16 %v1479
        %v2690 = vunpack.c.h.b16 %v1479
        %v2691 = vunpack.c.l.b16 %v1480
        %v2692 = vunpack.c.h.b16 %v1480
        %v2693 = vunpack.c.l.b16 %v1481
        %v2694 = vunpack.c.h.b16 %v1481
        %v2695 = vunpack.c.l.b16 %v1482
        %v2696 = vunpack.c.h.b16 %v1482
        %v2697 = vunpack.c.l.b16 %v1483
        %v2698 = vunpack.c.h.b16 %v1483
        %v2699 = vunpack.c.l.b16 %v1484
        %v2700 = vunpack.c.h.b16 %v1484
        %v2701 = vunpack.c.l.b16 %v1485
        %v2702 = vunpack.c.h.b16 %v1485
        %v2703 = vunpack.c.l.b16 %v1486
        %v2704 = vunpack.c.h.b16 %v1486
        %v2705 = vunpack.c.l.b16 %v1487
        %v2706 = vunpack.c.h.b16 %v1487
        %v2707 = vunpack.c.l.b16 %v1488
        %v2708 = vunpack.c.h.b16 %v1488
        %v2709 = vunpack.c.l.b16 %v1489
        %v2710 = vunpack.c.h.b16 %v1489
        %v2711 = vunpack.c.l.b16 %v1490
        %v2712 = vunpack.c.h.b16 %v1490
        %v2713 = vunpack.c.l.b16 %v1491
        %v2714 = vunpack.c.h.b16 %v1491
        %v2715 = vunpack.c.l.b16 %v1492
        %v2716 = vunpack.c.h.b16 %v1492
        %v2717 = vunpack.c.l.b16 %v1493
        %v2718 = vunpack.c.h.b16 %v1493
        %v2719 = vunpack.c.l.b16 %v1494
        %v2720 = vunpack.c.h.b16 %v1494
        %v2721 = vunpack.c.l.b16 %v1495
        %v2722 = vunpack.c.h.b16 %v1495
        %v2723 = vunpack.c.l.b16 %v1496
        %v2724 = vunpack.c.h.b16 %v1496
        %v2725 = vunpack.c.l.b16 %v1497
        %v2726 = vunpack.c.h.b16 %v1497
        %v2727 = vunpack.c.l.b16 %v1498
        %v2728 = vunpack.c.h.b16 %v1498
        %v2729 = vunpack.c.l.b16 %v1499
        %v2730 = vunpack.c.h.b16 %v1499
        %v2731 = vunpack.c.l.b16 %v1500
        %v2732 = vunpack.c.h.b16 %v1500
        %v2733 = vunpack.c.l.b16 %v1501
        %v2734 = vunpack.c.h.b16 %v1501
        %v2735 = vunpack.c.l.b16 %v1502
        %v2736 = vunpack.c.h.b16 %v1502
        %v2737 = vunpack.c.l.b16 %v1503
        %v2738 = vunpack.c.h.b16 %v1503
        %v2739 = vunpack.c.l.b16 %v1504
        %v2740 = vunpack.c.h.b16 %v1504
        %v2741 = vunpack.c.l.b16 %v1505
        %v2742 = vunpack.c.h.b16 %v1505
        %v2743 = vunpack.c.l.b16 %v1506
        %v2744 = vunpack.c.h.b16 %v1506
        %v2745 = vunpack.c.l.b16 %v1507
        %v2746 = vunpack.c.h.b16 %v1507
        %v2747 = vunpack.c.l.b16 %v1508
        %v2748 = vunpack.c.h.b16 %v1508
        %v2749 = vunpack.c.l.b16 %v1509
        %v2750 = vunpack.c.h.b16 %v1509
        %v2751 = vunpack.c.l.b16 %v1510
        %v2752 = vunpack.c.h.b16 %v1510
        %v2753 = vunpack.c.l.b16 %v1511
        %v2754 = vunpack.c.h.b16 %v1511
        %v2755 = vunpack.c.l.b16 %v1512
        %v2756 = vunpack.c.h.b16 %v1512
        %v2757 = vunpack.c.l.b16 %v1513
        %v2758 = vunpack.c.h.b16 %v1513
        %v2759 = vunpack.c.l.b16 %v1514
        %v2760 = vunpack.c.h.b16 %v1514
        %v2761 = vunpack.c.l.b16 %v1515
        %v2762 = vunpack.c.h.b16 %v1515
        %v2763 = vunpack.c.l.b16 %v1516
        %v2764 = vunpack.c.h.b16 %v1516
        %v2765 = vunpack.c.l.b16 %v1517
        %v2766 = vunpack.c.h.b16 %v1517
        %v2767 = vunpack.c.l.b16 %v1518
        %v2768 = vunpack.c.h.b16 %v1518
        %v2769 = vunpack.c.l.b16 %v1519
        %v2770 = vunpack.c.h.b16 %v1519
        %v2771 = vunpack.c.l.b16 %v1520
        %v2772 = vunpack.c.h.b16 %v1520
        %v2773 = vunpack.c.l.b16 %v1521
        %v2774 = vunpack.c.h.b16 %v1521
        %v2775 = vunpack.c.l.b16 %v1522
        %v2776 = vunpack.c.h.b16 %v1522
        %v2777 = vunpack.c.l.b16 %v1523
        %v2778 = vunpack.c.h.b16 %v1523
        %v2779 = vunpack.c.l.b16 %v1524
        %v2780 = vunpack.c.h.b16 %v1524
        %v2781 = vunpack.c.l.b16 %v1525
        %v2782 = vunpack.c.h.b16 %v1525
        %v2783 = vunpack.c.l.b16 %v1526
        %v2784 = vunpack.c.h.b16 %v1526
        %v2785 = vunpack.c.l.b16 %v1527
        %v2786 = vunpack.c.h.b16 %v1527
        %v2787 = vunpack.c.l.b16 %v1528
        %v2788 = vunpack.c.h.b16 %v1528
        %v2789 = vunpack.c.l.b16 %v1529
        %v2790 = vunpack.c.h.b16 %v1529
        %v2791 = vunpack.c.l.b16 %v1530
        %v2792 = vunpack.c.h.b16 %v1530
        %v2793 = vunpack.c.l.b16 %v1531
        %v2794 = vunpack.c.h.b16 %v1531
        %v2795 = vunpack.c.l.b16 %v1532
        %v2796 = vunpack.c.h.b16 %v1532
        %v2797 = vunpack.c.l.b16 %v1533
        %v2798 = vunpack.c.h.b16 %v1533
        %v2799 = vunpack.c.l.b16 %v1534
        %v2800 = vunpack.c.h.b16 %v1534
        %v2801 = vunpack.c.l.b16 %v1535
        %v2802 = vunpack.c.h.b16 %v1535
        %v2803 = vunpack.c.l.b16 %v1536
        %v2804 = vunpack.c.h.b16 %v1536
        %v2805 = vunpack.c.l.b16 %v1537
        %v2806 = vunpack.c.h.b16 %v1537
        %v2807 = vunpack.c.l.b16 %v1538
        %v2808 = vunpack.c.h.b16 %v1538
        %v2809 = vunpack.c.l.b16 %v1539
        %v2810 = vunpack.c.h.b16 %v1539
        %v2811 = vunpack.c.l.b16 %v1540
        %v2812 = vunpack.c.h.b16 %v1540
        %v2813 = vunpack.c.l.b16 %v1541
        %v2814 = vunpack.c.h.b16 %v1541
        %v2815 = vunpack.c.l.b16 %v1542
        %v2816 = vunpack.c.h.b16 %v1542
        %v2817 = vunpack.c.l.b16 %v1543
        %v2818 = vunpack.c.h.b16 %v1543
        %v2819 = vunpack.c.l.b16 %v1544
        %v2820 = vunpack.c.h.b16 %v1544
        %v2821 = vunpack.c.l.b16 %v1545
        %v2822 = vunpack.c.h.b16 %v1545
        %v2823 = vunpack.c.l.b16 %v1546
        %v2824 = vunpack.c.h.b16 %v1546
        %v2825 = vunpack.c.l.b16 %v1547
        %v2826 = vunpack.c.h.b16 %v1547
        %v2827 = vunpack.c.l.b16 %v1548
        %v2828 = vunpack.c.h.b16 %v1548
        %v2829 = vunpack.c.l.b16 %v1549
        %v2830 = vunpack.c.h.b16 %v1549
        %v2831 = vunpack.c.l.b16 %v1550
        %v2832 = vunpack.c.h.b16 %v1550
        %v2833 = vunpack.c.l.b16 %v1551
        %v2834 = vunpack.c.h.b16 %v1551
        %v2835 = vunpack.c.l.b16 %v1552
        %v2836 = vunpack.c.h.b16 %v1552
        %v2837 = vunpack.c.l.b16 %v1553
        %v2838 = vunpack.c.h.b16 %v1553
        %v2839 = vunpack.c.l.b16 %v1554
        %v2840 = vunpack.c.h.b16 %v1554
        %v2841 = vunpack.c.l.b16 %v1555
        %v2842 = vunpack.c.h.b16 %v1555
        %v2843 = vunpack.c.l.b16 %v1556
        %v2844 = vunpack.c.h.b16 %v1556
        %v2845 = vunpack.c.l.b16 %v1557
        %v2846 = vunpack.c.h.b16 %v1557
        %v2847 = vunpack.c.l.b16 %v1558
        %v2848 = vunpack.c.h.b16 %v1558
        %v2849 = vunpack.c.l.b16 %v1559
        %v2850 = vunpack.c.h.b16 %v1559
        %v2851 = vunpack.c.l.b16 %v1560
        %v2852 = vunpack.c.h.b16 %v1560
        %v2853 = vunpack.c.l.b16 %v1561
        %v2854 = vunpack.c.h.b16 %v1561
        %v2855 = vunpack.c.l.b16 %v1562
        %v2856 = vunpack.c.h.b16 %v1562
        %v2857 = vunpack.c.l.b16 %v1563
        %v2858 = vunpack.c.h.b16 %v1563
        %v2859 = vunpack.c.l.b16 %v1564
        %v2860 = vunpack.c.h.b16 %v1564
        %v2861 = vunpack.c.l.b16 %v1565
        %v2862 = vunpack.c.h.b16 %v1565
        %v2863 = vunpack.c.l.b16 %v1566
        %v2864 = vunpack.c.h.b16 %v1566
        %v2865 = vunpack.c.l.b16 %v1567
        %v2866 = vunpack.c.h.b16 %v1567
        %v2867 = vunpack.c.l.b16 %v1568
        %v2868 = vunpack.c.h.b16 %v1568
        %v2869 = vunpack.c.l.b16 %v1569
        %v2870 = vunpack.c.h.b16 %v1569
        %v2871 = vunpack.c.l.b16 %v1570
        %v2872 = vunpack.c.h.b16 %v1570
        %v2873 = vunpack.c.l.b16 %v1571
        %v2874 = vunpack.c.h.b16 %v1571
        %v2875 = vunpack.c.l.b16 %v1572
        %v2876 = vunpack.c.h.b16 %v1572
        %v2877 = vunpack.c.l.b16 %v1573
        %v2878 = vunpack.c.h.b16 %v1573
        %v2879 = vunpack.c.l.b16 %v1574
        %v2880 = vunpack.c.h.b16 %v1574
        %v2881 = vunpack.c.l.b16 %v1575
        %v2882 = vunpack.c.h.b16 %v1575
        %v2883 = vunpack.c.l.b16 %v1576
        %v2884 = vunpack.c.h.b16 %v1576
        %v2885 = vunpack.c.l.b16 %v1577
        %v2886 = vunpack.c.h.b16 %v1577
        %v2887 = vunpack.c.l.b16 %v1578
        %v2888 = vunpack.c.h.b16 %v1578
        %v2889 = vunpack.c.l.b16 %v1579
        %v2890 = vunpack.c.h.b16 %v1579
        %v2891 = vunpack.c.l.b16 %v1580
        %v2892 = vunpack.c.h.b16 %v1580
        %v2893 = vunpack.c.l.b16 %v1581
        %v2894 = vunpack.c.h.b16 %v1581
        %v2895 = vunpack.c.l.b16 %v1582
        %v2896 = vunpack.c.h.b16 %v1582
        %v2897 = vunpack.c.l.b16 %v1583
        %v2898 = vunpack.c.h.b16 %v1583
        %v2899 = vunpack.c.l.b16 %v1584
        %v2900 = vunpack.c.h.b16 %v1584
        %v2901 = vunpack.c.l.b16 %v1585
        %v2902 = vunpack.c.h.b16 %v1585
        %v2903 = vunpack.c.l.b16 %v1586
        %v2904 = vunpack.c.h.b16 %v1586
        %v2905 = vunpack.c.l.b16 %v1587
        %v2906 = vunpack.c.h.b16 %v1587
        %v2907 = vunpack.c.l.b16 %v1588
        %v2908 = vunpack.c.h.b16 %v1588
        %v2909 = vunpack.c.l.b16 %v1589
        %v2910 = vunpack.c.h.b16 %v1589
        %v2911 = vunpack.c.l.b16 %v1590
        %v2912 = vunpack.c.h.b16 %v1590
        %v2913 = vunpack.c.l.b16 %v1591
        %v2914 = vunpack.c.h.b16 %v1591
        %v2915 = vunpack.c.l.b16 %v1592
        %v2916 = vunpack.c.h.b16 %v1592
        %v2917 = vunpack.c.l.b16 %v1593
        %v2918 = vunpack.c.h.b16 %v1593
        %v2919 = vunpack.c.l.b16 %v1594
        %v2920 = vunpack.c.h.b16 %v1594
        %v2921 = vunpack.c.l.b16 %v1595
        %v2922 = vunpack.c.h.b16 %v1595
        %v2923 = vunpack.c.l.b16 %v1596
        %v2924 = vunpack.c.h.b16 %v1596
        %v2925 = vunpack.c.l.b16 %v1597
        %v2926 = vunpack.c.h.b16 %v1597
        %v2927 = vunpack.c.l.b16 %v1598
        %v2928 = vunpack.c.h.b16 %v1598
        %v2929 = vunpack.c.l.b16 %v1599
        %v2930 = vunpack.c.h.b16 %v1599
        %v2931 = vunpack.c.l.b16 %v1600
        %v2932 = vunpack.c.h.b16 %v1600
        %v2933 = vunpack.c.l.b16 %v1601
        %v2934 = vunpack.c.h.b16 %v1601
        %v2935 = vunpack.c.l.b16 %v1602
        %v2936 = vunpack.c.h.b16 %v1602
        %v2937 = vunpack.c.l.b16 %v1603
        %v2938 = vunpack.c.h.b16 %v1603
        %v2939 = vunpack.c.l.b16 %v1604
        %v2940 = vunpack.c.h.b16 %v1604
        %v2941 = vunpack.c.l.b16 %v1605
        %v2942 = vunpack.c.h.b16 %v1605
        %v2943 = vunpack.c.l.b16 %v1606
        %v2944 = vunpack.c.h.b16 %v1606
        %v2945 = vunpack.c.l.b16 %v1607
        %v2946 = vunpack.c.h.b16 %v1607
        %v2947 = vunpack.c.l.b16 %v1608
        %v2948 = vunpack.c.h.b16 %v1608
        %v2949 = vunpack.c.l.b16 %v1609
        %v2950 = vunpack.c.h.b16 %v1609
        %v2951 = vunpack.c.l.b16 %v1610
        %v2952 = vunpack.c.h.b16 %v1610
        %v2953 = vunpack.c.l.b16 %v1611
        %v2954 = vunpack.c.h.b16 %v1611
        %v2955 = vunpack.c.l.b16 %v1612
        %v2956 = vunpack.c.h.b16 %v1612
        %v2957 = vunpack.c.l.b16 %v1613
        %v2958 = vunpack.c.h.b16 %v1613
        %v2959 = vunpack.c.l.b16 %v1614
        %v2960 = vunpack.c.h.b16 %v1614
        %v2961 = vunpack.c.l.b16 %v1615
        %v2962 = vunpack.c.h.b16 %v1615
        %v2963 = vunpack.c.l.b16 %v1616
        %v2964 = vunpack.c.h.b16 %v1616
        %v2965 = vunpack.c.l.b16 %v1617
        %v2966 = vunpack.c.h.b16 %v1617
        %v2967 = vunpack.c.l.b16 %v1618
        %v2968 = vunpack.c.h.b16 %v1618
        %v2969 = vunpack.c.l.b16 %v1619
        %v2970 = vunpack.c.h.b16 %v1619
        %v2971 = vunpack.c.l.b16 %v1620
        %v2972 = vunpack.c.h.b16 %v1620
        %v2973 = vunpack.c.l.b16 %v1621
        %v2974 = vunpack.c.h.b16 %v1621
        %v2975 = vunpack.c.l.b16 %v1622
        %v2976 = vunpack.c.h.b16 %v1622
        %v2977 = vunpack.c.l.b16 %v1623
        %v2978 = vunpack.c.h.b16 %v1623
        %v2979 = vunpack.c.l.b16 %v1624
        %v2980 = vunpack.c.h.b16 %v1624
        %v2981 = vunpack.c.l.b16 %v1625
        %v2982 = vunpack.c.h.b16 %v1625
        %v2983 = vunpack.c.l.b16 %v1626
        %v2984 = vunpack.c.h.b16 %v1626
        %v2985 = vunpack.c.l.b16 %v1627
        %v2986 = vunpack.c.h.b16 %v1627
        %v2987 = vunpack.c.l.b16 %v1628
        %v2988 = vunpack.c.h.b16 %v1628
        %v2989 = vunpack.c.l.b16 %v1629
        %v2990 = vunpack.c.h.b16 %v1629
        %v2991 = vunpack.c.l.b16 %v1630
        %v2992 = vunpack.c.h.b16 %v1630
        %v2993 = vunpack.c.l.b16 %v1631
        %v2994 = vunpack.c.h.b16 %v1631
        %v2995 = vunpack.c.l.b16 %v1632
        %v2996 = vunpack.c.h.b16 %v1632
        %v2997 = vunpack.c.l.b16 %v1633
        %v2998 = vunpack.c.h.b16 %v1633
        %v2999 = vunpack.c.l.b16 %v1634
        %v3000 = vunpack.c.h.b16 %v1634
        %v3001 = vunpack.c.l.b16 %v1635
        %v3002 = vunpack.c.h.b16 %v1635
        %v3003 = vunpack.c.l.b16 %v1636
        %v3004 = vunpack.c.h.b16 %v1636
        %v3005 = vunpack.c.l.b16 %v1637
        %v3006 = vunpack.c.h.b16 %v1637
        %v3007 = vunpack.c.l.b16 %v1638
        %v3008 = vunpack.c.h.b16 %v1638
        %v3009 = vunpack.c.l.b16 %v1639
        %v3010 = vunpack.c.h.b16 %v1639
        %v3011 = vunpack.c.l.b16 %v1640
        %v3012 = vunpack.c.h.b16 %v1640
        %v3013 = vunpack.c.l.b16 %v1641
        %v3014 = vunpack.c.h.b16 %v1641
        %v3015 = vunpack.c.l.b16 %v1642
        %v3016 = vunpack.c.h.b16 %v1642
        %v3017 = vunpack.c.l.b16 %v1643
        %v3018 = vunpack.c.h.b16 %v1643
        %v3019 = vunpack.c.l.b16 %v1644
        %v3020 = vunpack.c.h.b16 %v1644
        %v3021 = vunpack.c.l.b16 %v1645
        %v3022 = vunpack.c.h.b16 %v1645
        %v3023 = vunpack.c.l.b16 %v1646
        %v3024 = vunpack.c.h.b16 %v1646
        %v3025 = vunpack.c.l.b16 %v1647
        %v3026 = vunpack.c.h.b16 %v1647
        %v3027 = vunpack.c.l.b16 %v1648
        %v3028 = vunpack.c.h.b16 %v1648
        %v3029 = vunpack.c.l.b16 %v1649
        %v3030 = vunpack.c.h.b16 %v1649
        %v3031 = vunpack.c.l.b16 %v1650
        %v3032 = vunpack.c.h.b16 %v1650
        %v3033 = vunpack.c.l.b16 %v1651
        %v3034 = vunpack.c.h.b16 %v1651
        %v3035 = vunpack.c.l.b16 %v1652
        %v3036 = vunpack.c.h.b16 %v1652
        %v3037 = vunpack.c.l.b16 %v1653
        %v3038 = vunpack.c.h.b16 %v1653
        %v3039 = vunpack.c.l.b16 %v1654
        %v3040 = vunpack.c.h.b16 %v1654
        %v3041 = vunpack.c.l.b16 %v1655
        %v3042 = vunpack.c.h.b16 %v1655
        %v3043 = vunpack.c.l.b16 %v1656
        %v3044 = vunpack.c.h.b16 %v1656
        %v3045 = vunpack.c.l.b16 %v1657
        %v3046 = vunpack.c.h.b16 %v1657
        %v3047 = vunpack.c.l.b16 %v1658
        %v3048 = vunpack.c.h.b16 %v1658
        %v3049 = vunpack.c.l.b16 %v1659
        %v3050 = vunpack.c.h.b16 %v1659
        %v3051 = vunpack.c.l.b16 %v1660
        %v3052 = vunpack.c.h.b16 %v1660
        %v3053 = vunpack.c.l.b16 %v1661
        %v3054 = vunpack.c.h.b16 %v1661
        %v3055 = vunpack.c.l.b16 %v1662
        %v3056 = vunpack.c.h.b16 %v1662
        %v3057 = vunpack.c.l.b16 %v1663
        %v3058 = vunpack.c.h.b16 %v1663
        %v3059 = vunpack.c.l.b16 %v1664
        %v3060 = vunpack.c.h.b16 %v1664
        %v3061 = vunpack.c.l.b16 %v1665
        %v3062 = vunpack.c.h.b16 %v1665
        %v3063 = vunpack.c.l.b16 %v1666
        %v3064 = vunpack.c.h.b16 %v1666
        %v3065 = vunpack.c.l.b16 %v1667
        %v3066 = vunpack.c.h.b16 %v1667
        %v3067 = vunpack.c.l.b16 %v1668
        %v3068 = vunpack.c.h.b16 %v1668
        %v3069 = vunpack.c.l.b16 %v1669
        %v3070 = vunpack.c.h.b16 %v1669
        %v3071 = vunpack.c.l.b16 %v1670
        %v3072 = vunpack.c.h.b16 %v1670
        %v3073 = vunpack.c.l.b16 %v1671
        %v3074 = vunpack.c.h.b16 %v1671
        %v3075 = vunpack.c.l.b16 %v1672
        %v3076 = vunpack.c.h.b16 %v1672
        %v3077 = vunpack.c.l.b16 %v1673
        %v3078 = vunpack.c.h.b16 %v1673
        %v3079 = vunpack.c.l.b16 %v1674
        %v3080 = vunpack.c.h.b16 %v1674
        %v3081 = vunpack.c.l.b16 %v1675
        %v3082 = vunpack.c.h.b16 %v1675
        %v3083 = vunpack.c.l.b16 %v1676
        %v3084 = vunpack.c.h.b16 %v1676
        %v3085 = vunpack.c.l.b16 %v1677
        %v3086 = vunpack.c.h.b16 %v1677
        %v3087 = vunpack.c.l.b16 %v1678
        %v3088 = vunpack.c.h.b16 %v1678
        %v3089 = vunpack.c.l.b16 %v1679
        %v3090 = vunpack.c.h.b16 %v1679
        %v3091 = vunpack.c.l.b16 %v1680
        %v3092 = vunpack.c.h.b16 %v1680
        %v3093 = vunpack.c.l.b16 %v1681
        %v3094 = vunpack.c.h.b16 %v1681
        %v3095 = vunpack.c.l.b16 %v1682
        %v3096 = vunpack.c.h.b16 %v1682
        %v3097 = vunpack.c.l.b16 %v1683
        %v3098 = vunpack.c.h.b16 %v1683
        %v3099 = vunpack.c.l.b16 %v1684
        %v3100 = vunpack.c.h.b16 %v1684
        %v3101 = vunpack.c.l.b16 %v1685
        %v3102 = vunpack.c.h.b16 %v1685
        %v3103 = vunpack.c.l.b16 %v1686
        %v3104 = vunpack.c.h.b16 %v1686
        %v3105 = vunpack.c.l.b16 %v1687
        %v3106 = vunpack.c.h.b16 %v1687
        %v3107 = vunpack.c.l.b16 %v1688
        %v3108 = vunpack.c.h.b16 %v1688
        %v3109 = vunpack.c.l.b16 %v1689
        %v3110 = vunpack.c.h.b16 %v1689
        %v3111 = vunpack.c.l.b16 %v1690
        %v3112 = vunpack.c.h.b16 %v1690
        %v3113 = vunpack.c.l.b16 %v1691
        %v3114 = vunpack.c.h.b16 %v1691
        %v3115 = vunpack.c.l.b16 %v1692
        %v3116 = vunpack.c.h.b16 %v1692
        %v3117 = vunpack.c.l.b16 %v1693
        %v3118 = vunpack.c.h.b16 %v1693
        %v3119 = vunpack.c.l.b16 %v1694
        %v3120 = vunpack.c.h.b16 %v1694
        %v3121 = vunpack.c.l.b16 %v1695
        %v3122 = vunpack.c.h.b16 %v1695
        %v3123 = vunpack.c.l.b16 %v1696
        %v3124 = vunpack.c.h.b16 %v1696
        %v3125 = vunpack.c.l.b16 %v1697
        %v3126 = vunpack.c.h.b16 %v1697
        %v3127 = vunpack.c.l.b16 %v1698
        %v3128 = vunpack.c.h.b16 %v1698
        %v3129 = vunpack.c.l.b16 %v1699
        %v3130 = vunpack.c.h.b16 %v1699
        %v3131 = vunpack.c.l.b16 %v1700
        %v3132 = vunpack.c.h.b16 %v1700
        %v3133 = vunpack.c.l.b16 %v1701
        %v3134 = vunpack.c.h.b16 %v1701
        %v3135 = vunpack.c.l.b16 %v1702
        %v3136 = vunpack.c.h.b16 %v1702
        %v3137 = vunpack.c.l.b16 %v1703
        %v3138 = vunpack.c.h.b16 %v1703
        %v3139 = vunpack.c.l.b16 %v1704
        %v3140 = vunpack.c.h.b16 %v1704
        %v3141 = vunpack.c.l.b16 %v1705
        %v3142 = vunpack.c.h.b16 %v1705
        %v3143 = vunpack.c.l.b16 %v1706
        %v3144 = vunpack.c.h.b16 %v1706
        %v3145 = vunpack.c.l.b16 %v1707
        %v3146 = vunpack.c.h.b16 %v1707
        %v3147 = vunpack.c.l.b16 %v1708
        %v3148 = vunpack.c.h.b16 %v1708
        %v3149 = vunpack.c.l.b16 %v1709
        %v3150 = vunpack.c.h.b16 %v1709
        %v3151 = vunpack.c.l.b16 %v1710
        %v3152 = vunpack.c.h.b16 %v1710
        %v3153 = vunpack.c.l.b16 %v1711
        %v3154 = vunpack.c.h.b16 %v1711
        %v3155 = vunpack.c.l.b16 %v1712
        %v3156 = vunpack.c.h.b16 %v1712
        %v3157 = vunpack.c.l.b16 %v1713
        %v3158 = vunpack.c.h.b16 %v1713
        %v3159 = vunpack.c.l.b16 %v1714
        %v3160 = vunpack.c.h.b16 %v1714
        %v3161 = vunpack.c.l.b16 %v1715
        %v3162 = vunpack.c.h.b16 %v1715
        %v3163 = vunpack.c.l.b16 %v1716
        %v3164 = vunpack.c.h.b16 %v1716
        %v3165 = vunpack.c.l.b16 %v1717
        %v3166 = vunpack.c.h.b16 %v1717
        %v3167 = vunpack.c.l.b16 %v1718
        %v3168 = vunpack.c.h.b16 %v1718
        %v3169 = vunpack.c.l.b16 %v1719
        %v3170 = vunpack.c.h.b16 %v1719
        %v3171 = vunpack.c.l.b16 %v1720
        %v3172 = vunpack.c.h.b16 %v1720
        %v3173 = vunpack.c.l.b16 %v1721
        %v3174 = vunpack.c.h.b16 %v1721
        %v3175 = vunpack.c.l.b16 %v1722
        %v3176 = vunpack.c.h.b16 %v1722
        %v3177 = vunpack.c.l.b16 %v1723
        %v3178 = vunpack.c.h.b16 %v1723
        %v3179 = vunpack.c.l.b16 %v1724
        %v3180 = vunpack.c.h.b16 %v1724
        %v3181 = vunpack.c.l.b16 %v1725
        %v3182 = vunpack.c.h.b16 %v1725
        %v3183 = vunpack.c.l.b16 %v1726
        %v3184 = vunpack.c.h.b16 %v1726
        %v3185 = vunpack.c.l.b16 %v1727
        %v3186 = vunpack.c.h.b16 %v1727
        %v3187 = vunpack.c.l.b16 %v1728
        %v3188 = vunpack.c.h.b16 %v1728
        %v3189 = vunpack.c.l.b16 %v1729
        %v3190 = vunpack.c.h.b16 %v1729
        %v3191 = vunpack.c.l.b16 %v1730
        %v3192 = vunpack.c.h.b16 %v1730
        %v3193 = vunpack.c.l.b16 %v1731
        %v3194 = vunpack.c.h.b16 %v1731
        %v3195 = vunpack.c.l.b16 %v1732
        %v3196 = vunpack.c.h.b16 %v1732
        %v3197 = vunpack.c.l.b16 %v1733
        %v3198 = vunpack.c.h.b16 %v1733
        %v3199 = vunpack.c.l.b16 %v1734
        %v3200 = vunpack.c.h.b16 %v1734
        %v3201 = vunpack.c.l.b16 %v1735
        %v3202 = vunpack.c.h.b16 %v1735
        %v3203 = vunpack.c.l.b16 %v1736
        %v3204 = vunpack.c.h.b16 %v1736
        %v3205 = vunpack.c.l.b16 %v1737
        %v3206 = vunpack.c.h.b16 %v1737
        %v3207 = vunpack.c.l.b16 %v1738
        %v3208 = vunpack.c.h.b16 %v1738
        %v3209 = vunpack.c.l.b16 %v1739
        %v3210 = vunpack.c.h.b16 %v1739
        %v3211 = vunpack.c.l.b16 %v1740
        %v3212 = vunpack.c.h.b16 %v1740
        %v3213 = vunpack.c.l.b16 %v1741
        %v3214 = vunpack.c.h.b16 %v1741
        %v3215 = vunpack.c.l.b16 %v1742
        %v3216 = vunpack.c.h.b16 %v1742
        %v3217 = vunpack.c.l.b16 %v1743
        %v3218 = vunpack.c.h.b16 %v1743
        %v3219 = vunpack.c.l.b16 %v1744
        %v3220 = vunpack.c.h.b16 %v1744
        %v3221 = vunpack.c.l.b16 %v1745
        %v3222 = vunpack.c.h.b16 %v1745
        %v3223 = vunpack.c.l.b16 %v1746
        %v3224 = vunpack.c.h.b16 %v1746
        %v3225 = vunpack.c.l.b16 %v1747
        %v3226 = vunpack.c.h.b16 %v1747
        %v3227 = vunpack.c.l.b16 %v1748
        %v3228 = vunpack.c.h.b16 %v1748
        %v3229 = vunpack.c.l.b16 %v1749
        %v3230 = vunpack.c.h.b16 %v1749
        %v3231 = vunpack.c.l.b16 %v1750
        %v3232 = vunpack.c.h.b16 %v1750
        %v3233 = vunpack.c.l.b16 %v1751
        %v3234 = vunpack.c.h.b16 %v1751
        %v3235 = vunpack.c.l.b16 %v1752
        %v3236 = vunpack.c.h.b16 %v1752
        %v3237 = vunpack.c.l.b16 %v1753
        %v3238 = vunpack.c.h.b16 %v1753
        %v3239 = vunpack.c.l.b16 %v1754
        %v3240 = vunpack.c.h.b16 %v1754
        %v3241 = vunpack.c.l.b16 %v1755
        %v3242 = vunpack.c.h.b16 %v1755
        %v3243 = vunpack.c.l.b16 %v1756
        %v3244 = vunpack.c.h.b16 %v1756
        %v3245 = vunpack.c.l.b16 %v1757
        %v3246 = vunpack.c.h.b16 %v1757
        %v3247 = vunpack.c.l.b16 %v1758
        %v3248 = vunpack.c.h.b16 %v1758
        %v3249 = vunpack.c.l.b16 %v1759
        %v3250 = vunpack.c.h.b16 %v1759
        %v3251 = vunpack.c.l.b16 %v1760
        %v3252 = vunpack.c.h.b16 %v1760
        %v3253 = vunpack.c.l.b16 %v1761
        %v3254 = vunpack.c.h.b16 %v1761
        %v3255 = vunpack.c.l.b16 %v1762
        %v3256 = vunpack.c.h.b16 %v1762
        %v3257 = vunpack.c.l.b16 %v1763
        %v3258 = vunpack.c.h.b16 %v1763
        %v3259 = vunpack.c.l.b16 %v1764
        %v3260 = vunpack.c.h.b16 %v1764
        %v3261 = vunpack.c.l.b16 %v1765
        %v3262 = vunpack.c.h.b16 %v1765
        %v3263 = vunpack.c.l.b16 %v1766
        %v3264 = vunpack.c.h.b16 %v1766
        %v3265 = vunpack.c.l.b16 %v1767
        %v3266 = vunpack.c.h.b16 %v1767
        %v3267 = vunpack.c.l.b16 %v1768
        %v3268 = vunpack.c.h.b16 %v1768
        %v3269 = vunpack.c.l.b16 %v1769
        %v3270 = vunpack.c.h.b16 %v1769
        %v3271 = vunpack.c.l.b16 %v1770
        %v3272 = vunpack.c.h.b16 %v1770
        %v3273 = vunpack.c.l.b16 %v1771
        %v3274 = vunpack.c.h.b16 %v1771
        %v3275 = vunpack.c.l.b16 %v1772
        %v3276 = vunpack.c.h.b16 %v1772
        %v3277 = vunpack.c.l.b16 %v1773
        %v3278 = vunpack.c.h.b16 %v1773
        %v3279 = vunpack.c.l.b16 %v1774
        %v3280 = vunpack.c.h.b16 %v1774
        %v3281 = vunpack.c.l.b16 %v1775
        %v3282 = vunpack.c.h.b16 %v1775
        %v3283 = vunpack.c.l.b16 %v1776
        %v3284 = vunpack.c.h.b16 %v1776
        %v3285 = vunpack.c.l.b16 %v1777
        %v3286 = vunpack.c.h.b16 %v1777
        %v3287 = vunpack.c.l.b16 %v1778
        %v3288 = vunpack.c.h.b16 %v1778
        %v3289 = vunpack.c.l.b16 %v1779
        %v3290 = vunpack.c.h.b16 %v1779
        %v3291 = vunpack.c.l.b16 %v1780
        %v3292 = vunpack.c.h.b16 %v1780
        %v3293 = vunpack.c.l.b16 %v1781
        %v3294 = vunpack.c.h.b16 %v1781
        %v3295 = vunpack.c.l.b16 %v1782
        %v3296 = vunpack.c.h.b16 %v1782
        %v3297 = vunpack.c.l.b16 %v1783
        %v3298 = vunpack.c.h.b16 %v1783
        %v3299 = vunpack.c.l.b16 %v1784
        %v3300 = vunpack.c.h.b16 %v1784
        %v3301 = vunpack.c.l.b16 %v1785
        %v3302 = vunpack.c.h.b16 %v1785
        %v3303 = vunpack.c.l.b16 %v1786
        %v3304 = vunpack.c.h.b16 %v1786
        %v3305 = vunpack.c.l.b16 %v1787
        %v3306 = vunpack.c.h.b16 %v1787
        %v3307 = vunpack.c.l.b16 %v1788
        %v3308 = vunpack.c.h.b16 %v1788
        %v3309 = vunpack.c.l.b16 %v1789
        %v3310 = vunpack.c.h.b16 %v1789
        %v3311 = vunpack.c.l.b16 %v1790
        %v3312 = vunpack.c.h.b16 %v1790
        %v3313 = vunpack.c.l.b16 %v1791
        %v3314 = vunpack.c.h.b16 %v1791
        %v3315 = vunpack.c.l.b16 %v1792
        %v3316 = vunpack.c.h.b16 %v1792
        %v3317 = vunpack.c.l.b16 %v1793
        %v3318 = vunpack.c.h.b16 %v1793
        %v3319 = vunpack.c.l.b16 %v1794
        %v3320 = vunpack.c.h.b16 %v1794
        %v3321 = vunpack.c.l.b16 %v1795
        %v3322 = vunpack.c.h.b16 %v1795
        %v3323 = vunpack.c.l.b16 %v1796
        %v3324 = vunpack.c.h.b16 %v1796
        %v3325 = vunpack.c.l.b16 %v1797
        %v3326 = vunpack.c.h.b16 %v1797
        %v3327 = vunpack.c.l.b16 %v1798
        %v3328 = vunpack.c.h.b16 %v1798
        %v3329 = vunpack.c.l.b16 %v1799
        %v3330 = vunpack.c.h.b16 %v1799
        %v3331 = vunpack.c.l.b16 %v1800
        %v3332 = vunpack.c.h.b16 %v1800
        %v3333 = vunpack.c.l.b16 %v1801
        %v3334 = vunpack.c.h.b16 %v1801
        %v3335 = vunpack.c.l.b16 %v1802
        %v3336 = vunpack.c.h.b16 %v1802
        %v3337 = vunpack.c.l.b16 %v1803
        %v3338 = vunpack.c.h.b16 %v1803
        %v3339 = vunpack.c.l.b16 %v1804
        %v3340 = vunpack.c.h.b16 %v1804
        %v3341 = vunpack.c.l.b16 %v1805
        %v3342 = vunpack.c.h.b16 %v1805
        %v3343 = vunpack.c.l.b16 %v1806
        %v3344 = vunpack.c.h.b16 %v1806
        %v3345 = vunpack.c.l.b16 %v1807
        %v3346 = vunpack.c.h.b16 %v1807
        %v3347 = vunpack.c.l.b16 %v1808
        %v3348 = vunpack.c.h.b16 %v1808
        %v3349 = vunpack.c.l.b16 %v1809
        %v3350 = vunpack.c.h.b16 %v1809
        %v3351 = vunpack.c.l.b16 %v1810
        %v3352 = vunpack.c.h.b16 %v1810
        %v3353 = vunpack.c.l.b16 %v1811
        %v3354 = vunpack.c.h.b16 %v1811
        %v3355 = vunpack.c.l.b16 %v1812
        %v3356 = vunpack.c.h.b16 %v1812
        %v3357 = vunpack.c.l.b16 %v1813
        %v3358 = vunpack.c.h.b16 %v1813
        %v3359 = vunpack.c.l.b16 %v1814
        %v3360 = vunpack.c.h.b16 %v1814
        %v3361 = vunpack.c.l.b16 %v1815
        %v3362 = vunpack.c.h.b16 %v1815
        %v3363 = vunpack.c.l.b16 %v1816
        %v3364 = vunpack.c.h.b16 %v1816
        %v3365 = vunpack.c.l.b16 %v1817
        %v3366 = vunpack.c.h.b16 %v1817
        %v3367 = vunpack.c.l.b16 %v1818
        %v3368 = vunpack.c.h.b16 %v1818
        %v3369 = vunpack.c.l.b16 %v1819
        %v3370 = vunpack.c.h.b16 %v1819
        %v3371 = vunpack.c.l.b16 %v1820
        %v3372 = vunpack.c.h.b16 %v1820
        %v3373 = vunpack.c.l.b16 %v1821
        %v3374 = vunpack.c.h.b16 %v1821
        %v3375 = vunpack.c.l.b16 %v1822
        %v3376 = vunpack.c.h.b16 %v1822
        %v3377 = vunpack.c.l.b16 %v1823
        %v3378 = vunpack.c.h.b16 %v1823
        %v3379 = vunpack.c.l.b16 %v1824
        %v3380 = vunpack.c.h.b16 %v1824
        %v3381 = vunpack.c.l.b16 %v1825
        %v3382 = vunpack.c.h.b16 %v1825
        %v3383 = vunpack.c.l.b16 %v1826
        %v3384 = vunpack.c.h.b16 %v1826
        %v3385 = vunpack.c.l.b16 %v1827
        %v3386 = vunpack.c.h.b16 %v1827
        %v3387 = vunpack.c.l.b16 %v1828
        %v3388 = vunpack.c.h.b16 %v1828
        %v3389 = vunpack.c.l.b16 %v1829
        %v3390 = vunpack.c.h.b16 %v1829
        %v3391 = vunpack.c.l.b16 %v1830
        %v3392 = vunpack.c.h.b16 %v1830
        %v3393 = vunpack.c.l.b16 %v1831
        %v3394 = vunpack.c.h.b16 %v1831
        %v3395 = vunpack.c.l.b16 %v1832
        %v3396 = vunpack.c.h.b16 %v1832
        %v3397 = vunpack.c.l.b16 %v1833
        %v3398 = vunpack.c.h.b16 %v1833
        %v3399 = vunpack.c.l.b16 %v1834
        %v3400 = vunpack.c.h.b16 %v1834
        %v3401 = vunpack.c.l.b16 %v1835
        %v3402 = vunpack.c.h.b16 %v1835
        %v3403 = vunpack.c.l.b16 %v1836
        %v3404 = vunpack.c.h.b16 %v1836
        %v3405 = vunpack.c.l.b16 %v1837
        %v3406 = vunpack.c.h.b16 %v1837
        %v3407 = vunpack.c.l.b16 %v1838
        %v3408 = vunpack.c.h.b16 %v1838
        %v3409 = vunpack.c.l.b16 %v1839
        %v3410 = vunpack.c.h.b16 %v1839
        %v3411 = vunpack.c.l.b16 %v1840
        %v3412 = vunpack.c.h.b16 %v1840
        %v3413 = vunpack.c.l.b16 %v1841
        %v3414 = vunpack.c.h.b16 %v1841
        %v3415 = vunpack.c.l.b16 %v1842
        %v3416 = vunpack.c.h.b16 %v1842
        %v3417 = vunpack.c.l.b16 %v1843
        %v3418 = vunpack.c.h.b16 %v1843
        %v3419 = vunpack.c.l.b16 %v1844
        %v3420 = vunpack.c.h.b16 %v1844
        %v3421 = vunpack.c.l.b16 %v1845
        %v3422 = vunpack.c.h.b16 %v1845
        %v3423 = vunpack.c.l.b16 %v1846
        %v3424 = vunpack.c.h.b16 %v1846
        %v3425 = vunpack.c.l.b16 %v1847
        %v3426 = vunpack.c.h.b16 %v1847
        %v3427 = vunpack.c.l.b16 %v1848
        %v3428 = vunpack.c.h.b16 %v1848
        %v3429 = vunpack.c.l.b16 %v1849
        %v3430 = vunpack.c.h.b16 %v1849
        %v3431 = vunpack.c.l.b16 %v1850
        %v3432 = vunpack.c.h.b16 %v1850
        %v3433 = vunpack.c.l.b16 %v1851
        %v3434 = vunpack.c.h.b16 %v1851
        %v3435 = vunpack.c.l.b16 %v1852
        %v3436 = vunpack.c.h.b16 %v1852
        %v3437 = vunpack.c.l.b16 %v1853
        %v3438 = vunpack.c.h.b16 %v1853
        %v3439 = vunpack.c.l.b16 %v1854
        %v3440 = vunpack.c.h.b16 %v1854
        %v3441 = vunpack.c.l.b16 %v1855
        %v3442 = vunpack.c.h.b16 %v1855
        %v3443 = vunpack.c.l.b16 %v1856
        %v3444 = vunpack.c.h.b16 %v1856
        %v3445 = vunpack.c.l.b16 %v1857
        %v3446 = vunpack.c.h.b16 %v1857
        %v3447 = vunpack.c.l.b16 %v1858
        %v3448 = vunpack.c.h.b16 %v1858
        %v3449 = vunpack.c.l.b16 %v1859
        %v3450 = vunpack.c.h.b16 %v1859
        %v3451 = vunpack.c.l.b16 %v1860
        %v3452 = vunpack.c.h.b16 %v1860
        %v3453 = vunpack.c.l.b16 %v1861
        %v3454 = vunpack.c.h.b16 %v1861
        %v3455 = vunpack.c.l.b16 %v1862
        %v3456 = vunpack.c.h.b16 %v1862
        %v3457 = vunpack.c.l.b16 %v1863
        %v3458 = vunpack.c.h.b16 %v1863
        %v3459 = vunpack.c.l.b16 %v1864
        %v3460 = vunpack.c.h.b16 %v1864
        %v3461 = vunpack.c.l.b16 %v1865
        %v3462 = vunpack.c.h.b16 %v1865
        %v3463 = vunpack.c.l.b16 %v1866
        %v3464 = vunpack.c.h.b16 %v1866
        %v3465 = vunpack.c.l.b16 %v1867
        %v3466 = vunpack.c.h.b16 %v1867
        %v3467 = vunpack.c.l.b16 %v1868
        %v3468 = vunpack.c.h.b16 %v1868
        %v3469 = vunpack.c.l.b16 %v1869
        %v3470 = vunpack.c.h.b16 %v1869
        %v3471 = vunpack.c.l.b16 %v1870
        %v3472 = vunpack.c.h.b16 %v1870
        %v3473 = vunpack.c.l.b16 %v1871
        %v3474 = vunpack.c.h.b16 %v1871
        %v3475 = vunpack.c.l.b16 %v1872
        %v3476 = vunpack.c.h.b16 %v1872
        %v3477 = vunpack.c.l.b16 %v1873
        %v3478 = vunpack.c.h.b16 %v1873
        %v3479 = vunpack.c.l.b16 %v1874
        %v3480 = vunpack.c.h.b16 %v1874
        %v3481 = vunpack.c.l.b16 %v1875
        %v3482 = vunpack.c.h.b16 %v1875
        %v3483 = vunpack.c.l.b16 %v1876
        %v3484 = vunpack.c.h.b16 %v1876
        %v3485 = vunpack.c.l.b16 %v1877
        %v3486 = vunpack.c.h.b16 %v1877
        %v3487 = vunpack.c.l.b16 %v1878
        %v3488 = vunpack.c.h.b16 %v1878
        %v3489 = vunpack.c.l.b16 %v1879
        %v3490 = vunpack.c.h.b16 %v1879
        %v3491 = vunpack.c.l.b16 %v1880
        %v3492 = vunpack.c.h.b16 %v1880
        %v3493 = vunpack.c.l.b16 %v1881
        %v3494 = vunpack.c.h.b16 %v1881
        %v3495 = vunpack.c.l.b16 %v1882
        %v3496 = vunpack.c.h.b16 %v1882
        %v3497 = vunpack.c.l.b16 %v1883
        %v3498 = vunpack.c.h.b16 %v1883
        %v3499 = vunpack.c.l.b16 %v1884
        %v3500 = vunpack.c.h.b16 %v1884
        %v3501 = vunpack.c.l.b16 %v1885
        %v3502 = vunpack.c.h.b16 %v1885
        %v3503 = vunpack.c.l.b16 %v1886
        %v3504 = vunpack.c.h.b16 %v1886
        %v3505 = vunpack.c.l.b16 %v1887
        %v3506 = vunpack.c.h.b16 %v1887
        %v3507 = vunpack.c.l.b16 %v1888
        %v3508 = vunpack.c.h.b16 %v1888
        %v3509 = vunpack.c.l.b16 %v1889
        %v3510 = vunpack.c.h.b16 %v1889
        %v3511 = vunpack.c.l.b16 %v1890
        %v3512 = vunpack.c.h.b16 %v1890
        %v3513 = vunpack.c.l.b16 %v1891
        %v3514 = vunpack.c.h.b16 %v1891
        %v3515 = vunpack.c.l.b16 %v1892
        %v3516 = vunpack.c.h.b16 %v1892
        %v3517 = vunpack.c.l.b16 %v1893
        %v3518 = vunpack.c.h.b16 %v1893
        %v3519 = vunpack.c.l.b16 %v1894
        %v3520 = vunpack.c.h.b16 %v1894
        %v3521 = vunpack.c.l.b16 %v1895
        %v3522 = vunpack.c.h.b16 %v1895
        %v3523 = vunpack.c.l.b16 %v1896
        %v3524 = vunpack.c.h.b16 %v1896
        %v3525 = vunpack.c.l.b16 %v1897
        %v3526 = vunpack.c.h.b16 %v1897
        %v3527 = vunpack.c.l.b16 %v1898
        %v3528 = vunpack.c.h.b16 %v1898
        %v3529 = vunpack.c.l.b16 %v1899
        %v3530 = vunpack.c.h.b16 %v1899
        %v3531 = vunpack.c.l.b16 %v1900
        %v3532 = vunpack.c.h.b16 %v1900
        %v3533 = vunpack.c.l.b16 %v1901
        %v3534 = vunpack.c.h.b16 %v1901
        %v3535 = vunpack.c.l.b16 %v1902
        %v3536 = vunpack.c.h.b16 %v1902
        %v3537 = vunpack.c.l.b16 %v1903
        %v3538 = vunpack.c.h.b16 %v1903
        %v3539 = vunpack.c.l.b16 %v1904
        %v3540 = vunpack.c.h.b16 %v1904
        %v3541 = vunpack.c.l.b16 %v1905
        %v3542 = vunpack.c.h.b16 %v1905
        %v3543 = vunpack.c.l.b16 %v1906
        %v3544 = vunpack.c.h.b16 %v1906
        %v3545 = vunpack.c.l.b16 %v1907
        %v3546 = vunpack.c.h.b16 %v1907
        %v3547 = vunpack.c.l.b16 %v1908
        %v3548 = vunpack.c.h.b16 %v1908
        %v3549 = vunpack.c.l.b16 %v1909
        %v3550 = vunpack.c.h.b16 %v1909
        %v3551 = vunpack.c.l.b16 %v1910
        %v3552 = vunpack.c.h.b16 %v1910
        %v3553 = vunpack.c.l.b16 %v1911
        %v3554 = vunpack.c.h.b16 %v1911
        %v3555 = vunpack.c.l.b16 %v1912
        %v3556 = vunpack.c.h.b16 %v1912
        %v3557 = vunpack.c.l.b16 %v1913
        %v3558 = vunpack.c.h.b16 %v1913
        %v3559 = vunpack.c.l.b16 %v1914
        %v3560 = vunpack.c.h.b16 %v1914
        %v3561 = vunpack.c.l.b16 %v1915
        %v3562 = vunpack.c.h.b16 %v1915
        %v3563 = vunpack.c.l.b16 %v1916
        %v3564 = vunpack.c.h.b16 %v1916
        %v3565 = vunpack.c.l.b16 %v1917
        %v3566 = vunpack.c.h.b16 %v1917
        %v3567 = vunpack.c.l.b16 %v1918
        %v3568 = vunpack.c.h.b16 %v1918
        %v3569 = vunpack.c.l.b16 %v1919
        %v3570 = vunpack.c.h.b16 %v1919
        %v3571 = vunpack.c.l.b16 %v1920
        %v3572 = vunpack.c.h.b16 %v1920
        %v3573 = vunpack.c.l.b16 %v1921
        %v3574 = vunpack.c.h.b16 %v1921
        %v3575 = vunpack.c.l.b16 %v1922
        %v3576 = vunpack.c.h.b16 %v1922
        %v3577 = vunpack.c.l.b16 %v1923
        %v3578 = vunpack.c.h.b16 %v1923
        %v3579 = vunpack.c.l.b16 %v1924
        %v3580 = vunpack.c.h.b16 %v1924
        %v3581 = vunpack.c.l.b16 %v1925
        %v3582 = vunpack.c.h.b16 %v1925
        %v3583 = vunpack.c.l.b16 %v1926
        %v3584 = vunpack.c.h.b16 %v1926
        %v3585 = vunpack.c.l.b16 %v1927
        %v3586 = vunpack.c.h.b16 %v1927
        %v3587 = vunpack.c.l.b16 %v1928
        %v3588 = vunpack.c.h.b16 %v1928
        %v3589 = vunpack.c.l.b16 %v1929
        %v3590 = vunpack.c.h.b16 %v1929
        %v3591 = vunpack.c.l.b16 %v1930
        %v3592 = vunpack.c.h.b16 %v1930
        %v3593 = vunpack.c.l.b16 %v1931
        %v3594 = vunpack.c.h.b16 %v1931
        %v3595 = vunpack.c.l.b16 %v1932
        %v3596 = vunpack.c.h.b16 %v1932
        %v3597 = vunpack.c.l.b16 %v1933
        %v3598 = vunpack.c.h.b16 %v1933
        %v3599 = vunpack.c.l.b16 %v1934
        %v3600 = vunpack.c.h.b16 %v1934
        %v3601 = vunpack.c.l.b16 %v1935
        %v3602 = vunpack.c.h.b16 %v1935
        %v3603 = vunpack.c.l.b16 %v1936
        %v3604 = vunpack.c.h.b16 %v1936
        %v3605 = vunpack.c.l.b16 %v1937
        %v3606 = vunpack.c.h.b16 %v1937
        %v3607 = vunpack.c.l.b16 %v1938
        %v3608 = vunpack.c.h.b16 %v1938
        %v3609 = vunpack.c.l.b16 %v1939
        %v3610 = vunpack.c.h.b16 %v1939
        %v3611 = vunpack.c.l.b16 %v1940
        %v3612 = vunpack.c.h.b16 %v1940
        %v3613 = vunpack.c.l.b16 %v1941
        %v3614 = vunpack.c.h.b16 %v1941
        %v3615 = vunpack.c.l.b16 %v1942
        %v3616 = vunpack.c.h.b16 %v1942
        %v3617 = vunpack.c.l.b16 %v1943
        %v3618 = vunpack.c.h.b16 %v1943
        %v3619 = vunpack.c.l.b16 %v1944
        %v3620 = vunpack.c.h.b16 %v1944
        %v3621 = vunpack.c.l.b16 %v1945
        %v3622 = vunpack.c.h.b16 %v1945
        %v3623 = vunpack.c.l.b16 %v1946
        %v3624 = vunpack.c.h.b16 %v1946
        %v3625 = vunpack.c.l.b16 %v1947
        %v3626 = vunpack.c.h.b16 %v1947
        %v3627 = vunpack.c.l.b16 %v1948
        %v3628 = vunpack.c.h.b16 %v1948
        %v3629 = vunpack.c.l.b16 %v1949
        %v3630 = vunpack.c.h.b16 %v1949
        %v3631 = vunpack.c.l.b16 %v1950
        %v3632 = vunpack.c.h.b16 %v1950
        %v3633 = vunpack.c.l.b16 %v1951
        %v3634 = vunpack.c.h.b16 %v1951
        %v3635 = vunpack.c.l.b16 %v1952
        %v3636 = vunpack.c.h.b16 %v1952
        %v3637 = vunpack.c.l.b16 %v1953
        %v3638 = vunpack.c.h.b16 %v1953
        %v3639 = vunpack.c.l.b16 %v1954
        %v3640 = vunpack.c.h.b16 %v1954
        %v3641 = vunpack.c.l.b16 %v1955
        %v3642 = vunpack.c.h.b16 %v1955
        %v3643 = vunpack.c.l.b16 %v1956
        %v3644 = vunpack.c.h.b16 %v1956
        %v3645 = vunpack.c.l.b16 %v1957
        %v3646 = vunpack.c.h.b16 %v1957
        %v3647 = vunpack.c.l.b16 %v1958
        %v3648 = vunpack.c.h.b16 %v1958
        %v3649 = vunpack.c.l.b16 %v1959
        %v3650 = vunpack.c.h.b16 %v1959
        %v3651 = vunpack.c.l.b16 %v1960
        %v3652 = vunpack.c.h.b16 %v1960
        %v3653 = vunpack.c.l.b16 %v1961
        %v3654 = vunpack.c.h.b16 %v1961
        %v3655 = vunpack.c.l.b16 %v1962
        %v3656 = vunpack.c.h.b16 %v1962
        %v3657 = vunpack.c.l.b16 %v1963
        %v3658 = vunpack.c.h.b16 %v1963
        %v3659 = vunpack.c.l.b16 %v1964
        %v3660 = vunpack.c.h.b16 %v1964
        %v3661 = vunpack.c.l.b16 %v1965
        %v3662 = vunpack.c.h.b16 %v1965
        %v3663 = vunpack.c.l.b16 %v1966
        %v3664 = vunpack.c.h.b16 %v1966
        %v3665 = vunpack.c.l.b16 %v1967
        %v3666 = vunpack.c.h.b16 %v1967
        %v3667 = vunpack.c.l.b16 %v1968
        %v3668 = vunpack.c.h.b16 %v1968
        %v3669 = vunpack.c.l.b16 %v1969
        %v3670 = vunpack.c.h.b16 %v1969
        %v3671 = vunpack.c.l.b16 %v1970
        %v3672 = vunpack.c.h.b16 %v1970
        %v3673 = vunpack.c.l.b16 %v1971
        %v3674 = vunpack.c.h.b16 %v1971
        %v3675 = vunpack.c.l.b16 %v1972
        %v3676 = vunpack.c.h.b16 %v1972
        %v3677 = vunpack.c.l.b16 %v1973
        %v3678 = vunpack.c.h.b16 %v1973
        %v3679 = vunpack.c.l.b16 %v1974
        %v3680 = vunpack.c.h.b16 %v1974
        %v3681 = vunpack.c.l.b16 %v1975
        %v3682 = vunpack.c.h.b16 %v1975
        %v3683 = vunpack.c.l.b16 %v1976
        %v3684 = vunpack.c.h.b16 %v1976
        %v3685 = vunpack.c.l.b16 %v1977
        %v3686 = vunpack.c.h.b16 %v1977
        %v3687 = vunpack.c.l.b16 %v1978
        %v3688 = vunpack.c.h.b16 %v1978
        %v3689 = vunpack.c.l.b16 %v1979
        %v3690 = vunpack.c.h.b16 %v1979
        %v3691 = vunpack.c.l.b16 %v1980
        %v3692 = vunpack.c.h.b16 %v1980
        %v3693 = vunpack.c.l.b16 %v1981
        %v3694 = vunpack.c.h.b16 %v1981
        %v3695 = vunpack.c.l.b16 %v1982
        %v3696 = vunpack.c.h.b16 %v1982
        %v3697 = vunpack.c.l.b16 %v1983
        %v3698 = vunpack.c.h.b16 %v1983
        %v3699 = vunpack.c.l.b16 %v1984
        %v3700 = vunpack.c.h.b16 %v1984
        %v3701 = vunpack.c.l.b16 %v1985
        %v3702 = vunpack.c.h.b16 %v1985
        %v3703 = vunpack.c.l.b16 %v1986
        %v3704 = vunpack.c.h.b16 %v1986
        %v3705 = vunpack.c.l.b16 %v1987
        %v3706 = vunpack.c.h.b16 %v1987
        %v3707 = vunpack.c.l.b16 %v1988
        %v3708 = vunpack.c.h.b16 %v1988
        %v3709 = vunpack.c.l.b16 %v1989
        %v3710 = vunpack.c.h.b16 %v1989
        %v3711 = vunpack.c.l.b16 %v1990
        %v3712 = vunpack.c.h.b16 %v1990
        %v3713 = vunpack.c.l.b16 %v1991
        %v3714 = vunpack.c.h.b16 %v1991
        %v3715 = vunpack.c.l.b16 %v1992
        %v3716 = vunpack.c.h.b16 %v1992
        %v3717 = vunpack.c.l.b16 %v1993
        %v3718 = vunpack.c.h.b16 %v1993
        %v3719 = vunpack.c.l.b16 %v1994
        %v3720 = vunpack.c.h.b16 %v1994
        %v3721 = vunpack.c.l.b16 %v1995
        %v3722 = vunpack.c.h.b16 %v1995
        %v3723 = vunpack.c.l.b16 %v1996
        %v3724 = vunpack.c.h.b16 %v1996
        %v3725 = vunpack.c.l.b16 %v1997
        %v3726 = vunpack.c.h.b16 %v1997
        %v3727 = vunpack.c.l.b16 %v1998
        %v3728 = vunpack.c.h.b16 %v1998
        %v3729 = vunpack.c.l.b16 %v1999
        %v3730 = vunpack.c.h.b16 %v1999
        %v3731 = vunpack.c.l.b16 %v2000
        %v3732 = vunpack.c.h.b16 %v2000
        %v3733 = vunpack.c.l.b16 %v2001
        %v3734 = vunpack.c.h.b16 %v2001
        %v3735 = vunpack.c.l.b16 %v2002
        %v3736 = vunpack.c.h.b16 %v2002
        %v3737 = vunpack.c.l.b16 %v2003
        %v3738 = vunpack.c.h.b16 %v2003
        %v3739 = vunpack.c.l.b16 %v2004
        %v3740 = vunpack.c.h.b16 %v2004
        %v3741 = vunpack.c.l.b16 %v2005
        %v3742 = vunpack.c.h.b16 %v2005
        %v3743 = vunpack.c.l.b16 %v2006
        %v3744 = vunpack.c.h.b16 %v2006
        %v3745 = vunpack.c.l.b16 %v2007
        %v3746 = vunpack.c.h.b16 %v2007
        %v3747 = vunpack.c.l.b16 %v2008
        %v3748 = vunpack.c.h.b16 %v2008
        %v3749 = vunpack.c.l.b16 %v2009
        %v3750 = vunpack.c.h.b16 %v2009
        %v3751 = vunpack.c.l.b16 %v2010
        %v3752 = vunpack.c.h.b16 %v2010
        %v3753 = vunpack.c.l.b16 %v2011
        %v3754 = vunpack.c.h.b16 %v2011
        %v3755 = vunpack.c.l.b16 %v2012
        %v3756 = vunpack.c.h.b16 %v2012
        %v3757 = vunpack.c.l.b16 %v2013
        %v3758 = vunpack.c.h.b16 %v2013
        %v3759 = vunpack.c.l.b16 %v2014
        %v3760 = vunpack.c.h.b16 %v2014
        %v3761 = vunpack.c.l.b16 %v2015
        %v3762 = vunpack.c.h.b16 %v2015
        %v3763 = vunpack.c.l.b16 %v2016
        %v3764 = vunpack.c.h.b16 %v2016
        %v3765 = vunpack.c.l.b16 %v2017
        %v3766 = vunpack.c.h.b16 %v2017
        %v3767 = vunpack.c.l.b16 %v2018
        %v3768 = vunpack.c.h.b16 %v2018
        %v3769 = vunpack.c.l.b16 %v2019
        %v3770 = vunpack.c.h.b16 %v2019
        %v3771 = vpack.c.b16 %v2635, %v2619
        %v3772 = vpack.c.b16 %v2636, %v2620
        %v3773 = vpack.c.b16 %v2637, %v2621
        %v3774 = vpack.c.b16 %v2638, %v2622
        %v3775 = vpack.c.b16 %v2639, %v2623
        %v3776 = vpack.c.b16 %v2640, %v2624
        %v3777 = vpack.c.b16 %v2641, %v2625
        %v3778 = vpack.c.b16 %v2642, %v2626
        %v3779 = vpack.c.b16 %v2643, %v2627
        %v3780 = vpack.c.b16 %v2644, %v2628
        %v3781 = vpack.c.b16 %v2645, %v2629
        %v3782 = vpack.c.b16 %v2646, %v2630
        %v3783 = vpack.c.b16 %v2647, %v2631
        %v3784 = vpack.c.b16 %v2648, %v2632
        %v3785 = vpack.c.b16 %v2649, %v2633
        %v3786 = vpack.c.b16 %v2650, %v2634
        %v3787 = vpack.c.b16 %v2667, %v2651
        %v3788 = vpack.c.b16 %v2668, %v2652
        %v3789 = vpack.c.b16 %v2669, %v2653
        %v3790 = vpack.c.b16 %v2670, %v2654
        %v3791 = vpack.c.b16 %v2671, %v2655
        %v3792 = vpack.c.b16 %v2672, %v2656
        %v3793 = vpack.c.b16 %v2673, %v2657
        %v3794 = vpack.c.b16 %v2674, %v2658
        %v3795 = vpack.c.b16 %v2675, %v2659
        %v3796 = vpack.c.b16 %v2676, %v2660
        %v3797 = vpack.c.b16 %v2677, %v2661
        %v3798 = vpack.c.b16 %v2678, %v2662
        %v3799 = vpack.c.b16 %v2679, %v2663
        %v3800 = vpack.c.b16 %v2680, %v2664
        %v3801 = vpack.c.b16 %v2681, %v2665
        %v3802 = vpack.c.b16 %v2682, %v2666
        %v3803 = vpack.c.b16 %v2699, %v2683
        %v3804 = vpack.c.b16 %v2700, %v2684
        %v3805 = vpack.c.b16 %v2701, %v2685
        %v3806 = vpack.c.b16 %v2702, %v2686
        %v3807 = vpack.c.b16 %v2703, %v2687
        %v3808 = vpack.c.b16 %v2704, %v2688
        %v3809 = vpack.c.b16 %v2705, %v2689
        %v3810 = vpack.c.b16 %v2706, %v2690
        %v3811 = vpack.c.b16 %v2707, %v2691
        %v3812 = vpack.c.b16 %v2708, %v2692
        %v3813 = vpack.c.b16 %v2709, %v2693
        %v3814 = vpack.c.b16 %v2710, %v2694
        %v3815 = vpack.c.b16 %v2711, %v2695
        %v3816 = vpack.c.b16 %v2712, %v2696
        %v3817 = vpack.c.b16 %v2713, %v2697
        %v3818 = vpack.c.b16 %v2714, %v2698
        %v3819 = vpack.c.b16 %v2731, %v2715
        %v3820 = vpack.c.b16 %v2732, %v2716
        %v3821 = vpack.c.b16 %v2733, %v2717
        %v3822 = vpack.c.b16 %v2734, %v2718
        %v3823 = vpack.c.b16 %v2735, %v2719
        %v3824 = vpack.c.b16 %v2736, %v2720
        %v3825 = vpack.c.b16 %v2737, %v2721
        %v3826 = vpack.c.b16 %v2738, %v2722
        %v3827 = vpack.c.b16 %v2739, %v2723
        %v3828 = vpack.c.b16 %v2740, %v2724
        %v3829 = vpack.c.b16 %v2741, %v2725
        %v3830 = vpack.c.b16 %v2742, %v2726
        %v3831 = vpack.c.b16 %v2743, %v2727
        %v3832 = vpack.c.b16 %v2744, %v2728
        %v3833 = vpack.c.b16 %v2745, %v2729
        %v3834 = vpack.c.b16 %v2746, %v2730
        %v3835 = vpack.c.b16 %v2763, %v2747
        %v3836 = vpack.c.b16 %v2764, %v2748
        %v3837 = vpack.c.b16 %v2765, %v2749
        %v3838 = vpack.c.b16 %v2766, %v2750
        %v3839 = vpack.c.b16 %v2767, %v2751
        %v3840 = vpack.c.b16 %v2768, %v2752
        %v3841 = vpack.c.b16 %v2769, %v2753
        %v3842 = vpack.c.b16 %v2770, %v2754
        %v3843 = vpack.c.b16 %v2771, %v2755
        %v3844 = vpack.c.b16 %v2772, %v2756
        %v3845 = vpack.c.b16 %v2773, %v2757
        %v3846 = vpack.c.b16 %v2774, %v2758
        %v3847 = vpack.c.b16 %v2775, %v2759
        %v3848 = vpack.c.b16 %v2776, %v2760
        %v3849 = vpack.c.b16 %v2777, %v2761
        %v3850 = vpack.c.b16 %v2778, %v2762
        %v3851 = vpack.c.b16 %v2795, %v2779
        %v3852 = vpack.c.b16 %v2796, %v2780
        %v3853 = vpack.c.b16 %v2797, %v2781
        %v3854 = vpack.c.b16 %v2798, %v2782
        %v3855 = vpack.c.b16 %v2799, %v2783
        %v3856 = vpack.c.b16 %v2800, %v2784
        %v3857 = vpack.c.b16 %v2801, %v2785
        %v3858 = vpack.c.b16 %v2802, %v2786
        %v3859 = vpack.c.b16 %v2803, %v2787
        %v3860 = vpack.c.b16 %v2804, %v2788
        %v3861 = vpack.c.b16 %v2805, %v2789
        %v3862 = vpack.c.b16 %v2806, %v2790
        %v3863 = vpack.c.b16 %v2807, %v2791
        %v3864 = vpack.c.b16 %v2808, %v2792
        %v3865 = vpack.c.b16 %v2809, %v2793
        %v3866 = vpack.c.b16 %v2810, %v2794
        %v3867 = vpack.c.b16 %v2827, %v2811
        %v3868 = vpack.c.b16 %v2828, %v2812
        %v3869 = vpack.c.b16 %v2829, %v2813
        %v3870 = vpack.c.b16 %v2830, %v2814
        %v3871 = vpack.c.b16 %v2831, %v2815
        %v3872 = vpack.c.b16 %v2832, %v2816
        %v3873 = vpack.c.b16 %v2833, %v2817
        %v3874 = vpack.c.b16 %v2834, %v2818
        %v3875 = vpack.c.b16 %v2835, %v2819
        %v3876 = vpack.c.b16 %v2836, %v2820
        %v3877 = vpack.c.b16 %v2837, %v2821
        %v3878 = vpack.c.b16 %v2838, %v2822
        %v3879 = vpack.c.b16 %v2839, %v2823
        %v3880 = vpack.c.b16 %v2840, %v2824
        %v3881 = vpack.c.b16 %v2841, %v2825
        %v3882 = vpack.c.b16 %v2842, %v2826
        %v3883 = vpack.c.b16 %v2859, %v2843
        %v3884 = vpack.c.b16 %v2860, %v2844
        %v3885 = vpack.c.b16 %v2861, %v2845
        %v3886 = vpack.c.b16 %v2862, %v2846
        %v3887 = vpack.c.b16 %v2863, %v2847
        %v3888 = vpack.c.b16 %v2864, %v2848
        %v3889 = vpack.c.b16 %v2865, %v2849
        %v3890 = vpack.c.b16 %v2866, %v2850
        %v3891 = vpack.c.b16 %v2867, %v2851
        %v3892 = vpack.c.b16 %v2868, %v2852
        %v3893 = vpack.c.b16 %v2869, %v2853
        %v3894 = vpack.c.b16 %v2870, %v2854
        %v3895 = vpack.c.b16 %v2871, %v2855
        %v3896 = vpack.c.b16 %v2872, %v2856
        %v3897 = vpack.c.b16 %v2873, %v2857
        %v3898 = vpack.c.b16 %v2874, %v2858
        %v3899 = vpack.c.b16 %v2891, %v2875
        %v3900 = vpack.c.b16 %v2892, %v2876
        %v3901 = vpack.c.b16 %v2893, %v2877
        %v3902 = vpack.c.b16 %v2894, %v2878
        %v3903 = vpack.c.b16 %v2895, %v2879
        %v3904 = vpack.c.b16 %v2896, %v2880
        %v3905 = vpack.c.b16 %v2897, %v2881
        %v3906 = vpack.c.b16 %v2898, %v2882
        %v3907 = vpack.c.b16 %v2899, %v2883
        %v3908 = vpack.c.b16 %v2900, %v2884
        %v3909 = vpack.c.b16 %v2901, %v2885
        %v3910 = vpack.c.b16 %v2902, %v2886
        %v3911 = vpack.c.b16 %v2903, %v2887
        %v3912 = vpack.c.b16 %v2904, %v2888
        %v3913 = vpack.c.b16 %v2905, %v2889
        %v3914 = vpack.c.b16 %v2906, %v2890
        %v3915 = vpack.c.b16 %v2923, %v2907
        %v3916 = vpack.c.b16 %v2924, %v2908
        %v3917 = vpack.c.b16 %v2925, %v2909
        %v3918 = vpack.c.b16 %v2926, %v2910
        %v3919 = vpack.c.b16 %v2927, %v2911
        %v3920 = vpack.c.b16 %v2928, %v2912
        %v3921 = vpack.c.b16 %v2929, %v2913
        %v3922 = vpack.c.b16 %v2930, %v2914
        %v3923 = vpack.c.b16 %v2931, %v2915
        %v3924 = vpack.c.b16 %v2932, %v2916
        %v3925 = vpack.c.b16 %v2933, %v2917
        %v3926 = vpack.c.b16 %v2934, %v2918
        %v3927 = vpack.c.b16 %v2935, %v2919
        %v3928 = vpack.c.b16 %v2936, %v2920
        %v3929 = vpack.c.b16 %v2937, %v2921
        %v3930 = vpack.c.b16 %v2938, %v2922
        %v3931 = vpack.c.b16 %v2955, %v2939
        %v3932 = vpack.c.b16 %v2956, %v2940
        %v3933 = vpack.c.b16 %v2957, %v2941
        %v3934 = vpack.c.b16 %v2958, %v2942
        %v3935 = vpack.c.b16 %v2959, %v2943
        %v3936 = vpack.c.b16 %v2960, %v2944
        %v3937 = vpack.c.b16 %v2961, %v2945
        %v3938 = vpack.c.b16 %v2962, %v2946
        %v3939 = vpack.c.b16 %v2963, %v2947
        %v3940 = vpack.c.b16 %v2964, %v2948
        %v3941 = vpack.c.b16 %v2965, %v2949
        %v3942 = vpack.c.b16 %v2966, %v2950
        %v3943 = vpack.c.b16 %v2967, %v2951
        %v3944 = vpack.c.b16 %v2968, %v2952
        %v3945 = vpack.c.b16 %v2969, %v2953
        %v3946 = vpack.c.b16 %v2970, %v2954
        %v3947 = vpack.c.b16 %v2987, %v2971
        %v3948 = vpack.c.b16 %v2988, %v2972
        %v3949 = vpack.c.b16 %v2989, %v2973
        %v3950 = vpack.c.b16 %v2990, %v2974
        %v3951 = vpack.c.b16 %v2991, %v2975
        %v3952 = vpack.c.b16 %v2992, %v2976
        %v3953 = vpack.c.b16 %v2993, %v2977
        %v3954 = vpack.c.b16 %v2994, %v2978
        %v3955 = vpack.c.b16 %v2995, %v2979
        %v3956 = vpack.c.b16 %v2996, %v2980
        %v3957 = vpack.c.b16 %v2997, %v2981
        %v3958 = vpack.c.b16 %v2998, %v2982
        %v3959 = vpack.c.b16 %v2999, %v2983
        %v3960 = vpack.c.b16 %v3000, %v2984
        %v3961 = vpack.c.b16 %v3001, %v2985
        %v3962 = vpack.c.b16 %v3002, %v2986
        %v3963 = vpack.c.b16 %v3019, %v3003
        %v3964 = vpack.c.b16 %v3020, %v3004
        %v3965 = vpack.c.b16 %v3021, %v3005
        %v3966 = vpack.c.b16 %v3022, %v3006
        %v3967 = vpack.c.b16 %v3023, %v3007
        %v3968 = vpack.c.b16 %v3024, %v3008
        %v3969 = vpack.c.b16 %v3025, %v3009
        %v3970 = vpack.c.b16 %v3026, %v3010
        %v3971 = vpack.c.b16 %v3027, %v3011
        %v3972 = vpack.c.b16 %v3028, %v3012
        %v3973 = vpack.c.b16 %v3029, %v3013
        %v3974 = vpack.c.b16 %v3030, %v3014
        %v3975 = vpack.c.b16 %v3031, %v3015
        %v3976 = vpack.c.b16 %v3032, %v3016
        %v3977 = vpack.c.b16 %v3033, %v3017
        %v3978 = vpack.c.b16 %v3034, %v3018
        %v3979 = vpack.c.b16 %v3051, %v3035
        %v3980 = vpack.c.b16 %v3052, %v3036
        %v3981 = vpack.c.b16 %v3053, %v3037
        %v3982 = vpack.c.b16 %v3054, %v3038
        %v3983 = vpack.c.b16 %v3055, %v3039
        %v3984 = vpack.c.b16 %v3056, %v3040
        %v3985 = vpack.c.b16 %v3057, %v3041
        %v3986 = vpack.c.b16 %v3058, %v3042
        %v3987 = vpack.c.b16 %v3059, %v3043
        %v3988 = vpack.c.b16 %v3060, %v3044
        %v3989 = vpack.c.b16 %v3061, %v3045
        %v3990 = vpack.c.b16 %v3062, %v3046
        %v3991 = vpack.c.b16 %v3063, %v3047
        %v3992 = vpack.c.b16 %v3064, %v3048
        %v3993 = vpack.c.b16 %v3065, %v3049
        %v3994 = vpack.c.b16 %v3066, %v3050
        %v3995 = vpack.c.b16 %v3083, %v3067
        %v3996 = vpack.c.b16 %v3084, %v3068
        %v3997 = vpack.c.b16 %v3085, %v3069
        %v3998 = vpack.c.b16 %v3086, %v3070
        %v3999 = vpack.c.b16 %v3087, %v3071
        %v4000 = vpack.c.b16 %v3088, %v3072
        %v4001 = vpack.c.b16 %v3089, %v3073
        %v4002 = vpack.c.b16 %v3090, %v3074
        %v4003 = vpack.c.b16 %v3091, %v3075
        %v4004 = vpack.c.b16 %v3092, %v3076
        %v4005 = vpack.c.b16 %v3093, %v3077
        %v4006 = vpack.c.b16 %v3094, %v3078
        %v4007 = vpack.c.b16 %v3095, %v3079
        %v4008 = vpack.c.b16 %v3096, %v3080
        %v4009 = vpack.c.b16 %v3097, %v3081
        %v4010 = vpack.c.b16 %v3098, %v3082
        %v4011 = vpack.c.b16 %v3115, %v3099
        %v4012 = vpack.c.b16 %v3116, %v3100
        %v4013 = vpack.c.b16 %v3117, %v3101
        %v4014 = vpack.c.b16 %v3118, %v3102
        %v4015 = vpack.c.b16 %v3119, %v3103
        %v4016 = vpack.c.b16 %v3120, %v3104
        %v4017 = vpack.c.b16 %v3121, %v3105
        %v4018 = vpack.c.b16 %v3122, %v3106
        %v4019 = vpack.c.b16 %v3123, %v3107
        %v4020 = vpack.c.b16 %v3124, %v3108
        %v4021 = vpack.c.b16 %v3125, %v3109
        %v4022 = vpack.c.b16 %v3126, %v3110
        %v4023 = vpack.c.b16 %v3127, %v3111
        %v4024 = vpack.c.b16 %v3128, %v3112
        %v4025 = vpack.c.b16 %v3129, %v3113
        %v4026 = vpack.c.b16 %v3130, %v3114
        %v4027 = vpack.c.b16 %v3147, %v3131
        %v4028 = vpack.c.b16 %v3148, %v3132
        %v4029 = vpack.c.b16 %v3149, %v3133
        %v4030 = vpack.c.b16 %v3150, %v3134
        %v4031 = vpack.c.b16 %v3151, %v3135
        %v4032 = vpack.c.b16 %v3152, %v3136
        %v4033 = vpack.c.b16 %v3153, %v3137
        %v4034 = vpack.c.b16 %v3154, %v3138
        %v4035 = vpack.c.b16 %v3155, %v3139
        %v4036 = vpack.c.b16 %v3156, %v3140
        %v4037 = vpack.c.b16 %v3157, %v3141
        %v4038 = vpack.c.b16 %v3158, %v3142
        %v4039 = vpack.c.b16 %v3159, %v3143
        %v4040 = vpack.c.b16 %v3160, %v3144
        %v4041 = vpack.c.b16 %v3161, %v3145
        %v4042 = vpack.c.b16 %v3162, %v3146
        %v4043 = vpack.c.b16 %v3179, %v3163
        %v4044 = vpack.c.b16 %v3180, %v3164
        %v4045 = vpack.c.b16 %v3181, %v3165
        %v4046 = vpack.c.b16 %v3182, %v3166
        %v4047 = vpack.c.b16 %v3183, %v3167
        %v4048 = vpack.c.b16 %v3184, %v3168
        %v4049 = vpack.c.b16 %v3185, %v3169
        %v4050 = vpack.c.b16 %v3186, %v3170
        %v4051 = vpack.c.b16 %v3187, %v3171
        %v4052 = vpack.c.b16 %v3188, %v3172
        %v4053 = vpack.c.b16 %v3189, %v3173
        %v4054 = vpack.c.b16 %v3190, %v3174
        %v4055 = vpack.c.b16 %v3191, %v3175
        %v4056 = vpack.c.b16 %v3192, %v3176
        %v4057 = vpack.c.b16 %v3193, %v3177
        %v4058 = vpack.c.b16 %v3194, %v3178
        %v4059 = vpack.c.b16 %v3211, %v3195
        %v4060 = vpack.c.b16 %v3212, %v3196
        %v4061 = vpack.c.b16 %v3213, %v3197
        %v4062 = vpack.c.b16 %v3214, %v3198
        %v4063 = vpack.c.b16 %v3215, %v3199
        %v4064 = vpack.c.b16 %v3216, %v3200
        %v4065 = vpack.c.b16 %v3217, %v3201
        %v4066 = vpack.c.b16 %v3218, %v3202
        %v4067 = vpack.c.b16 %v3219, %v3203
        %v4068 = vpack.c.b16 %v3220, %v3204
        %v4069 = vpack.c.b16 %v3221, %v3205
        %v4070 = vpack.c.b16 %v3222, %v3206
        %v4071 = vpack.c.b16 %v3223, %v3207
        %v4072 = vpack.c.b16 %v3224, %v3208
        %v4073 = vpack.c.b16 %v3225, %v3209
        %v4074 = vpack.c.b16 %v3226, %v3210
        %v4075 = vpack.c.b16 %v3243, %v3227
        %v4076 = vpack.c.b16 %v3244, %v3228
        %v4077 = vpack.c.b16 %v3245, %v3229
        %v4078 = vpack.c.b16 %v3246, %v3230
        %v4079 = vpack.c.b16 %v3247, %v3231
        %v4080 = vpack.c.b16 %v3248, %v3232
        %v4081 = vpack.c.b16 %v3249, %v3233
        %v4082 = vpack.c.b16 %v3250, %v3234
        %v4083 = vpack.c.b16 %v3251, %v3235
        %v4084 = vpack.c.b16 %v3252, %v3236
        %v4085 = vpack.c.b16 %v3253, %v3237
        %v4086 = vpack.c.b16 %v3254, %v3238
        %v4087 = vpack.c.b16 %v3255, %v3239
        %v4088 = vpack.c.b16 %v3256, %v3240
        %v4089 = vpack.c.b16 %v3257, %v3241
        %v4090 = vpack.c.b16 %v3258, %v3242
        %v4091 = vpack.c.b16 %v3275, %v3259
        %v4092 = vpack.c.b16 %v3276, %v3260
        %v4093 = vpack.c.b16 %v3277, %v3261
        %v4094 = vpack.c.b16 %v3278, %v3262
        %v4095 = vpack.c.b16 %v3279, %v3263
        %v4096 = vpack.c.b16 %v3280, %v3264
        %v4097 = vpack.c.b16 %v3281, %v3265
        %v4098 = vpack.c.b16 %v3282, %v3266
        %v4099 = vpack.c.b16 %v3283, %v3267
        %v4100 = vpack.c.b16 %v3284, %v3268
        %v4101 = vpack.c.b16 %v3285, %v3269
        %v4102 = vpack.c.b16 %v3286, %v3270
        %v4103 = vpack.c.b16 %v3287, %v3271
        %v4104 = vpack.c.b16 %v3288, %v3272
        %v4105 = vpack.c.b16 %v3289, %v3273
        %v4106 = vpack.c.b16 %v3290, %v3274
        %v4107 = vpack.c.b16 %v3307, %v3291
        %v4108 = vpack.c.b16 %v3308, %v3292
        %v4109 = vpack.c.b16 %v3309, %v3293
        %v4110 = vpack.c.b16 %v3310, %v3294
        %v4111 = vpack.c.b16 %v3311, %v3295
        %v4112 = vpack.c.b16 %v3312, %v3296
        %v4113 = vpack.c.b16 %v3313, %v3297
        %v4114 = vpack.c.b16 %v3314, %v3298
        %v4115 = vpack.c.b16 %v3315, %v3299
        %v4116 = vpack.c.b16 %v3316, %v3300
        %v4117 = vpack.c.b16 %v3317, %v3301
        %v4118 = vpack.c.b16 %v3318, %v3302
        %v4119 = vpack.c.b16 %v3319, %v3303
        %v4120 = vpack.c.b16 %v3320, %v3304
        %v4121 = vpack.c.b16 %v3321, %v3305
        %v4122 = vpack.c.b16 %v3322, %v3306
        %v4123 = vpack.c.b16 %v3339, %v3323
        %v4124 = vpack.c.b16 %v3340, %v3324
        %v4125 = vpack.c.b16 %v3341, %v3325
        %v4126 = vpack.c.b16 %v3342, %v3326
        %v4127 = vpack.c.b16 %v3343, %v3327
        %v4128 = vpack.c.b16 %v3344, %v3328
        %v4129 = vpack.c.b16 %v3345, %v3329
        %v4130 = vpack.c.b16 %v3346, %v3330
        %v4131 = vpack.c.b16 %v3347, %v3331
        %v4132 = vpack.c.b16 %v3348, %v3332
        %v4133 = vpack.c.b16 %v3349, %v3333
        %v4134 = vpack.c.b16 %v3350, %v3334
        %v4135 = vpack.c.b16 %v3351, %v3335
        %v4136 = vpack.c.b16 %v3352, %v3336
        %v4137 = vpack.c.b16 %v3353, %v3337
        %v4138 = vpack.c.b16 %v3354, %v3338
        %v4139 = vpack.c.b16 %v3371, %v3355
        %v4140 = vpack.c.b16 %v3372, %v3356
        %v4141 = vpack.c.b16 %v3373, %v3357
        %v4142 = vpack.c.b16 %v3374, %v3358
        %v4143 = vpack.c.b16 %v3375, %v3359
        %v4144 = vpack.c.b16 %v3376, %v3360
        %v4145 = vpack.c.b16 %v3377, %v3361
        %v4146 = vpack.c.b16 %v3378, %v3362
        %v4147 = vpack.c.b16 %v3379, %v3363
        %v4148 = vpack.c.b16 %v3380, %v3364
        %v4149 = vpack.c.b16 %v3381, %v3365
        %v4150 = vpack.c.b16 %v3382, %v3366
        %v4151 = vpack.c.b16 %v3383, %v3367
        %v4152 = vpack.c.b16 %v3384, %v3368
        %v4153 = vpack.c.b16 %v3385, %v3369
        %v4154 = vpack.c.b16 %v3386, %v3370
        %v4155 = vpack.c.b16 %v3403, %v3387
        %v4156 = vpack.c.b16 %v3404, %v3388
        %v4157 = vpack.c.b16 %v3405, %v3389
        %v4158 = vpack.c.b16 %v3406, %v3390
        %v4159 = vpack.c.b16 %v3407, %v3391
        %v4160 = vpack.c.b16 %v3408, %v3392
        %v4161 = vpack.c.b16 %v3409, %v3393
        %v4162 = vpack.c.b16 %v3410, %v3394
        %v4163 = vpack.c.b16 %v3411, %v3395
        %v4164 = vpack.c.b16 %v3412, %v3396
        %v4165 = vpack.c.b16 %v3413, %v3397
        %v4166 = vpack.c.b16 %v3414, %v3398
        %v4167 = vpack.c.b16 %v3415, %v3399
        %v4168 = vpack.c.b16 %v3416, %v3400
        %v4169 = vpack.c.b16 %v3417, %v3401
        %v4170 = vpack.c.b16 %v3418, %v3402
        %v4171 = vpack.c.b16 %v3435, %v3419
        %v4172 = vpack.c.b16 %v3436, %v3420
        %v4173 = vpack.c.b16 %v3437, %v3421
        %v4174 = vpack.c.b16 %v3438, %v3422
        %v4175 = vpack.c.b16 %v3439, %v3423
        %v4176 = vpack.c.b16 %v3440, %v3424
        %v4177 = vpack.c.b16 %v3441, %v3425
        %v4178 = vpack.c.b16 %v3442, %v3426
        %v4179 = vpack.c.b16 %v3443, %v3427
        %v4180 = vpack.c.b16 %v3444, %v3428
        %v4181 = vpack.c.b16 %v3445, %v3429
        %v4182 = vpack.c.b16 %v3446, %v3430
        %v4183 = vpack.c.b16 %v3447, %v3431
        %v4184 = vpack.c.b16 %v3448, %v3432
        %v4185 = vpack.c.b16 %v3449, %v3433
        %v4186 = vpack.c.b16 %v3450, %v3434
        %v4187 = vpack.c.b16 %v3467, %v3451
        %v4188 = vpack.c.b16 %v3468, %v3452
        %v4189 = vpack.c.b16 %v3469, %v3453
        %v4190 = vpack.c.b16 %v3470, %v3454
        %v4191 = vpack.c.b16 %v3471, %v3455
        %v4192 = vpack.c.b16 %v3472, %v3456
        %v4193 = vpack.c.b16 %v3473, %v3457
        %v4194 = vpack.c.b16 %v3474, %v3458
        %v4195 = vpack.c.b16 %v3475, %v3459
        %v4196 = vpack.c.b16 %v3476, %v3460
        %v4197 = vpack.c.b16 %v3477, %v3461
        %v4198 = vpack.c.b16 %v3478, %v3462
        %v4199 = vpack.c.b16 %v3479, %v3463
        %v4200 = vpack.c.b16 %v3480, %v3464
        %v4201 = vpack.c.b16 %v3481, %v3465
        %v4202 = vpack.c.b16 %v3482, %v3466
        %v4203 = vpack.c.b16 %v3499, %v3483
        %v4204 = vpack.c.b16 %v3500, %v3484
        %v4205 = vpack.c.b16 %v3501, %v3485
        %v4206 = vpack.c.b16 %v3502, %v3486
        %v4207 = vpack.c.b16 %v3503, %v3487
        %v4208 = vpack.c.b16 %v3504, %v3488
        %v4209 = vpack.c.b16 %v3505, %v3489
        %v4210 = vpack.c.b16 %v3506, %v3490
        %v4211 = vpack.c.b16 %v3507, %v3491
        %v4212 = vpack.c.b16 %v3508, %v3492
        %v4213 = vpack.c.b16 %v3509, %v3493
        %v4214 = vpack.c.b16 %v3510, %v3494
        %v4215 = vpack.c.b16 %v3511, %v3495
        %v4216 = vpack.c.b16 %v3512, %v3496
        %v4217 = vpack.c.b16 %v3513, %v3497
        %v4218 = vpack.c.b16 %v3514, %v3498
        %v4219 = vpack.c.b16 %v3531, %v3515
        %v4220 = vpack.c.b16 %v3532, %v3516
        %v4221 = vpack.c.b16 %v3533, %v3517
        %v4222 = vpack.c.b16 %v3534, %v3518
        %v4223 = vpack.c.b16 %v3535, %v3519
        %v4224 = vpack.c.b16 %v3536, %v3520
        %v4225 = vpack.c.b16 %v3537, %v3521
        %v4226 = vpack.c.b16 %v3538, %v3522
        %v4227 = vpack.c.b16 %v3539, %v3523
        %v4228 = vpack.c.b16 %v3540, %v3524
        %v4229 = vpack.c.b16 %v3541, %v3525
        %v4230 = vpack.c.b16 %v3542, %v3526
        %v4231 = vpack.c.b16 %v3543, %v3527
        %v4232 = vpack.c.b16 %v3544, %v3528
        %v4233 = vpack.c.b16 %v3545, %v3529
        %v4234 = vpack.c.b16 %v3546, %v3530
        %v4235 = vpack.c.b16 %v3563, %v3547
        %v4236 = vpack.c.b16 %v3564, %v3548
        %v4237 = vpack.c.b16 %v3565, %v3549
        %v4238 = vpack.c.b16 %v3566, %v3550
        %v4239 = vpack.c.b16 %v3567, %v3551
        %v4240 = vpack.c.b16 %v3568, %v3552
        %v4241 = vpack.c.b16 %v3569, %v3553
        %v4242 = vpack.c.b16 %v3570, %v3554
        %v4243 = vpack.c.b16 %v3571, %v3555
        %v4244 = vpack.c.b16 %v3572, %v3556
        %v4245 = vpack.c.b16 %v3573, %v3557
        %v4246 = vpack.c.b16 %v3574, %v3558
        %v4247 = vpack.c.b16 %v3575, %v3559
        %v4248 = vpack.c.b16 %v3576, %v3560
        %v4249 = vpack.c.b16 %v3577, %v3561
        %v4250 = vpack.c.b16 %v3578, %v3562
        %v4251 = vpack.c.b16 %v3595, %v3579
        %v4252 = vpack.c.b16 %v3596, %v3580
        %v4253 = vpack.c.b16 %v3597, %v3581
        %v4254 = vpack.c.b16 %v3598, %v3582
        %v4255 = vpack.c.b16 %v3599, %v3583
        %v4256 = vpack.c.b16 %v3600, %v3584
        %v4257 = vpack.c.b16 %v3601, %v3585
        %v4258 = vpack.c.b16 %v3602, %v3586
        %v4259 = vpack.c.b16 %v3603, %v3587
        %v4260 = vpack.c.b16 %v3604, %v3588
        %v4261 = vpack.c.b16 %v3605, %v3589
        %v4262 = vpack.c.b16 %v3606, %v3590
        %v4263 = vpack.c.b16 %v3607, %v3591
        %v4264 = vpack.c.b16 %v3608, %v3592
        %v4265 = vpack.c.b16 %v3609, %v3593
        %v4266 = vpack.c.b16 %v3610, %v3594
        %v4267 = vpack.c.b16 %v3627, %v3611
        %v4268 = vpack.c.b16 %v3628, %v3612
        %v4269 = vpack.c.b16 %v3629, %v3613
        %v4270 = vpack.c.b16 %v3630, %v3614
        %v4271 = vpack.c.b16 %v3631, %v3615
        %v4272 = vpack.c.b16 %v3632, %v3616
        %v4273 = vpack.c.b16 %v3633, %v3617
        %v4274 = vpack.c.b16 %v3634, %v3618
        %v4275 = vpack.c.b16 %v3635, %v3619
        %v4276 = vpack.c.b16 %v3636, %v3620
        %v4277 = vpack.c.b16 %v3637, %v3621
        %v4278 = vpack.c.b16 %v3638, %v3622
        %v4279 = vpack.c.b16 %v3639, %v3623
        %v4280 = vpack.c.b16 %v3640, %v3624
        %v4281 = vpack.c.b16 %v3641, %v3625
        %v4282 = vpack.c.b16 %v3642, %v3626
        %v4283 = vpack.c.b16 %v3659, %v3643
        %v4284 = vpack.c.b16 %v3660, %v3644
        %v4285 = vpack.c.b16 %v3661, %v3645
        %v4286 = vpack.c.b16 %v3662, %v3646
        %v4287 = vpack.c.b16 %v3663, %v3647
        %v4288 = vpack.c.b16 %v3664, %v3648
        %v4289 = vpack.c.b16 %v3665, %v3649
        %v4290 = vpack.c.b16 %v3666, %v3650
        %v4291 = vpack.c.b16 %v3667, %v3651
        %v4292 = vpack.c.b16 %v3668, %v3652
        %v4293 = vpack.c.b16 %v3669, %v3653
        %v4294 = vpack.c.b16 %v3670, %v3654
        %v4295 = vpack.c.b16 %v3671, %v3655
        %v4296 = vpack.c.b16 %v3672, %v3656
        %v4297 = vpack.c.b16 %v3673, %v3657
        %v4298 = vpack.c.b16 %v3674, %v3658
        %v4299 = vpack.c.b16 %v3691, %v3675
        %v4300 = vpack.c.b16 %v3692, %v3676
        %v4301 = vpack.c.b16 %v3693, %v3677
        %v4302 = vpack.c.b16 %v3694, %v3678
        %v4303 = vpack.c.b16 %v3695, %v3679
        %v4304 = vpack.c.b16 %v3696, %v3680
        %v4305 = vpack.c.b16 %v3697, %v3681
        %v4306 = vpack.c.b16 %v3698, %v3682
        %v4307 = vpack.c.b16 %v3699, %v3683
        %v4308 = vpack.c.b16 %v3700, %v3684
        %v4309 = vpack.c.b16 %v3701, %v3685
        %v4310 = vpack.c.b16 %v3702, %v3686
        %v4311 = vpack.c.b16 %v3703, %v3687
        %v4312 = vpack.c.b16 %v3704, %v3688
        %v4313 = vpack.c.b16 %v3705, %v3689
        %v4314 = vpack.c.b16 %v3706, %v3690
        %v4315 = vpack.c.b16 %v3723, %v3707
        %v4316 = vpack.c.b16 %v3724, %v3708
        %v4317 = vpack.c.b16 %v3725, %v3709
        %v4318 = vpack.c.b16 %v3726, %v3710
        %v4319 = vpack.c.b16 %v3727, %v3711
        %v4320 = vpack.c.b16 %v3728, %v3712
        %v4321 = vpack.c.b16 %v3729, %v3713
        %v4322 = vpack.c.b16 %v3730, %v3714
        %v4323 = vpack.c.b16 %v3731, %v3715
        %v4324 = vpack.c.b16 %v3732, %v3716
        %v4325 = vpack.c.b16 %v3733, %v3717
        %v4326 = vpack.c.b16 %v3734, %v3718
        %v4327 = vpack.c.b16 %v3735, %v3719
        %v4328 = vpack.c.b16 %v3736, %v3720
        %v4329 = vpack.c.b16 %v3737, %v3721
        %v4330 = vpack.c.b16 %v3738, %v3722
        %v4331 = vpack.c.b16 %v3755, %v3739
        %v4332 = vpack.c.b16 %v3756, %v3740
        %v4333 = vpack.c.b16 %v3757, %v3741
        %v4334 = vpack.c.b16 %v3758, %v3742
        %v4335 = vpack.c.b16 %v3759, %v3743
        %v4336 = vpack.c.b16 %v3760, %v3744
        %v4337 = vpack.c.b16 %v3761, %v3745
        %v4338 = vpack.c.b16 %v3762, %v3746
        %v4339 = vpack.c.b16 %v3763, %v3747
        %v4340 = vpack.c.b16 %v3764, %v3748
        %v4341 = vpack.c.b16 %v3765, %v3749
        %v4342 = vpack.c.b16 %v3766, %v3750
        %v4343 = vpack.c.b16 %v3767, %v3751
        %v4344 = vpack.c.b16 %v3768, %v3752
        %v4345 = vpack.c.b16 %v3769, %v3753
        %v4346 = vpack.c.b16 %v3770, %v3754
        %vm4923 = vcmask 523264
        %v4925 = vsel %vm4923, %v2038, 0
        %4927 = vmatpush.bf16.msra.mxu0 %v3883
        %4928 = vmatpush.bf16.msra.mxu0 %v3867
        %4929 = vmatpush.bf16.msra.mxu0 %v3851
        %4930 = vmatpush.bf16.msra.mxu0 %v3835
        %4931 = vmatpush.bf16.msra.mxu0 %v3819
        %4932 = vmatpush.bf16.msra.mxu0 %v3803
        %4933 = vmatpush.bf16.msra.mxu0 %v3787
        %4934 = vmatpush.bf16.msra.mxu0 %v3771
        %4935 = vmatmul.bf16.gmra.mxu0 %v2034
        %v4936 = vpop.f32.mrf.mxu0
        %v4937 = vadd.f32 %v2024, %v4936
        %v4938 = vpop.f32.mrf.mxu0
        %4939 = vdwg.mxu0
        %4940 = vmatpush.bf16.msra.mxu0 %v4011
        %4941 = vmatpush.bf16.msra.mxu0 %v3995
        %4942 = vmatpush.bf16.msra.mxu0 %v3979
        %4943 = vmatpush.bf16.msra.mxu0 %v3963
        %4944 = vmatpush.bf16.msra.mxu0 %v3947
        %4945 = vmatpush.bf16.msra.mxu0 %v3931
        %4946 = vmatpush.bf16.msra.mxu0 %v3915
        %4947 = vmatpush.bf16.msra.mxu0 %v3899
        %4948 = vmatmul.bf16.gmra.mxu0 %v2035
        %v4949 = vpop.f32.mrf.mxu0
        %v4950 = vadd.f32 %v4937, %v4949
        %v4951 = vpop.f32.mrf.mxu0
        %4952 = vdwg.mxu0
        %4953 = vmatpush.bf16.msra.mxu0 %v4139
        %4954 = vmatpush.bf16.msra.mxu0 %v4123
        %4955 = vmatpush.bf16.msra.mxu0 %v4107
        %4956 = vmatpush.bf16.msra.mxu0 %v4091
        %4957 = vmatpush.bf16.msra.mxu0 %v4075
        %4958 = vmatpush.bf16.msra.mxu0 %v4059
        %4959 = vmatpush.bf16.msra.mxu0 %v4043
        %4960 = vmatpush.bf16.msra.mxu0 %v4027
        %4961 = vmatmul.bf16.gmra.mxu0 %v2036
        %v4962 = vpop.f32.mrf.mxu0
        %v4963 = vadd.f32 %v4950, %v4962
        %v4964 = vpop.f32.mrf.mxu0
        %4965 = vdwg.mxu0
        %4966 = vmatpush.bf16.msra.mxu0 %v4267
        %4967 = vmatpush.bf16.msra.mxu0 %v4251
        %4968 = vmatpush.bf16.msra.mxu0 %v4235
        %4969 = vmatpush.bf16.msra.mxu0 %v4219
        %4970 = vmatpush.bf16.msra.mxu0 %v4203
        %4971 = vmatpush.bf16.msra.mxu0 %v4187
        %4972 = vmatpush.bf16.msra.mxu0 %v4171
        %4973 = vmatpush.bf16.msra.mxu0 %v4155
        %4974 = vmatmul.bf16.gmra.mxu0 %v2037
        %v4975 = vpop.f32.mrf.mxu0
        %v4976 = vadd.f32 %v4963, %v4975
        %v4977 = vpop.f32.mrf.mxu0
        %4978 = vdwg.mxu0
        %4979 = vmatpush.bf16.msra.mxu0 0
        %4980 = vmatpush.bf16.msra.mxu0 0
        %4981 = vmatpush.bf16.msra.mxu0 0
        %4982 = vmatpush.bf16.msra.mxu0 0
        %4983 = vmatpush.bf16.msra.mxu0 %v4331
        %4984 = vmatpush.bf16.msra.mxu0 %v4315
        %4985 = vmatpush.bf16.msra.mxu0 %v4299
        %4986 = vmatpush.bf16.msra.mxu0 %v4283
        %4987 = vmatmul.bf16.gmra.mxu0 %v4925
        %v4988 = vpop.f32.mrf.mxu0
        %v4989 = vadd.f32 %v4976, %v4988
        %v4990 = vpop.f32.mrf.mxu0
        %4991 = vdwg.mxu0
        %4992 = vmatpush.bf16.msra.mxu0 %v3884
        %4993 = vmatpush.bf16.msra.mxu0 %v3868
        %4994 = vmatpush.bf16.msra.mxu0 %v3852
        %4995 = vmatpush.bf16.msra.mxu0 %v3836
        %4996 = vmatpush.bf16.msra.mxu0 %v3820
        %4997 = vmatpush.bf16.msra.mxu0 %v3804
        %4998 = vmatpush.bf16.msra.mxu0 %v3788
        %4999 = vmatpush.bf16.msra.mxu0 %v3772
        %5000 = vmatmul.bf16.gmra.mxu0 %v2034
        %v5001 = vpop.f32.mrf.mxu0
        %v5002 = vadd.f32 %v2024, %v5001
        %v5003 = vpop.f32.mrf.mxu0
        %5004 = vdwg.mxu0
        %5005 = vmatpush.bf16.msra.mxu0 %v4012
        %5006 = vmatpush.bf16.msra.mxu0 %v3996
        %5007 = vmatpush.bf16.msra.mxu0 %v3980
        %5008 = vmatpush.bf16.msra.mxu0 %v3964
        %5009 = vmatpush.bf16.msra.mxu0 %v3948
        %5010 = vmatpush.bf16.msra.mxu0 %v3932
        %5011 = vmatpush.bf16.msra.mxu0 %v3916
        %5012 = vmatpush.bf16.msra.mxu0 %v3900
        %5013 = vmatmul.bf16.gmra.mxu0 %v2035
        %v5014 = vpop.f32.mrf.mxu0
        %v5015 = vadd.f32 %v5002, %v5014
        %v5016 = vpop.f32.mrf.mxu0
        %5017 = vdwg.mxu0
        %5018 = vmatpush.bf16.msra.mxu0 %v4140
        %5019 = vmatpush.bf16.msra.mxu0 %v4124
        %5020 = vmatpush.bf16.msra.mxu0 %v4108
        %5021 = vmatpush.bf16.msra.mxu0 %v4092
        %5022 = vmatpush.bf16.msra.mxu0 %v4076
        %5023 = vmatpush.bf16.msra.mxu0 %v4060
        %5024 = vmatpush.bf16.msra.mxu0 %v4044
        %5025 = vmatpush.bf16.msra.mxu0 %v4028
        %5026 = vmatmul.bf16.gmra.mxu0 %v2036
        %v5027 = vpop.f32.mrf.mxu0
        %v5028 = vadd.f32 %v5015, %v5027
        %v5029 = vpop.f32.mrf.mxu0
        %5030 = vdwg.mxu0
        %5031 = vmatpush.bf16.msra.mxu0 %v4268
        %5032 = vmatpush.bf16.msra.mxu0 %v4252
        %5033 = vmatpush.bf16.msra.mxu0 %v4236
        %5034 = vmatpush.bf16.msra.mxu0 %v4220
        %5035 = vmatpush.bf16.msra.mxu0 %v4204
        %5036 = vmatpush.bf16.msra.mxu0 %v4188
        %5037 = vmatpush.bf16.msra.mxu0 %v4172
        %5038 = vmatpush.bf16.msra.mxu0 %v4156
        %5039 = vmatmul.bf16.gmra.mxu0 %v2037
        %v5040 = vpop.f32.mrf.mxu0
        %v5041 = vadd.f32 %v5028, %v5040
        %v5042 = vpop.f32.mrf.mxu0
        %5043 = vdwg.mxu0
        %5044 = vmatpush.bf16.msra.mxu0 0
        %5045 = vmatpush.bf16.msra.mxu0 0
        %5046 = vmatpush.bf16.msra.mxu0 0
        %5047 = vmatpush.bf16.msra.mxu0 0
        %5048 = vmatpush.bf16.msra.mxu0 %v4332
        %5049 = vmatpush.bf16.msra.mxu0 %v4316
        %5050 = vmatpush.bf16.msra.mxu0 %v4300
        %5051 = vmatpush.bf16.msra.mxu0 %v4284
        %5052 = vmatmul.bf16.gmra.mxu0 %v4925
        %v5053 = vpop.f32.mrf.mxu0
        %v5054 = vadd.f32 %v5041, %v5053
        %v5055 = vpop.f32.mrf.mxu0
        %5056 = vdwg.mxu0
        %5057 = vmatpush.bf16.msra.mxu0 %v3885
        %5058 = vmatpush.bf16.msra.mxu0 %v3869
        %5059 = vmatpush.bf16.msra.mxu0 %v3853
        %5060 = vmatpush.bf16.msra.mxu0 %v3837
        %5061 = vmatpush.bf16.msra.mxu0 %v3821
        %5062 = vmatpush.bf16.msra.mxu0 %v3805
        %5063 = vmatpush.bf16.msra.mxu0 %v3789
        %5064 = vmatpush.bf16.msra.mxu0 %v3773
        %5065 = vmatmul.bf16.gmra.mxu0 %v2034
        %v5066 = vpop.f32.mrf.mxu0
        %v5067 = vadd.f32 %v2024, %v5066
        %v5068 = vpop.f32.mrf.mxu0
        %5069 = vdwg.mxu0
        %5070 = vmatpush.bf16.msra.mxu0 %v4013
        %5071 = vmatpush.bf16.msra.mxu0 %v3997
        %5072 = vmatpush.bf16.msra.mxu0 %v3981
        %5073 = vmatpush.bf16.msra.mxu0 %v3965
        %5074 = vmatpush.bf16.msra.mxu0 %v3949
        %5075 = vmatpush.bf16.msra.mxu0 %v3933
        %5076 = vmatpush.bf16.msra.mxu0 %v3917
        %5077 = vmatpush.bf16.msra.mxu0 %v3901
        %5078 = vmatmul.bf16.gmra.mxu0 %v2035
        %v5079 = vpop.f32.mrf.mxu0
        %v5080 = vadd.f32 %v5067, %v5079
        %v5081 = vpop.f32.mrf.mxu0
        %5082 = vdwg.mxu0
        %5083 = vmatpush.bf16.msra.mxu0 %v4141
        %5084 = vmatpush.bf16.msra.mxu0 %v4125
        %5085 = vmatpush.bf16.msra.mxu0 %v4109
        %5086 = vmatpush.bf16.msra.mxu0 %v4093
        %5087 = vmatpush.bf16.msra.mxu0 %v4077
        %5088 = vmatpush.bf16.msra.mxu0 %v4061
        %5089 = vmatpush.bf16.msra.mxu0 %v4045
        %5090 = vmatpush.bf16.msra.mxu0 %v4029
        %5091 = vmatmul.bf16.gmra.mxu0 %v2036
        %v5092 = vpop.f32.mrf.mxu0
        %v5093 = vadd.f32 %v5080, %v5092
        %v5094 = vpop.f32.mrf.mxu0
        %5095 = vdwg.mxu0
        %5096 = vmatpush.bf16.msra.mxu0 %v4269
        %5097 = vmatpush.bf16.msra.mxu0 %v4253
        %5098 = vmatpush.bf16.msra.mxu0 %v4237
        %5099 = vmatpush.bf16.msra.mxu0 %v4221
        %5100 = vmatpush.bf16.msra.mxu0 %v4205
        %5101 = vmatpush.bf16.msra.mxu0 %v4189
        %5102 = vmatpush.bf16.msra.mxu0 %v4173
        %5103 = vmatpush.bf16.msra.mxu0 %v4157
        %5104 = vmatmul.bf16.gmra.mxu0 %v2037
        %v5105 = vpop.f32.mrf.mxu0
        %v5106 = vadd.f32 %v5093, %v5105
        %v5107 = vpop.f32.mrf.mxu0
        %5108 = vdwg.mxu0
        %5109 = vmatpush.bf16.msra.mxu0 0
        %5110 = vmatpush.bf16.msra.mxu0 0
        %5111 = vmatpush.bf16.msra.mxu0 0
        %5112 = vmatpush.bf16.msra.mxu0 0
        %5113 = vmatpush.bf16.msra.mxu0 %v4333
        %5114 = vmatpush.bf16.msra.mxu0 %v4317
        %5115 = vmatpush.bf16.msra.mxu0 %v4301
        %5116 = vmatpush.bf16.msra.mxu0 %v4285
        %5117 = vmatmul.bf16.gmra.mxu0 %v4925
        %v5118 = vpop.f32.mrf.mxu0
        %v5119 = vadd.f32 %v5106, %v5118
        %v5120 = vpop.f32.mrf.mxu0
        %5121 = vdwg.mxu0
        %5122 = vmatpush.bf16.msra.mxu0 %v3886
        %5123 = vmatpush.bf16.msra.mxu0 %v3870
        %5124 = vmatpush.bf16.msra.mxu0 %v3854
        %5125 = vmatpush.bf16.msra.mxu0 %v3838
        %5126 = vmatpush.bf16.msra.mxu0 %v3822
        %5127 = vmatpush.bf16.msra.mxu0 %v3806
        %5128 = vmatpush.bf16.msra.mxu0 %v3790
        %5129 = vmatpush.bf16.msra.mxu0 %v3774
        %5130 = vmatmul.bf16.gmra.mxu0 %v2034
        %v5131 = vpop.f32.mrf.mxu0
        %v5132 = vadd.f32 %v2024, %v5131
        %v5133 = vpop.f32.mrf.mxu0
        %5134 = vdwg.mxu0
        %5135 = vmatpush.bf16.msra.mxu0 %v4014
        %5136 = vmatpush.bf16.msra.mxu0 %v3998
        %5137 = vmatpush.bf16.msra.mxu0 %v3982
        %5138 = vmatpush.bf16.msra.mxu0 %v3966
        %5139 = vmatpush.bf16.msra.mxu0 %v3950
        %5140 = vmatpush.bf16.msra.mxu0 %v3934
        %5141 = vmatpush.bf16.msra.mxu0 %v3918
        %5142 = vmatpush.bf16.msra.mxu0 %v3902
        %5143 = vmatmul.bf16.gmra.mxu0 %v2035
        %v5144 = vpop.f32.mrf.mxu0
        %v5145 = vadd.f32 %v5132, %v5144
        %v5146 = vpop.f32.mrf.mxu0
        %5147 = vdwg.mxu0
        %5148 = vmatpush.bf16.msra.mxu0 %v4142
        %5149 = vmatpush.bf16.msra.mxu0 %v4126
        %5150 = vmatpush.bf16.msra.mxu0 %v4110
        %5151 = vmatpush.bf16.msra.mxu0 %v4094
        %5152 = vmatpush.bf16.msra.mxu0 %v4078
        %5153 = vmatpush.bf16.msra.mxu0 %v4062
        %5154 = vmatpush.bf16.msra.mxu0 %v4046
        %5155 = vmatpush.bf16.msra.mxu0 %v4030
        %5156 = vmatmul.bf16.gmra.mxu0 %v2036
        %v5157 = vpop.f32.mrf.mxu0
        %v5158 = vadd.f32 %v5145, %v5157
        %v5159 = vpop.f32.mrf.mxu0
        %5160 = vdwg.mxu0
        %5161 = vmatpush.bf16.msra.mxu0 %v4270
        %5162 = vmatpush.bf16.msra.mxu0 %v4254
        %5163 = vmatpush.bf16.msra.mxu0 %v4238
        %5164 = vmatpush.bf16.msra.mxu0 %v4222
        %5165 = vmatpush.bf16.msra.mxu0 %v4206
        %5166 = vmatpush.bf16.msra.mxu0 %v4190
        %5167 = vmatpush.bf16.msra.mxu0 %v4174
        %5168 = vmatpush.bf16.msra.mxu0 %v4158
        %5169 = vmatmul.bf16.gmra.mxu0 %v2037
        %v5170 = vpop.f32.mrf.mxu0
        %v5171 = vadd.f32 %v5158, %v5170
        %v5172 = vpop.f32.mrf.mxu0
        %5173 = vdwg.mxu0
        %5174 = vmatpush.bf16.msra.mxu0 0
        %5175 = vmatpush.bf16.msra.mxu0 0
        %5176 = vmatpush.bf16.msra.mxu0 0
        %5177 = vmatpush.bf16.msra.mxu0 0
        %5178 = vmatpush.bf16.msra.mxu0 %v4334
        %5179 = vmatpush.bf16.msra.mxu0 %v4318
        %5180 = vmatpush.bf16.msra.mxu0 %v4302
        %5181 = vmatpush.bf16.msra.mxu0 %v4286
        %5182 = vmatmul.bf16.gmra.mxu0 %v4925
        %v5183 = vpop.f32.mrf.mxu0
        %v5184 = vadd.f32 %v5171, %v5183
        %v5185 = vpop.f32.mrf.mxu0
        %5186 = vdwg.mxu0
        %5187 = vmatpush.bf16.msra.mxu0 %v3887
        %5188 = vmatpush.bf16.msra.mxu0 %v3871
        %5189 = vmatpush.bf16.msra.mxu0 %v3855
        %5190 = vmatpush.bf16.msra.mxu0 %v3839
        %5191 = vmatpush.bf16.msra.mxu0 %v3823
        %5192 = vmatpush.bf16.msra.mxu0 %v3807
        %5193 = vmatpush.bf16.msra.mxu0 %v3791
        %5194 = vmatpush.bf16.msra.mxu0 %v3775
        %5195 = vmatmul.bf16.gmra.mxu0 %v2034
        %v5196 = vpop.f32.mrf.mxu0
        %v5197 = vadd.f32 %v2024, %v5196
        %v5198 = vpop.f32.mrf.mxu0
        %5199 = vdwg.mxu0
        %5200 = vmatpush.bf16.msra.mxu0 %v4015
        %5201 = vmatpush.bf16.msra.mxu0 %v3999
        %5202 = vmatpush.bf16.msra.mxu0 %v3983
        %5203 = vmatpush.bf16.msra.mxu0 %v3967
        %5204 = vmatpush.bf16.msra.mxu0 %v3951
        %5205 = vmatpush.bf16.msra.mxu0 %v3935
        %5206 = vmatpush.bf16.msra.mxu0 %v3919
        %5207 = vmatpush.bf16.msra.mxu0 %v3903
        %5208 = vmatmul.bf16.gmra.mxu0 %v2035
        %v5209 = vpop.f32.mrf.mxu0
        %v5210 = vadd.f32 %v5197, %v5209
        %v5211 = vpop.f32.mrf.mxu0
        %5212 = vdwg.mxu0
        %5213 = vmatpush.bf16.msra.mxu0 %v4143
        %5214 = vmatpush.bf16.msra.mxu0 %v4127
        %5215 = vmatpush.bf16.msra.mxu0 %v4111
        %5216 = vmatpush.bf16.msra.mxu0 %v4095
        %5217 = vmatpush.bf16.msra.mxu0 %v4079
        %5218 = vmatpush.bf16.msra.mxu0 %v4063
        %5219 = vmatpush.bf16.msra.mxu0 %v4047
        %5220 = vmatpush.bf16.msra.mxu0 %v4031
        %5221 = vmatmul.bf16.gmra.mxu0 %v2036
        %v5222 = vpop.f32.mrf.mxu0
        %v5223 = vadd.f32 %v5210, %v5222
        %v5224 = vpop.f32.mrf.mxu0
        %5225 = vdwg.mxu0
        %5226 = vmatpush.bf16.msra.mxu0 %v4271
        %5227 = vmatpush.bf16.msra.mxu0 %v4255
        %5228 = vmatpush.bf16.msra.mxu0 %v4239
        %5229 = vmatpush.bf16.msra.mxu0 %v4223
        %5230 = vmatpush.bf16.msra.mxu0 %v4207
        %5231 = vmatpush.bf16.msra.mxu0 %v4191
        %5232 = vmatpush.bf16.msra.mxu0 %v4175
        %5233 = vmatpush.bf16.msra.mxu0 %v4159
        %5234 = vmatmul.bf16.gmra.mxu0 %v2037
        %v5235 = vpop.f32.mrf.mxu0
        %v5236 = vadd.f32 %v5223, %v5235
        %v5237 = vpop.f32.mrf.mxu0
        %5238 = vdwg.mxu0
        %5239 = vmatpush.bf16.msra.mxu0 0
        %5240 = vmatpush.bf16.msra.mxu0 0
        %5241 = vmatpush.bf16.msra.mxu0 0
        %5242 = vmatpush.bf16.msra.mxu0 0
        %5243 = vmatpush.bf16.msra.mxu0 %v4335
        %5244 = vmatpush.bf16.msra.mxu0 %v4319
        %5245 = vmatpush.bf16.msra.mxu0 %v4303
        %5246 = vmatpush.bf16.msra.mxu0 %v4287
        %5247 = vmatmul.bf16.gmra.mxu0 %v4925
        %v5248 = vpop.f32.mrf.mxu0
        %v5249 = vadd.f32 %v5236, %v5248
        %v5250 = vpop.f32.mrf.mxu0
        %5251 = vdwg.mxu0
        %5252 = vmatpush.bf16.msra.mxu0 %v3888
        %5253 = vmatpush.bf16.msra.mxu0 %v3872
        %5254 = vmatpush.bf16.msra.mxu0 %v3856
        %5255 = vmatpush.bf16.msra.mxu0 %v3840
        %5256 = vmatpush.bf16.msra.mxu0 %v3824
        %5257 = vmatpush.bf16.msra.mxu0 %v3808
        %5258 = vmatpush.bf16.msra.mxu0 %v3792
        %5259 = vmatpush.bf16.msra.mxu0 %v3776
        %5260 = vmatmul.bf16.gmra.mxu0 %v2034
        %v5261 = vpop.f32.mrf.mxu0
        %v5262 = vadd.f32 %v2024, %v5261
        %v5263 = vpop.f32.mrf.mxu0
        %5264 = vdwg.mxu0
        %5265 = vmatpush.bf16.msra.mxu0 %v4016
        %5266 = vmatpush.bf16.msra.mxu0 %v4000
        %5267 = vmatpush.bf16.msra.mxu0 %v3984
        %5268 = vmatpush.bf16.msra.mxu0 %v3968
        %5269 = vmatpush.bf16.msra.mxu0 %v3952
        %5270 = vmatpush.bf16.msra.mxu0 %v3936
        %5271 = vmatpush.bf16.msra.mxu0 %v3920
        %5272 = vmatpush.bf16.msra.mxu0 %v3904
        %5273 = vmatmul.bf16.gmra.mxu0 %v2035
        %v5274 = vpop.f32.mrf.mxu0
        %v5275 = vadd.f32 %v5262, %v5274
        %v5276 = vpop.f32.mrf.mxu0
        %5277 = vdwg.mxu0
        %5278 = vmatpush.bf16.msra.mxu0 %v4144
        %5279 = vmatpush.bf16.msra.mxu0 %v4128
        %5280 = vmatpush.bf16.msra.mxu0 %v4112
        %5281 = vmatpush.bf16.msra.mxu0 %v4096
        %5282 = vmatpush.bf16.msra.mxu0 %v4080
        %5283 = vmatpush.bf16.msra.mxu0 %v4064
        %5284 = vmatpush.bf16.msra.mxu0 %v4048
        %5285 = vmatpush.bf16.msra.mxu0 %v4032
        %5286 = vmatmul.bf16.gmra.mxu0 %v2036
        %v5287 = vpop.f32.mrf.mxu0
        %v5288 = vadd.f32 %v5275, %v5287
        %v5289 = vpop.f32.mrf.mxu0
        %5290 = vdwg.mxu0
        %5291 = vmatpush.bf16.msra.mxu0 %v4272
        %5292 = vmatpush.bf16.msra.mxu0 %v4256
        %5293 = vmatpush.bf16.msra.mxu0 %v4240
        %5294 = vmatpush.bf16.msra.mxu0 %v4224
        %5295 = vmatpush.bf16.msra.mxu0 %v4208
        %5296 = vmatpush.bf16.msra.mxu0 %v4192
        %5297 = vmatpush.bf16.msra.mxu0 %v4176
        %5298 = vmatpush.bf16.msra.mxu0 %v4160
        %5299 = vmatmul.bf16.gmra.mxu0 %v2037
        %v5300 = vpop.f32.mrf.mxu0
        %v5301 = vadd.f32 %v5288, %v5300
        %v5302 = vpop.f32.mrf.mxu0
        %5303 = vdwg.mxu0
        %5304 = vmatpush.bf16.msra.mxu0 0
        %5305 = vmatpush.bf16.msra.mxu0 0
        %5306 = vmatpush.bf16.msra.mxu0 0
        %5307 = vmatpush.bf16.msra.mxu0 0
        %5308 = vmatpush.bf16.msra.mxu0 %v4336
        %5309 = vmatpush.bf16.msra.mxu0 %v4320
        %5310 = vmatpush.bf16.msra.mxu0 %v4304
        %5311 = vmatpush.bf16.msra.mxu0 %v4288
        %5312 = vmatmul.bf16.gmra.mxu0 %v4925
        %v5313 = vpop.f32.mrf.mxu0
        %v5314 = vadd.f32 %v5301, %v5313
        %v5315 = vpop.f32.mrf.mxu0
        %5316 = vdwg.mxu0
        %5317 = vmatpush.bf16.msra.mxu0 %v3889
        %5318 = vmatpush.bf16.msra.mxu0 %v3873
        %5319 = vmatpush.bf16.msra.mxu0 %v3857
        %5320 = vmatpush.bf16.msra.mxu0 %v3841
        %5321 = vmatpush.bf16.msra.mxu0 %v3825
        %5322 = vmatpush.bf16.msra.mxu0 %v3809
        %5323 = vmatpush.bf16.msra.mxu0 %v3793
        %5324 = vmatpush.bf16.msra.mxu0 %v3777
        %5325 = vmatmul.bf16.gmra.mxu0 %v2034
        %v5326 = vpop.f32.mrf.mxu0
        %v5327 = vadd.f32 %v2024, %v5326
        %v5328 = vpop.f32.mrf.mxu0
        %5329 = vdwg.mxu0
        %5330 = vmatpush.bf16.msra.mxu0 %v4017
        %5331 = vmatpush.bf16.msra.mxu0 %v4001
        %5332 = vmatpush.bf16.msra.mxu0 %v3985
        %5333 = vmatpush.bf16.msra.mxu0 %v3969
        %5334 = vmatpush.bf16.msra.mxu0 %v3953
        %5335 = vmatpush.bf16.msra.mxu0 %v3937
        %5336 = vmatpush.bf16.msra.mxu0 %v3921
        %5337 = vmatpush.bf16.msra.mxu0 %v3905
        %5338 = vmatmul.bf16.gmra.mxu0 %v2035
        %v5339 = vpop.f32.mrf.mxu0
        %v5340 = vadd.f32 %v5327, %v5339
        %v5341 = vpop.f32.mrf.mxu0
        %5342 = vdwg.mxu0
        %5343 = vmatpush.bf16.msra.mxu0 %v4145
        %5344 = vmatpush.bf16.msra.mxu0 %v4129
        %5345 = vmatpush.bf16.msra.mxu0 %v4113
        %5346 = vmatpush.bf16.msra.mxu0 %v4097
        %5347 = vmatpush.bf16.msra.mxu0 %v4081
        %5348 = vmatpush.bf16.msra.mxu0 %v4065
        %5349 = vmatpush.bf16.msra.mxu0 %v4049
        %5350 = vmatpush.bf16.msra.mxu0 %v4033
        %5351 = vmatmul.bf16.gmra.mxu0 %v2036
        %v5352 = vpop.f32.mrf.mxu0
        %v5353 = vadd.f32 %v5340, %v5352
        %v5354 = vpop.f32.mrf.mxu0
        %5355 = vdwg.mxu0
        %5356 = vmatpush.bf16.msra.mxu0 %v4273
        %5357 = vmatpush.bf16.msra.mxu0 %v4257
        %5358 = vmatpush.bf16.msra.mxu0 %v4241
        %5359 = vmatpush.bf16.msra.mxu0 %v4225
        %5360 = vmatpush.bf16.msra.mxu0 %v4209
        %5361 = vmatpush.bf16.msra.mxu0 %v4193
        %5362 = vmatpush.bf16.msra.mxu0 %v4177
        %5363 = vmatpush.bf16.msra.mxu0 %v4161
        %5364 = vmatmul.bf16.gmra.mxu0 %v2037
        %v5365 = vpop.f32.mrf.mxu0
        %v5366 = vadd.f32 %v5353, %v5365
        %v5367 = vpop.f32.mrf.mxu0
        %5368 = vdwg.mxu0
        %5369 = vmatpush.bf16.msra.mxu0 0
        %5370 = vmatpush.bf16.msra.mxu0 0
        %5371 = vmatpush.bf16.msra.mxu0 0
        %5372 = vmatpush.bf16.msra.mxu0 0
        %5373 = vmatpush.bf16.msra.mxu0 %v4337
        %5374 = vmatpush.bf16.msra.mxu0 %v4321
        %5375 = vmatpush.bf16.msra.mxu0 %v4305
        %5376 = vmatpush.bf16.msra.mxu0 %v4289
        %5377 = vmatmul.bf16.gmra.mxu0 %v4925
        %v5378 = vpop.f32.mrf.mxu0
        %v5379 = vadd.f32 %v5366, %v5378
        %v5380 = vpop.f32.mrf.mxu0
        %5381 = vdwg.mxu0
        %5382 = vmatpush.bf16.msra.mxu0 %v3890
        %5383 = vmatpush.bf16.msra.mxu0 %v3874
        %5384 = vmatpush.bf16.msra.mxu0 %v3858
        %5385 = vmatpush.bf16.msra.mxu0 %v3842
        %5386 = vmatpush.bf16.msra.mxu0 %v3826
        %5387 = vmatpush.bf16.msra.mxu0 %v3810
        %5388 = vmatpush.bf16.msra.mxu0 %v3794
        %5389 = vmatpush.bf16.msra.mxu0 %v3778
        %5390 = vmatmul.bf16.gmra.mxu0 %v2034
        %v5391 = vpop.f32.mrf.mxu0
        %v5392 = vadd.f32 %v2024, %v5391
        %v5393 = vpop.f32.mrf.mxu0
        %5394 = vdwg.mxu0
        %5395 = vmatpush.bf16.msra.mxu0 %v4018
        %5396 = vmatpush.bf16.msra.mxu0 %v4002
        %5397 = vmatpush.bf16.msra.mxu0 %v3986
        %5398 = vmatpush.bf16.msra.mxu0 %v3970
        %5399 = vmatpush.bf16.msra.mxu0 %v3954
        %5400 = vmatpush.bf16.msra.mxu0 %v3938
        %5401 = vmatpush.bf16.msra.mxu0 %v3922
        %5402 = vmatpush.bf16.msra.mxu0 %v3906
        %5403 = vmatmul.bf16.gmra.mxu0 %v2035
        %v5404 = vpop.f32.mrf.mxu0
        %v5405 = vadd.f32 %v5392, %v5404
        %v5406 = vpop.f32.mrf.mxu0
        %5407 = vdwg.mxu0
        %5408 = vmatpush.bf16.msra.mxu0 %v4146
        %5409 = vmatpush.bf16.msra.mxu0 %v4130
        %5410 = vmatpush.bf16.msra.mxu0 %v4114
        %5411 = vmatpush.bf16.msra.mxu0 %v4098
        %5412 = vmatpush.bf16.msra.mxu0 %v4082
        %5413 = vmatpush.bf16.msra.mxu0 %v4066
        %5414 = vmatpush.bf16.msra.mxu0 %v4050
        %5415 = vmatpush.bf16.msra.mxu0 %v4034
        %5416 = vmatmul.bf16.gmra.mxu0 %v2036
        %v5417 = vpop.f32.mrf.mxu0
        %v5418 = vadd.f32 %v5405, %v5417
        %v5419 = vpop.f32.mrf.mxu0
        %5420 = vdwg.mxu0
        %5421 = vmatpush.bf16.msra.mxu0 %v4274
        %5422 = vmatpush.bf16.msra.mxu0 %v4258
        %5423 = vmatpush.bf16.msra.mxu0 %v4242
        %5424 = vmatpush.bf16.msra.mxu0 %v4226
        %5425 = vmatpush.bf16.msra.mxu0 %v4210
        %5426 = vmatpush.bf16.msra.mxu0 %v4194
        %5427 = vmatpush.bf16.msra.mxu0 %v4178
        %5428 = vmatpush.bf16.msra.mxu0 %v4162
        %5429 = vmatmul.bf16.gmra.mxu0 %v2037
        %v5430 = vpop.f32.mrf.mxu0
        %v5431 = vadd.f32 %v5418, %v5430
        %v5432 = vpop.f32.mrf.mxu0
        %5433 = vdwg.mxu0
        %5434 = vmatpush.bf16.msra.mxu0 0
        %5435 = vmatpush.bf16.msra.mxu0 0
        %5436 = vmatpush.bf16.msra.mxu0 0
        %5437 = vmatpush.bf16.msra.mxu0 0
        %5438 = vmatpush.bf16.msra.mxu0 %v4338
        %5439 = vmatpush.bf16.msra.mxu0 %v4322
        %5440 = vmatpush.bf16.msra.mxu0 %v4306
        %5441 = vmatpush.bf16.msra.mxu0 %v4290
        %5442 = vmatmul.bf16.gmra.mxu0 %v4925
        %v5443 = vpop.f32.mrf.mxu0
        %v5444 = vadd.f32 %v5431, %v5443
        %v5445 = vpop.f32.mrf.mxu0
        %5446 = vdwg.mxu0
        %5447 = vmatpush.bf16.msra.mxu0 %v3891
        %5448 = vmatpush.bf16.msra.mxu0 %v3875
        %5449 = vmatpush.bf16.msra.mxu0 %v3859
        %5450 = vmatpush.bf16.msra.mxu0 %v3843
        %5451 = vmatpush.bf16.msra.mxu0 %v3827
        %5452 = vmatpush.bf16.msra.mxu0 %v3811
        %5453 = vmatpush.bf16.msra.mxu0 %v3795
        %5454 = vmatpush.bf16.msra.mxu0 %v3779
        %5455 = vmatmul.bf16.gmra.mxu0 %v2034
        %v5456 = vpop.f32.mrf.mxu0
        %v5457 = vadd.f32 %v2024, %v5456
        %v5458 = vpop.f32.mrf.mxu0
        %5459 = vdwg.mxu0
        %5460 = vmatpush.bf16.msra.mxu0 %v4019
        %5461 = vmatpush.bf16.msra.mxu0 %v4003
        %5462 = vmatpush.bf16.msra.mxu0 %v3987
        %5463 = vmatpush.bf16.msra.mxu0 %v3971
        %5464 = vmatpush.bf16.msra.mxu0 %v3955
        %5465 = vmatpush.bf16.msra.mxu0 %v3939
        %5466 = vmatpush.bf16.msra.mxu0 %v3923
        %5467 = vmatpush.bf16.msra.mxu0 %v3907
        %5468 = vmatmul.bf16.gmra.mxu0 %v2035
        %v5469 = vpop.f32.mrf.mxu0
        %v5470 = vadd.f32 %v5457, %v5469
        %v5471 = vpop.f32.mrf.mxu0
        %5472 = vdwg.mxu0
        %5473 = vmatpush.bf16.msra.mxu0 %v4147
        %5474 = vmatpush.bf16.msra.mxu0 %v4131
        %5475 = vmatpush.bf16.msra.mxu0 %v4115
        %5476 = vmatpush.bf16.msra.mxu0 %v4099
        %5477 = vmatpush.bf16.msra.mxu0 %v4083
        %5478 = vmatpush.bf16.msra.mxu0 %v4067
        %5479 = vmatpush.bf16.msra.mxu0 %v4051
        %5480 = vmatpush.bf16.msra.mxu0 %v4035
        %5481 = vmatmul.bf16.gmra.mxu0 %v2036
        %v5482 = vpop.f32.mrf.mxu0
        %v5483 = vadd.f32 %v5470, %v5482
        %v5484 = vpop.f32.mrf.mxu0
        %5485 = vdwg.mxu0
        %5486 = vmatpush.bf16.msra.mxu0 %v4275
        %5487 = vmatpush.bf16.msra.mxu0 %v4259
        %5488 = vmatpush.bf16.msra.mxu0 %v4243
        %5489 = vmatpush.bf16.msra.mxu0 %v4227
        %5490 = vmatpush.bf16.msra.mxu0 %v4211
        %5491 = vmatpush.bf16.msra.mxu0 %v4195
        %5492 = vmatpush.bf16.msra.mxu0 %v4179
        %5493 = vmatpush.bf16.msra.mxu0 %v4163
        %5494 = vmatmul.bf16.gmra.mxu0 %v2037
        %v5495 = vpop.f32.mrf.mxu0
        %v5496 = vadd.f32 %v5483, %v5495
        %v5497 = vpop.f32.mrf.mxu0
        %5498 = vdwg.mxu0
        %5499 = vmatpush.bf16.msra.mxu0 0
        %5500 = vmatpush.bf16.msra.mxu0 0
        %5501 = vmatpush.bf16.msra.mxu0 0
        %5502 = vmatpush.bf16.msra.mxu0 0
        %5503 = vmatpush.bf16.msra.mxu0 %v4339
        %5504 = vmatpush.bf16.msra.mxu0 %v4323
        %5505 = vmatpush.bf16.msra.mxu0 %v4307
        %5506 = vmatpush.bf16.msra.mxu0 %v4291
        %5507 = vmatmul.bf16.gmra.mxu0 %v4925
        %v5508 = vpop.f32.mrf.mxu0
        %v5509 = vadd.f32 %v5496, %v5508
        %v5510 = vpop.f32.mrf.mxu0
        %5511 = vdwg.mxu0
        %5512 = vmatpush.bf16.msra.mxu0 %v3892
        %5513 = vmatpush.bf16.msra.mxu0 %v3876
        %5514 = vmatpush.bf16.msra.mxu0 %v3860
        %5515 = vmatpush.bf16.msra.mxu0 %v3844
        %5516 = vmatpush.bf16.msra.mxu0 %v3828
        %5517 = vmatpush.bf16.msra.mxu0 %v3812
        %5518 = vmatpush.bf16.msra.mxu0 %v3796
        %5519 = vmatpush.bf16.msra.mxu0 %v3780
        %5520 = vmatmul.bf16.gmra.mxu0 %v2034
        %v5521 = vpop.f32.mrf.mxu0
        %v5522 = vadd.f32 %v2024, %v5521
        %v5523 = vpop.f32.mrf.mxu0
        %5524 = vdwg.mxu0
        %5525 = vmatpush.bf16.msra.mxu0 %v4020
        %5526 = vmatpush.bf16.msra.mxu0 %v4004
        %5527 = vmatpush.bf16.msra.mxu0 %v3988
        %5528 = vmatpush.bf16.msra.mxu0 %v3972
        %5529 = vmatpush.bf16.msra.mxu0 %v3956
        %5530 = vmatpush.bf16.msra.mxu0 %v3940
        %5531 = vmatpush.bf16.msra.mxu0 %v3924
        %5532 = vmatpush.bf16.msra.mxu0 %v3908
        %5533 = vmatmul.bf16.gmra.mxu0 %v2035
        %v5534 = vpop.f32.mrf.mxu0
        %v5535 = vadd.f32 %v5522, %v5534
        %v5536 = vpop.f32.mrf.mxu0
        %5537 = vdwg.mxu0
        %5538 = vmatpush.bf16.msra.mxu0 %v4148
        %5539 = vmatpush.bf16.msra.mxu0 %v4132
        %5540 = vmatpush.bf16.msra.mxu0 %v4116
        %5541 = vmatpush.bf16.msra.mxu0 %v4100
        %5542 = vmatpush.bf16.msra.mxu0 %v4084
        %5543 = vmatpush.bf16.msra.mxu0 %v4068
        %5544 = vmatpush.bf16.msra.mxu0 %v4052
        %5545 = vmatpush.bf16.msra.mxu0 %v4036
        %5546 = vmatmul.bf16.gmra.mxu0 %v2036
        %v5547 = vpop.f32.mrf.mxu0
        %v5548 = vadd.f32 %v5535, %v5547
        %v5549 = vpop.f32.mrf.mxu0
        %5550 = vdwg.mxu0
        %5551 = vmatpush.bf16.msra.mxu0 %v4276
        %5552 = vmatpush.bf16.msra.mxu0 %v4260
        %5553 = vmatpush.bf16.msra.mxu0 %v4244
        %5554 = vmatpush.bf16.msra.mxu0 %v4228
        %5555 = vmatpush.bf16.msra.mxu0 %v4212
        %5556 = vmatpush.bf16.msra.mxu0 %v4196
        %5557 = vmatpush.bf16.msra.mxu0 %v4180
        %5558 = vmatpush.bf16.msra.mxu0 %v4164
        %5559 = vmatmul.bf16.gmra.mxu0 %v2037
        %v5560 = vpop.f32.mrf.mxu0
        %v5561 = vadd.f32 %v5548, %v5560
        %v5562 = vpop.f32.mrf.mxu0
        %5563 = vdwg.mxu0
        %5564 = vmatpush.bf16.msra.mxu0 0
        %5565 = vmatpush.bf16.msra.mxu0 0
        %5566 = vmatpush.bf16.msra.mxu0 0
        %5567 = vmatpush.bf16.msra.mxu0 0
        %5568 = vmatpush.bf16.msra.mxu0 %v4340
        %5569 = vmatpush.bf16.msra.mxu0 %v4324
        %5570 = vmatpush.bf16.msra.mxu0 %v4308
        %5571 = vmatpush.bf16.msra.mxu0 %v4292
        %5572 = vmatmul.bf16.gmra.mxu0 %v4925
        %v5573 = vpop.f32.mrf.mxu0
        %v5574 = vadd.f32 %v5561, %v5573
        %v5575 = vpop.f32.mrf.mxu0
        %5576 = vdwg.mxu0
        %5577 = vmatpush.bf16.msra.mxu0 %v3893
        %5578 = vmatpush.bf16.msra.mxu0 %v3877
        %5579 = vmatpush.bf16.msra.mxu0 %v3861
        %5580 = vmatpush.bf16.msra.mxu0 %v3845
        %5581 = vmatpush.bf16.msra.mxu0 %v3829
        %5582 = vmatpush.bf16.msra.mxu0 %v3813
        %5583 = vmatpush.bf16.msra.mxu0 %v3797
        %5584 = vmatpush.bf16.msra.mxu0 %v3781
        %5585 = vmatmul.bf16.gmra.mxu0 %v2034
        %v5586 = vpop.f32.mrf.mxu0
        %v5587 = vadd.f32 %v2024, %v5586
        %v5588 = vpop.f32.mrf.mxu0
        %5589 = vdwg.mxu0
        %5590 = vmatpush.bf16.msra.mxu0 %v4021
        %5591 = vmatpush.bf16.msra.mxu0 %v4005
        %5592 = vmatpush.bf16.msra.mxu0 %v3989
        %5593 = vmatpush.bf16.msra.mxu0 %v3973
        %5594 = vmatpush.bf16.msra.mxu0 %v3957
        %5595 = vmatpush.bf16.msra.mxu0 %v3941
        %5596 = vmatpush.bf16.msra.mxu0 %v3925
        %5597 = vmatpush.bf16.msra.mxu0 %v3909
        %5598 = vmatmul.bf16.gmra.mxu0 %v2035
        %v5599 = vpop.f32.mrf.mxu0
        %v5600 = vadd.f32 %v5587, %v5599
        %v5601 = vpop.f32.mrf.mxu0
        %5602 = vdwg.mxu0
        %5603 = vmatpush.bf16.msra.mxu0 %v4149
        %5604 = vmatpush.bf16.msra.mxu0 %v4133
        %5605 = vmatpush.bf16.msra.mxu0 %v4117
        %5606 = vmatpush.bf16.msra.mxu0 %v4101
        %5607 = vmatpush.bf16.msra.mxu0 %v4085
        %5608 = vmatpush.bf16.msra.mxu0 %v4069
        %5609 = vmatpush.bf16.msra.mxu0 %v4053
        %5610 = vmatpush.bf16.msra.mxu0 %v4037
        %5611 = vmatmul.bf16.gmra.mxu0 %v2036
        %v5612 = vpop.f32.mrf.mxu0
        %v5613 = vadd.f32 %v5600, %v5612
        %v5614 = vpop.f32.mrf.mxu0
        %5615 = vdwg.mxu0
        %5616 = vmatpush.bf16.msra.mxu0 %v4277
        %5617 = vmatpush.bf16.msra.mxu0 %v4261
        %5618 = vmatpush.bf16.msra.mxu0 %v4245
        %5619 = vmatpush.bf16.msra.mxu0 %v4229
        %5620 = vmatpush.bf16.msra.mxu0 %v4213
        %5621 = vmatpush.bf16.msra.mxu0 %v4197
        %5622 = vmatpush.bf16.msra.mxu0 %v4181
        %5623 = vmatpush.bf16.msra.mxu0 %v4165
        %5624 = vmatmul.bf16.gmra.mxu0 %v2037
        %v5625 = vpop.f32.mrf.mxu0
        %v5626 = vadd.f32 %v5613, %v5625
        %v5627 = vpop.f32.mrf.mxu0
        %5628 = vdwg.mxu0
        %5629 = vmatpush.bf16.msra.mxu0 0
        %5630 = vmatpush.bf16.msra.mxu0 0
        %5631 = vmatpush.bf16.msra.mxu0 0
        %5632 = vmatpush.bf16.msra.mxu0 0
        %5633 = vmatpush.bf16.msra.mxu0 %v4341
        %5634 = vmatpush.bf16.msra.mxu0 %v4325
        %5635 = vmatpush.bf16.msra.mxu0 %v4309
        %5636 = vmatpush.bf16.msra.mxu0 %v4293
        %5637 = vmatmul.bf16.gmra.mxu0 %v4925
        %v5638 = vpop.f32.mrf.mxu0
        %v5639 = vadd.f32 %v5626, %v5638
        %v5640 = vpop.f32.mrf.mxu0
        %5641 = vdwg.mxu0
        %5642 = vmatpush.bf16.msra.mxu0 %v3894
        %5643 = vmatpush.bf16.msra.mxu0 %v3878
        %5644 = vmatpush.bf16.msra.mxu0 %v3862
        %5645 = vmatpush.bf16.msra.mxu0 %v3846
        %5646 = vmatpush.bf16.msra.mxu0 %v3830
        %5647 = vmatpush.bf16.msra.mxu0 %v3814
        %5648 = vmatpush.bf16.msra.mxu0 %v3798
        %5649 = vmatpush.bf16.msra.mxu0 %v3782
        %5650 = vmatmul.bf16.gmra.mxu0 %v2034
        %v5651 = vpop.f32.mrf.mxu0
        %v5652 = vadd.f32 %v2024, %v5651
        %v5653 = vpop.f32.mrf.mxu0
        %5654 = vdwg.mxu0
        %5655 = vmatpush.bf16.msra.mxu0 %v4022
        %5656 = vmatpush.bf16.msra.mxu0 %v4006
        %5657 = vmatpush.bf16.msra.mxu0 %v3990
        %5658 = vmatpush.bf16.msra.mxu0 %v3974
        %5659 = vmatpush.bf16.msra.mxu0 %v3958
        %5660 = vmatpush.bf16.msra.mxu0 %v3942
        %5661 = vmatpush.bf16.msra.mxu0 %v3926
        %5662 = vmatpush.bf16.msra.mxu0 %v3910
        %5663 = vmatmul.bf16.gmra.mxu0 %v2035
        %v5664 = vpop.f32.mrf.mxu0
        %v5665 = vadd.f32 %v5652, %v5664
        %v5666 = vpop.f32.mrf.mxu0
        %5667 = vdwg.mxu0
        %5668 = vmatpush.bf16.msra.mxu0 %v4150
        %5669 = vmatpush.bf16.msra.mxu0 %v4134
        %5670 = vmatpush.bf16.msra.mxu0 %v4118
        %5671 = vmatpush.bf16.msra.mxu0 %v4102
        %5672 = vmatpush.bf16.msra.mxu0 %v4086
        %5673 = vmatpush.bf16.msra.mxu0 %v4070
        %5674 = vmatpush.bf16.msra.mxu0 %v4054
        %5675 = vmatpush.bf16.msra.mxu0 %v4038
        %5676 = vmatmul.bf16.gmra.mxu0 %v2036
        %v5677 = vpop.f32.mrf.mxu0
        %v5678 = vadd.f32 %v5665, %v5677
        %v5679 = vpop.f32.mrf.mxu0
        %5680 = vdwg.mxu0
        %5681 = vmatpush.bf16.msra.mxu0 %v4278
        %5682 = vmatpush.bf16.msra.mxu0 %v4262
        %5683 = vmatpush.bf16.msra.mxu0 %v4246
        %5684 = vmatpush.bf16.msra.mxu0 %v4230
        %5685 = vmatpush.bf16.msra.mxu0 %v4214
        %5686 = vmatpush.bf16.msra.mxu0 %v4198
        %5687 = vmatpush.bf16.msra.mxu0 %v4182
        %5688 = vmatpush.bf16.msra.mxu0 %v4166
        %5689 = vmatmul.bf16.gmra.mxu0 %v2037
        %v5690 = vpop.f32.mrf.mxu0
        %v5691 = vadd.f32 %v5678, %v5690
        %v5692 = vpop.f32.mrf.mxu0
        %5693 = vdwg.mxu0
        %5694 = vmatpush.bf16.msra.mxu0 0
        %5695 = vmatpush.bf16.msra.mxu0 0
        %5696 = vmatpush.bf16.msra.mxu0 0
        %5697 = vmatpush.bf16.msra.mxu0 0
        %5698 = vmatpush.bf16.msra.mxu0 %v4342
        %5699 = vmatpush.bf16.msra.mxu0 %v4326
        %5700 = vmatpush.bf16.msra.mxu0 %v4310
        %5701 = vmatpush.bf16.msra.mxu0 %v4294
        %5702 = vmatmul.bf16.gmra.mxu0 %v4925
        %v5703 = vpop.f32.mrf.mxu0
        %v5704 = vadd.f32 %v5691, %v5703
        %v5705 = vpop.f32.mrf.mxu0
        %5706 = vdwg.mxu0
        %5707 = vmatpush.bf16.msra.mxu0 %v3895
        %5708 = vmatpush.bf16.msra.mxu0 %v3879
        %5709 = vmatpush.bf16.msra.mxu0 %v3863
        %5710 = vmatpush.bf16.msra.mxu0 %v3847
        %5711 = vmatpush.bf16.msra.mxu0 %v3831
        %5712 = vmatpush.bf16.msra.mxu0 %v3815
        %5713 = vmatpush.bf16.msra.mxu0 %v3799
        %5714 = vmatpush.bf16.msra.mxu0 %v3783
        %5715 = vmatmul.bf16.gmra.mxu0 %v2034
        %v5716 = vpop.f32.mrf.mxu0
        %v5717 = vadd.f32 %v2024, %v5716
        %v5718 = vpop.f32.mrf.mxu0
        %5719 = vdwg.mxu0
        %5720 = vmatpush.bf16.msra.mxu0 %v4023
        %5721 = vmatpush.bf16.msra.mxu0 %v4007
        %5722 = vmatpush.bf16.msra.mxu0 %v3991
        %5723 = vmatpush.bf16.msra.mxu0 %v3975
        %5724 = vmatpush.bf16.msra.mxu0 %v3959
        %5725 = vmatpush.bf16.msra.mxu0 %v3943
        %5726 = vmatpush.bf16.msra.mxu0 %v3927
        %5727 = vmatpush.bf16.msra.mxu0 %v3911
        %5728 = vmatmul.bf16.gmra.mxu0 %v2035
        %v5729 = vpop.f32.mrf.mxu0
        %v5730 = vadd.f32 %v5717, %v5729
        %v5731 = vpop.f32.mrf.mxu0
        %5732 = vdwg.mxu0
        %5733 = vmatpush.bf16.msra.mxu0 %v4151
        %5734 = vmatpush.bf16.msra.mxu0 %v4135
        %5735 = vmatpush.bf16.msra.mxu0 %v4119
        %5736 = vmatpush.bf16.msra.mxu0 %v4103
        %5737 = vmatpush.bf16.msra.mxu0 %v4087
        %5738 = vmatpush.bf16.msra.mxu0 %v4071
        %5739 = vmatpush.bf16.msra.mxu0 %v4055
        %5740 = vmatpush.bf16.msra.mxu0 %v4039
        %5741 = vmatmul.bf16.gmra.mxu0 %v2036
        %v5742 = vpop.f32.mrf.mxu0
        %v5743 = vadd.f32 %v5730, %v5742
        %v5744 = vpop.f32.mrf.mxu0
        %5745 = vdwg.mxu0
        %5746 = vmatpush.bf16.msra.mxu0 %v4279
        %5747 = vmatpush.bf16.msra.mxu0 %v4263
        %5748 = vmatpush.bf16.msra.mxu0 %v4247
        %5749 = vmatpush.bf16.msra.mxu0 %v4231
        %5750 = vmatpush.bf16.msra.mxu0 %v4215
        %5751 = vmatpush.bf16.msra.mxu0 %v4199
        %5752 = vmatpush.bf16.msra.mxu0 %v4183
        %5753 = vmatpush.bf16.msra.mxu0 %v4167
        %5754 = vmatmul.bf16.gmra.mxu0 %v2037
        %v5755 = vpop.f32.mrf.mxu0
        %v5756 = vadd.f32 %v5743, %v5755
        %v5757 = vpop.f32.mrf.mxu0
        %5758 = vdwg.mxu0
        %5759 = vmatpush.bf16.msra.mxu0 0
        %5760 = vmatpush.bf16.msra.mxu0 0
        %5761 = vmatpush.bf16.msra.mxu0 0
        %5762 = vmatpush.bf16.msra.mxu0 0
        %5763 = vmatpush.bf16.msra.mxu0 %v4343
        %5764 = vmatpush.bf16.msra.mxu0 %v4327
        %5765 = vmatpush.bf16.msra.mxu0 %v4311
        %5766 = vmatpush.bf16.msra.mxu0 %v4295
        %5767 = vmatmul.bf16.gmra.mxu0 %v4925
        %v5768 = vpop.f32.mrf.mxu0
        %v5769 = vadd.f32 %v5756, %v5768
        %v5770 = vpop.f32.mrf.mxu0
        %5771 = vdwg.mxu0
        %5772 = vmatpush.bf16.msra.mxu0 %v3896
        %5773 = vmatpush.bf16.msra.mxu0 %v3880
        %5774 = vmatpush.bf16.msra.mxu0 %v3864
        %5775 = vmatpush.bf16.msra.mxu0 %v3848
        %5776 = vmatpush.bf16.msra.mxu0 %v3832
        %5777 = vmatpush.bf16.msra.mxu0 %v3816
        %5778 = vmatpush.bf16.msra.mxu0 %v3800
        %5779 = vmatpush.bf16.msra.mxu0 %v3784
        %5780 = vmatmul.bf16.gmra.mxu0 %v2034
        %v5781 = vpop.f32.mrf.mxu0
        %v5782 = vadd.f32 %v2024, %v5781
        %v5783 = vpop.f32.mrf.mxu0
        %5784 = vdwg.mxu0
        %5785 = vmatpush.bf16.msra.mxu0 %v4024
        %5786 = vmatpush.bf16.msra.mxu0 %v4008
        %5787 = vmatpush.bf16.msra.mxu0 %v3992
        %5788 = vmatpush.bf16.msra.mxu0 %v3976
        %5789 = vmatpush.bf16.msra.mxu0 %v3960
        %5790 = vmatpush.bf16.msra.mxu0 %v3944
        %5791 = vmatpush.bf16.msra.mxu0 %v3928
        %5792 = vmatpush.bf16.msra.mxu0 %v3912
        %5793 = vmatmul.bf16.gmra.mxu0 %v2035
        %v5794 = vpop.f32.mrf.mxu0
        %v5795 = vadd.f32 %v5782, %v5794
        %v5796 = vpop.f32.mrf.mxu0
        %5797 = vdwg.mxu0
        %5798 = vmatpush.bf16.msra.mxu0 %v4152
        %5799 = vmatpush.bf16.msra.mxu0 %v4136
        %5800 = vmatpush.bf16.msra.mxu0 %v4120
        %5801 = vmatpush.bf16.msra.mxu0 %v4104
        %5802 = vmatpush.bf16.msra.mxu0 %v4088
        %5803 = vmatpush.bf16.msra.mxu0 %v4072
        %5804 = vmatpush.bf16.msra.mxu0 %v4056
        %5805 = vmatpush.bf16.msra.mxu0 %v4040
        %5806 = vmatmul.bf16.gmra.mxu0 %v2036
        %v5807 = vpop.f32.mrf.mxu0
        %v5808 = vadd.f32 %v5795, %v5807
        %v5809 = vpop.f32.mrf.mxu0
        %5810 = vdwg.mxu0
        %5811 = vmatpush.bf16.msra.mxu0 %v4280
        %5812 = vmatpush.bf16.msra.mxu0 %v4264
        %5813 = vmatpush.bf16.msra.mxu0 %v4248
        %5814 = vmatpush.bf16.msra.mxu0 %v4232
        %5815 = vmatpush.bf16.msra.mxu0 %v4216
        %5816 = vmatpush.bf16.msra.mxu0 %v4200
        %5817 = vmatpush.bf16.msra.mxu0 %v4184
        %5818 = vmatpush.bf16.msra.mxu0 %v4168
        %5819 = vmatmul.bf16.gmra.mxu0 %v2037
        %v5820 = vpop.f32.mrf.mxu0
        %v5821 = vadd.f32 %v5808, %v5820
        %v5822 = vpop.f32.mrf.mxu0
        %5823 = vdwg.mxu0
        %5824 = vmatpush.bf16.msra.mxu0 0
        %5825 = vmatpush.bf16.msra.mxu0 0
        %5826 = vmatpush.bf16.msra.mxu0 0
        %5827 = vmatpush.bf16.msra.mxu0 0
        %5828 = vmatpush.bf16.msra.mxu0 %v4344
        %5829 = vmatpush.bf16.msra.mxu0 %v4328
        %5830 = vmatpush.bf16.msra.mxu0 %v4312
        %5831 = vmatpush.bf16.msra.mxu0 %v4296
        %5832 = vmatmul.bf16.gmra.mxu0 %v4925
        %v5833 = vpop.f32.mrf.mxu0
        %v5834 = vadd.f32 %v5821, %v5833
        %v5835 = vpop.f32.mrf.mxu0
        %5836 = vdwg.mxu0
        %5837 = vmatpush.bf16.msra.mxu0 %v3897
        %5838 = vmatpush.bf16.msra.mxu0 %v3881
        %5839 = vmatpush.bf16.msra.mxu0 %v3865
        %5840 = vmatpush.bf16.msra.mxu0 %v3849
        %5841 = vmatpush.bf16.msra.mxu0 %v3833
        %5842 = vmatpush.bf16.msra.mxu0 %v3817
        %5843 = vmatpush.bf16.msra.mxu0 %v3801
        %5844 = vmatpush.bf16.msra.mxu0 %v3785
        %5845 = vmatmul.bf16.gmra.mxu0 %v2034
        %v5846 = vpop.f32.mrf.mxu0
        %v5847 = vadd.f32 %v2024, %v5846
        %v5848 = vpop.f32.mrf.mxu0
        %5849 = vdwg.mxu0
        %5850 = vmatpush.bf16.msra.mxu0 %v4025
        %5851 = vmatpush.bf16.msra.mxu0 %v4009
        %5852 = vmatpush.bf16.msra.mxu0 %v3993
        %5853 = vmatpush.bf16.msra.mxu0 %v3977
        %5854 = vmatpush.bf16.msra.mxu0 %v3961
        %5855 = vmatpush.bf16.msra.mxu0 %v3945
        %5856 = vmatpush.bf16.msra.mxu0 %v3929
        %5857 = vmatpush.bf16.msra.mxu0 %v3913
        %5858 = vmatmul.bf16.gmra.mxu0 %v2035
        %v5859 = vpop.f32.mrf.mxu0
        %v5860 = vadd.f32 %v5847, %v5859
        %v5861 = vpop.f32.mrf.mxu0
        %5862 = vdwg.mxu0
        %5863 = vmatpush.bf16.msra.mxu0 %v4153
        %5864 = vmatpush.bf16.msra.mxu0 %v4137
        %5865 = vmatpush.bf16.msra.mxu0 %v4121
        %5866 = vmatpush.bf16.msra.mxu0 %v4105
        %5867 = vmatpush.bf16.msra.mxu0 %v4089
        %5868 = vmatpush.bf16.msra.mxu0 %v4073
        %5869 = vmatpush.bf16.msra.mxu0 %v4057
        %5870 = vmatpush.bf16.msra.mxu0 %v4041
        %5871 = vmatmul.bf16.gmra.mxu0 %v2036
        %v5872 = vpop.f32.mrf.mxu0
        %v5873 = vadd.f32 %v5860, %v5872
        %v5874 = vpop.f32.mrf.mxu0
        %5875 = vdwg.mxu0
        %5876 = vmatpush.bf16.msra.mxu0 %v4281
        %5877 = vmatpush.bf16.msra.mxu0 %v4265
        %5878 = vmatpush.bf16.msra.mxu0 %v4249
        %5879 = vmatpush.bf16.msra.mxu0 %v4233
        %5880 = vmatpush.bf16.msra.mxu0 %v4217
        %5881 = vmatpush.bf16.msra.mxu0 %v4201
        %5882 = vmatpush.bf16.msra.mxu0 %v4185
        %5883 = vmatpush.bf16.msra.mxu0 %v4169
        %5884 = vmatmul.bf16.gmra.mxu0 %v2037
        %v5885 = vpop.f32.mrf.mxu0
        %v5886 = vadd.f32 %v5873, %v5885
        %v5887 = vpop.f32.mrf.mxu0
        %5888 = vdwg.mxu0
        %5889 = vmatpush.bf16.msra.mxu0 0
        %5890 = vmatpush.bf16.msra.mxu0 0
        %5891 = vmatpush.bf16.msra.mxu0 0
        %5892 = vmatpush.bf16.msra.mxu0 0
        %5893 = vmatpush.bf16.msra.mxu0 %v4345
        %5894 = vmatpush.bf16.msra.mxu0 %v4329
        %5895 = vmatpush.bf16.msra.mxu0 %v4313
        %5896 = vmatpush.bf16.msra.mxu0 %v4297
        %5897 = vmatmul.bf16.gmra.mxu0 %v4925
        %v5898 = vpop.f32.mrf.mxu0
        %v5899 = vadd.f32 %v5886, %v5898
        %v5900 = vpop.f32.mrf.mxu0
        %5901 = vdwg.mxu0
        %5902 = vmatpush.bf16.msra.mxu0 %v3898
        %5903 = vmatpush.bf16.msra.mxu0 %v3882
        %5904 = vmatpush.bf16.msra.mxu0 %v3866
        %5905 = vmatpush.bf16.msra.mxu0 %v3850
        %5906 = vmatpush.bf16.msra.mxu0 %v3834
        %5907 = vmatpush.bf16.msra.mxu0 %v3818
        %5908 = vmatpush.bf16.msra.mxu0 %v3802
        %5909 = vmatpush.bf16.msra.mxu0 %v3786
        %5910 = vmatmul.bf16.gmra.mxu0 %v2034
        %v5911 = vpop.f32.mrf.mxu0
        %v5912 = vadd.f32 %v2024, %v5911
        %v5913 = vpop.f32.mrf.mxu0
        %5914 = vdwg.mxu0
        %5915 = vmatpush.bf16.msra.mxu0 %v4026
        %5916 = vmatpush.bf16.msra.mxu0 %v4010
        %5917 = vmatpush.bf16.msra.mxu0 %v3994
        %5918 = vmatpush.bf16.msra.mxu0 %v3978
        %5919 = vmatpush.bf16.msra.mxu0 %v3962
        %5920 = vmatpush.bf16.msra.mxu0 %v3946
        %5921 = vmatpush.bf16.msra.mxu0 %v3930
        %5922 = vmatpush.bf16.msra.mxu0 %v3914
        %5923 = vmatmul.bf16.gmra.mxu0 %v2035
        %v5924 = vpop.f32.mrf.mxu0
        %v5925 = vadd.f32 %v5912, %v5924
        %v5926 = vpop.f32.mrf.mxu0
        %5927 = vdwg.mxu0
        %5928 = vmatpush.bf16.msra.mxu0 %v4154
        %5929 = vmatpush.bf16.msra.mxu0 %v4138
        %5930 = vmatpush.bf16.msra.mxu0 %v4122
        %5931 = vmatpush.bf16.msra.mxu0 %v4106
        %5932 = vmatpush.bf16.msra.mxu0 %v4090
        %5933 = vmatpush.bf16.msra.mxu0 %v4074
        %5934 = vmatpush.bf16.msra.mxu0 %v4058
        %5935 = vmatpush.bf16.msra.mxu0 %v4042
        %5936 = vmatmul.bf16.gmra.mxu0 %v2036
        %v5937 = vpop.f32.mrf.mxu0
        %v5938 = vadd.f32 %v5925, %v5937
        %v5939 = vpop.f32.mrf.mxu0
        %5940 = vdwg.mxu0
        %5941 = vmatpush.bf16.msra.mxu0 %v4282
        %5942 = vmatpush.bf16.msra.mxu0 %v4266
        %5943 = vmatpush.bf16.msra.mxu0 %v4250
        %5944 = vmatpush.bf16.msra.mxu0 %v4234
        %5945 = vmatpush.bf16.msra.mxu0 %v4218
        %5946 = vmatpush.bf16.msra.mxu0 %v4202
        %5947 = vmatpush.bf16.msra.mxu0 %v4186
        %5948 = vmatpush.bf16.msra.mxu0 %v4170
        %5949 = vmatmul.bf16.gmra.mxu0 %v2037
        %v5950 = vpop.f32.mrf.mxu0
        %v5951 = vadd.f32 %v5938, %v5950
        %v5952 = vpop.f32.mrf.mxu0
        %5953 = vdwg.mxu0
        %5954 = vmatpush.bf16.msra.mxu0 0
        %5955 = vmatpush.bf16.msra.mxu0 0
        %5956 = vmatpush.bf16.msra.mxu0 0
        %5957 = vmatpush.bf16.msra.mxu0 0
        %5958 = vmatpush.bf16.msra.mxu0 %v4346
        %5959 = vmatpush.bf16.msra.mxu0 %v4330
        %5960 = vmatpush.bf16.msra.mxu0 %v4314
        %5961 = vmatpush.bf16.msra.mxu0 %v4298
        %5962 = vmatmul.bf16.gmra.mxu0 %v4925
        %v5963 = vpop.f32.mrf.mxu0
        %v5964 = vadd.f32 %v5951, %v5963
        %v5965 = vpop.f32.mrf.mxu0
        %5966 = vdwg.mxu0
        %v5967 = vsub.f32 0.0, %v4989
        %v5968 = vsub.f32 0.0, %v5054
        %v5969 = vsub.f32 0.0, %v5119
        %v5970 = vsub.f32 0.0, %v5184
        %v5971 = vsub.f32 0.0, %v5249
        %v5972 = vsub.f32 0.0, %v5314
        %v5973 = vsub.f32 0.0, %v5379
        %v5974 = vsub.f32 0.0, %v5444
        %v5975 = vsub.f32 0.0, %v5509
        %v5976 = vsub.f32 0.0, %v5574
        %v5977 = vsub.f32 0.0, %v5639
        %v5978 = vsub.f32 0.0, %v5704
        %v5979 = vsub.f32 0.0, %v5769
        %v5980 = vsub.f32 0.0, %v5834
        %v5981 = vsub.f32 0.0, %v5899
        %v5982 = vsub.f32 0.0, %v5964
        %v5983 = vmul.f32 %v5967, 1.442695
        %v5984 = vpow.pop %v5983
        %v5985 = vmul.f32 %v5968, 1.442695
        %v5986 = vpow.pop %v5985
        %v5987 = vmul.f32 %v5969, 1.442695
        %v5988 = vpow.pop %v5987
        %v5989 = vmul.f32 %v5970, 1.442695
        %v5990 = vpow.pop %v5989
        %v5991 = vmul.f32 %v5971, 1.442695
        %v5992 = vpow.pop %v5991
        %v5993 = vmul.f32 %v5972, 1.442695
        %v5994 = vpow.pop %v5993
        %v5995 = vmul.f32 %v5973, 1.442695
        %v5996 = vpow.pop %v5995
        %v5997 = vmul.f32 %v5974, 1.442695
        %v5998 = vpow.pop %v5997
        %v5999 = vmul.f32 %v5975, 1.442695
        %v6000 = vpow.pop %v5999
        %v6001 = vmul.f32 %v5976, 1.442695
        %v6002 = vpow.pop %v6001
        %v6003 = vmul.f32 %v5977, 1.442695
        %v6004 = vpow.pop %v6003
        %v6005 = vmul.f32 %v5978, 1.442695
        %v6006 = vpow.pop %v6005
        %v6007 = vmul.f32 %v5979, 1.442695
        %v6008 = vpow.pop %v6007
        %v6009 = vmul.f32 %v5980, 1.442695
        %v6010 = vpow.pop %v6009
        %v6011 = vmul.f32 %v5981, 1.442695
        %v6012 = vpow.pop %v6011
        %v6013 = vmul.f32 %v5982, 1.442695
        %v6014 = vpow.pop %v6013
        %v6015 = vadd.f32 %v5984, 1.0
        %v6016 = vadd.f32 %v5986, 1.0
        %v6017 = vadd.f32 %v5988, 1.0
        %v6018 = vadd.f32 %v5990, 1.0
        %v6019 = vadd.f32 %v5992, 1.0
        %v6020 = vadd.f32 %v5994, 1.0
        %v6021 = vadd.f32 %v5996, 1.0
        %v6022 = vadd.f32 %v5998, 1.0
        %v6023 = vadd.f32 %v6000, 1.0
        %v6024 = vadd.f32 %v6002, 1.0
        %v6025 = vadd.f32 %v6004, 1.0
        %v6026 = vadd.f32 %v6006, 1.0
        %v6027 = vadd.f32 %v6008, 1.0
        %v6028 = vadd.f32 %v6010, 1.0
        %v6029 = vadd.f32 %v6012, 1.0
        %v6030 = vadd.f32 %v6014, 1.0
        %v6031 = vrcp.pop %v6015
        %v6032 = vrcp.pop %v6016
        %v6033 = vrcp.pop %v6017
        %v6034 = vrcp.pop %v6018
        %v6035 = vrcp.pop %v6019
        %v6036 = vrcp.pop %v6020
        %v6037 = vrcp.pop %v6021
        %v6038 = vrcp.pop %v6022
        %v6039 = vrcp.pop %v6023
        %v6040 = vrcp.pop %v6024
        %v6041 = vrcp.pop %v6025
        %v6042 = vrcp.pop %v6026
        %v6043 = vrcp.pop %v6027
        %v6044 = vrcp.pop %v6028
        %v6045 = vrcp.pop %v6029
        %v6046 = vrcp.pop %v6030
        %v6047 = vmul.f32 %v4989, %v6031
        %v6048 = vmul.f32 %v5054, %v6032
        %v6049 = vmul.f32 %v5119, %v6033
        %v6050 = vmul.f32 %v5184, %v6034
        %v6051 = vmul.f32 %v5249, %v6035
        %v6052 = vmul.f32 %v5314, %v6036
        %v6053 = vmul.f32 %v5379, %v6037
        %v6054 = vmul.f32 %v5444, %v6038
        %v6055 = vmul.f32 %v5509, %v6039
        %v6056 = vmul.f32 %v5574, %v6040
        %v6057 = vmul.f32 %v5639, %v6041
        %v6058 = vmul.f32 %v5704, %v6042
        %v6059 = vmul.f32 %v5769, %v6043
        %v6060 = vmul.f32 %v5834, %v6044
        %v6061 = vmul.f32 %v5899, %v6045
        %v6062 = vmul.f32 %v5964, %v6046
        %p6063 = scmp.eq.s32.totalorder %s21, 0
        %v6064 = vld [vmem:[%s4] sm:$0x3]
        %s6065 = scalar_select %p6063, 1, 0
        %v6066 = vstv %s6065
        %vm6067 = vcmp.eq.s32.totalorder %v6066, 1
        %v6068 = vsel %vm6067, %v6064, 0.0
        %v6069 = vadd.f32 %v6047, %v6048
        %6070 = vadd.xlane.f32.xlu0 %v6069
        %v6071 = vpop.xlane.xlu0 %6070
        %v6072 = vld [vmem:[%s1431] sm:$0x3]
        %vm6073 = vcmask 64512
        %v6075 = vsel %vm6073, %v6072, 0
        %6077 = vmatpush.msra.mxu0 0.0
        %6078 = vmatpush.msra.mxu0 0.0
        %6079 = vmatpush.msra.mxu0 0.0
        %6080 = vmatpush.msra.mxu0 0.0
        %6081 = vmatpush.msra.mxu0 0.0
        %6082 = vmatpush.msra.mxu0 0.0
        %6083 = vmatpush.msra.mxu0 0.0
        %6084 = vmatpush.msra.mxu0 0.0
        %6085 = vmatpush.msra.mxu0 0.0
        %6086 = vmatpush.msra.mxu0 0.0
        %6087 = vmatpush.msra.mxu0 0.0
        %6088 = vmatpush.msra.mxu0 0.0
        %6089 = vmatpush.msra.mxu0 0.0
        %6090 = vmatpush.msra.mxu0 0.0
        %6091 = vmatpush.msra.mxu0 0.0
        %6092 = vmatpush.msra.mxu0 %v6071
        %6093 = vmatmul.f32.gmra.mxu0 %v6075
        %v6094 = vpop.f32.mrf.mxu0
        %v6095 = vadd.f32 0.0, %v6094
        %6096 = vdwg.mxu0
        %v6097 = vadd.f32 %v6068, %v6095
        %v6098 = vadd.f32 %v6049, %v6050
        %6099 = vadd.xlane.f32.xlu0 %v6098
        %v6100 = vpop.xlane.xlu0 %6099
        %s6101 = scalar_lea.vmem %s1431, 2
        %v6102 = vld [vmem:[%s6101] sm:$0x3]
        %v6104 = vsel %vm6073, %v6102, 0
        %6106 = vmatpush.msra.mxu0 0.0
        %6107 = vmatpush.msra.mxu0 0.0
        %6108 = vmatpush.msra.mxu0 0.0
        %6109 = vmatpush.msra.mxu0 0.0
        %6110 = vmatpush.msra.mxu0 0.0
        %6111 = vmatpush.msra.mxu0 0.0
        %6112 = vmatpush.msra.mxu0 0.0
        %6113 = vmatpush.msra.mxu0 0.0
        %6114 = vmatpush.msra.mxu0 0.0
        %6115 = vmatpush.msra.mxu0 0.0
        %6116 = vmatpush.msra.mxu0 0.0
        %6117 = vmatpush.msra.mxu0 0.0
        %6118 = vmatpush.msra.mxu0 0.0
        %6119 = vmatpush.msra.mxu0 0.0
        %6120 = vmatpush.msra.mxu0 0.0
        %6121 = vmatpush.msra.mxu0 %v6100
        %6122 = vmatmul.f32.gmra.mxu0 %v6104
        %v6123 = vpop.f32.mrf.mxu0
        %v6124 = vadd.f32 0.0, %v6123
        %6125 = vdwg.mxu0
        %v6126 = vadd.f32 %v6097, %v6124
        %v6127 = vadd.f32 %v6051, %v6052
        %6128 = vadd.xlane.f32.xlu0 %v6127
        %v6129 = vpop.xlane.xlu0 %6128
        %s6130 = scalar_lea.vmem %s1431, 4
        %v6131 = vld [vmem:[%s6130] sm:$0x3]
        %v6133 = vsel %vm6073, %v6131, 0
        %6135 = vmatpush.msra.mxu0 0.0
        %6136 = vmatpush.msra.mxu0 0.0
        %6137 = vmatpush.msra.mxu0 0.0
        %6138 = vmatpush.msra.mxu0 0.0
        %6139 = vmatpush.msra.mxu0 0.0
        %6140 = vmatpush.msra.mxu0 0.0
        %6141 = vmatpush.msra.mxu0 0.0
        %6142 = vmatpush.msra.mxu0 0.0
        %6143 = vmatpush.msra.mxu0 0.0
        %6144 = vmatpush.msra.mxu0 0.0
        %6145 = vmatpush.msra.mxu0 0.0
        %6146 = vmatpush.msra.mxu0 0.0
        %6147 = vmatpush.msra.mxu0 0.0
        %6148 = vmatpush.msra.mxu0 0.0
        %6149 = vmatpush.msra.mxu0 0.0
        %6150 = vmatpush.msra.mxu0 %v6129
        %6151 = vmatmul.f32.gmra.mxu0 %v6133
        %v6152 = vpop.f32.mrf.mxu0
        %v6153 = vadd.f32 0.0, %v6152
        %6154 = vdwg.mxu0
        %v6155 = vadd.f32 %v6126, %v6153
        %v6156 = vadd.f32 %v6053, %v6054
        %6157 = vadd.xlane.f32.xlu0 %v6156
        %v6158 = vpop.xlane.xlu0 %6157
        %s6159 = scalar_lea.vmem %s1431, 6
        %v6160 = vld [vmem:[%s6159] sm:$0x3]
        %v6162 = vsel %vm6073, %v6160, 0
        %6164 = vmatpush.msra.mxu0 0.0
        %6165 = vmatpush.msra.mxu0 0.0
        %6166 = vmatpush.msra.mxu0 0.0
        %6167 = vmatpush.msra.mxu0 0.0
        %6168 = vmatpush.msra.mxu0 0.0
        %6169 = vmatpush.msra.mxu0 0.0
        %6170 = vmatpush.msra.mxu0 0.0
        %6171 = vmatpush.msra.mxu0 0.0
        %6172 = vmatpush.msra.mxu0 0.0
        %6173 = vmatpush.msra.mxu0 0.0
        %6174 = vmatpush.msra.mxu0 0.0
        %6175 = vmatpush.msra.mxu0 0.0
        %6176 = vmatpush.msra.mxu0 0.0
        %6177 = vmatpush.msra.mxu0 0.0
        %6178 = vmatpush.msra.mxu0 0.0
        %6179 = vmatpush.msra.mxu0 %v6158
        %6180 = vmatmul.f32.gmra.mxu0 %v6162
        %v6181 = vpop.f32.mrf.mxu0
        %v6182 = vadd.f32 0.0, %v6181
        %6183 = vdwg.mxu0
        %v6184 = vadd.f32 %v6155, %v6182
        %v6185 = vadd.f32 %v6055, %v6056
        %6186 = vadd.xlane.f32.xlu0 %v6185
        %v6187 = vpop.xlane.xlu0 %6186
        %s6188 = scalar_lea.vmem %s1431, 8
        %v6189 = vld [vmem:[%s6188] sm:$0x3]
        %v6191 = vsel %vm6073, %v6189, 0
        %6193 = vmatpush.msra.mxu0 0.0
        %6194 = vmatpush.msra.mxu0 0.0
        %6195 = vmatpush.msra.mxu0 0.0
        %6196 = vmatpush.msra.mxu0 0.0
        %6197 = vmatpush.msra.mxu0 0.0
        %6198 = vmatpush.msra.mxu0 0.0
        %6199 = vmatpush.msra.mxu0 0.0
        %6200 = vmatpush.msra.mxu0 0.0
        %6201 = vmatpush.msra.mxu0 0.0
        %6202 = vmatpush.msra.mxu0 0.0
        %6203 = vmatpush.msra.mxu0 0.0
        %6204 = vmatpush.msra.mxu0 0.0
        %6205 = vmatpush.msra.mxu0 0.0
        %6206 = vmatpush.msra.mxu0 0.0
        %6207 = vmatpush.msra.mxu0 0.0
        %6208 = vmatpush.msra.mxu0 %v6187
        %6209 = vmatmul.f32.gmra.mxu0 %v6191
        %v6210 = vpop.f32.mrf.mxu0
        %v6211 = vadd.f32 0.0, %v6210
        %6212 = vdwg.mxu0
        %v6213 = vadd.f32 %v6184, %v6211
        %v6214 = vadd.f32 %v6057, %v6058
        %6215 = vadd.xlane.f32.xlu0 %v6214
        %v6216 = vpop.xlane.xlu0 %6215
        %s6217 = scalar_lea.vmem %s1431, 10
        %v6218 = vld [vmem:[%s6217] sm:$0x3]
        %v6220 = vsel %vm6073, %v6218, 0
        %6222 = vmatpush.msra.mxu0 0.0
        %6223 = vmatpush.msra.mxu0 0.0
        %6224 = vmatpush.msra.mxu0 0.0
        %6225 = vmatpush.msra.mxu0 0.0
        %6226 = vmatpush.msra.mxu0 0.0
        %6227 = vmatpush.msra.mxu0 0.0
        %6228 = vmatpush.msra.mxu0 0.0
        %6229 = vmatpush.msra.mxu0 0.0
        %6230 = vmatpush.msra.mxu0 0.0
        %6231 = vmatpush.msra.mxu0 0.0
        %6232 = vmatpush.msra.mxu0 0.0
        %6233 = vmatpush.msra.mxu0 0.0
        %6234 = vmatpush.msra.mxu0 0.0
        %6235 = vmatpush.msra.mxu0 0.0
        %6236 = vmatpush.msra.mxu0 0.0
        %6237 = vmatpush.msra.mxu0 %v6216
        %6238 = vmatmul.f32.gmra.mxu0 %v6220
        %v6239 = vpop.f32.mrf.mxu0
        %v6240 = vadd.f32 0.0, %v6239
        %6241 = vdwg.mxu0
        %v6242 = vadd.f32 %v6213, %v6240
        %v6243 = vadd.f32 %v6059, %v6060
        %6244 = vadd.xlane.f32.xlu0 %v6243
        %v6245 = vpop.xlane.xlu0 %6244
        %s6246 = scalar_lea.vmem %s1431, 12
        %v6247 = vld [vmem:[%s6246] sm:$0x3]
        %v6249 = vsel %vm6073, %v6247, 0
        %6251 = vmatpush.msra.mxu0 0.0
        %6252 = vmatpush.msra.mxu0 0.0
        %6253 = vmatpush.msra.mxu0 0.0
        %6254 = vmatpush.msra.mxu0 0.0
        %6255 = vmatpush.msra.mxu0 0.0
        %6256 = vmatpush.msra.mxu0 0.0
        %6257 = vmatpush.msra.mxu0 0.0
        %6258 = vmatpush.msra.mxu0 0.0
        %6259 = vmatpush.msra.mxu0 0.0
        %6260 = vmatpush.msra.mxu0 0.0
        %6261 = vmatpush.msra.mxu0 0.0
        %6262 = vmatpush.msra.mxu0 0.0
        %6263 = vmatpush.msra.mxu0 0.0
        %6264 = vmatpush.msra.mxu0 0.0
        %6265 = vmatpush.msra.mxu0 0.0
        %6266 = vmatpush.msra.mxu0 %v6245
        %6267 = vmatmul.f32.gmra.mxu0 %v6249
        %v6268 = vpop.f32.mrf.mxu0
        %v6269 = vadd.f32 0.0, %v6268
        %6270 = vdwg.mxu0
        %v6271 = vadd.f32 %v6242, %v6269
        %v6272 = vadd.f32 %v6061, %v6062
        %6273 = vadd.xlane.f32.xlu0 %v6272
        %v6274 = vpop.xlane.xlu0 %6273
        %s6275 = scalar_lea.vmem %s1431, 14
        %v6276 = vld [vmem:[%s6275] sm:$0x3]
        %v6278 = vsel %vm6073, %v6276, 0
        %6280 = vmatpush.msra.mxu0 0.0
        %6281 = vmatpush.msra.mxu0 0.0
        %6282 = vmatpush.msra.mxu0 0.0
        %6283 = vmatpush.msra.mxu0 0.0
        %6284 = vmatpush.msra.mxu0 0.0
        %6285 = vmatpush.msra.mxu0 0.0
        %6286 = vmatpush.msra.mxu0 0.0
        %6287 = vmatpush.msra.mxu0 0.0
        %6288 = vmatpush.msra.mxu0 0.0
        %6289 = vmatpush.msra.mxu0 0.0
        %6290 = vmatpush.msra.mxu0 0.0
        %6291 = vmatpush.msra.mxu0 0.0
        %6292 = vmatpush.msra.mxu0 0.0
        %6293 = vmatpush.msra.mxu0 0.0
        %6294 = vmatpush.msra.mxu0 0.0
        %6295 = vmatpush.msra.mxu0 %v6274
        %6296 = vmatmul.f32.gmra.mxu0 %v6278
        %v6297 = vpop.f32.mrf.mxu0
        %v6298 = vadd.f32 0.0, %v6297
        %6299 = vdwg.mxu0
        %v6300 = vadd.f32 %v6271, %v6298
        %vm6301 = vcmask 1024
        %6302 = vst.msk [vmem:[%s1439] sm:$0x3] %vm6301, %v6300
        %p6303 = scmp.lt.s32.totalorder %s20, 1
        %s6304 = scalar_select %p6303, %s20, 1
        %p6305 = scmp.lt.s32.totalorder %s21, 1
        %s6306 = scalar_select %p6305, %s21, 1
        %s6307 = smul.addr %s6304, 2
        %s6308 = sadd.s32 %s6306, %s6307
        %s6309 = smul.addr %s6308, 2
        %s6310 = scalar_lea.vmem %s5, %s6309
        // Predicated region
        $region64: #{decoder2vector_forward.1} parent=58 // pred_check
          %p6311 = pneg %p165
        $region65: #{decoder2vector_forward.1} parent=58 // pred_check_branch
          %6313 = sbr.rel (%p6311) target = $region67
        $region66: #{decoder2vector_forward.1} parent=58 // pred_region
          _
        $region67: #{decoder2vector_forward.1} parent=58 // pred_fallthru
          _
      $region59: #{decoder2vector_forward.1} parent=5 // pred_fallthru
        _
      %p6314 = scmp.le.s32.totalorder 2, %s11
      // Predicated region
      $region68: #{decoder2vector_forward.1} parent=5 // pred_check
        %p6315 = pneg %p6314
      $region69: #{decoder2vector_forward.1} parent=5 // pred_check_branch
        %6317 = sbr.rel (%p6315) target = $region71
      $region70: #{decoder2vector_forward.1} parent=5 // pred_region
        %s6318 = ssub.s32 %s11, 2
        // Predicated region
        $region72: #{decoder2vector_forward.1} parent=70 // pred_check
          %p6319 = pneg %p171
        $region73: #{decoder2vector_forward.1} parent=70 // pred_check_branch
          %6321 = sbr.rel (%p6319) target = $region75
        $region74: #{decoder2vector_forward.1} parent=70 // pred_region
          %p6322 = scmp.lt.s32.totalorder %s22, 1
          %s6323 = scalar_select %p6322, %s22, 1
          %p6324 = scmp.lt.s32.totalorder %s23, 1
          %s6325 = scalar_select %p6324, %s23, 1
          %s6326 = smul.addr %s6323, 2
          %s6327 = sadd.s32 %s6325, %s6326
          %s6328 = smul.addr %s6327, 2
          %s6329 = scalar_lea.vmem %s5, %s6328
        $region75: #{decoder2vector_forward.1} parent=70 // pred_fallthru
          _
      $region71: #{decoder2vector_forward.1} parent=5 // pred_fallthru
        _
    $region6: #{decoder2vector_forward.1} parent=1 // loop_footer
      %s15 = sadd.s32 1, %s11
    $region7: #{decoder2vector_forward.1} parent=1 // loop_footer_branch
      %10 = sbr.rel target = $region3
    $region8: #{decoder2vector_forward.1} parent=1 // loop_exit
      _

</llo_original>
